<compile_context>
chip_gen: v6e
topology: v6e:2x2x1
jax: 0.10.0
libtpu: 0.0.40
codegen_flags: <defaults>
</compile_context>

<pallas_src>
import functools

import jax
import jax.numpy as jnp
from jax.experimental import pallas as pl
from jax.experimental.pallas import tpu as pltpu

VOCAB = 14463
VPAD = 14592             # 114 * 128 lanes
FC_TILE_V = VPAD // 6    # 2432 = 19*128 -> grid of 6 vocab tiles
SUBLANE = 8


# ----------------------------------------------------------------------------
# LSTM kernel: whole sequence resident in VMEM, time loop inside the kernel.
# PyTorch gate order: [i, f, g, o].  Biases are (b_ih + b_hh) per layer.
# x_ref / out_ref are flattened time-major: row t*Bp + b.
# ----------------------------------------------------------------------------
def _lstm_kernel(x_ref, wih0_ref, whh0_ref, b0_ref,
                 wih1_ref, whh1_ref, b1_ref, out_ref, xw0_ref, *, T, Bp):
    H = out_ref.shape[1]

    # Layer-0 input projection hoisted out of the serial time loop:
    # one (T*Bp, E) @ (E, 4H) MXU call (+ bias) staged in VMEM scratch.
    xw0_ref[...] = (
        jnp.dot(x_ref[...], wih0_ref[...], preferred_element_type=jnp.float32)
        + b0_ref[...])

    # Hoist only the tiny layer-1 bias; weights are re-read from VMEM refs
    # inside the loop (vld slots have slack in this latency-bound loop),
    # keeping vreg pressure low across the unrolled body.
    b1 = b1_ref[...]

    def activations(gates):
        # Two full-width (Bp, 4H) EUP calls instead of eight narrow slices;
        # i/f/g/o are then cheap lane sub-slices of the wide results.
        sig = jax.nn.sigmoid(gates)
        th = jnp.tanh(gates)
        return (sig[:, 0 * H:1 * H],   # i
                sig[:, 1 * H:2 * H],   # f
                th[:, 2 * H:3 * H],    # g
                sig[:, 3 * H:4 * H])   # o

    def body(t, carry):
        h0, c0, h1, c1 = carry
        row = pl.multiple_of(t * Bp, SUBLANE)

        # Layer 0: recurrent matmul only (input part precomputed above).
        g0 = xw0_ref[pl.ds(row, Bp), :] + jnp.dot(
            h0, whh0_ref[...], preferred_element_type=jnp.float32)
        i0, f0, gg0, o0 = activations(g0)
        c0 = f0 * c0 + i0 * gg0
        h0 = o0 * jnp.tanh(c0)

        # Layer 1: two small dots instead of concat([h0, h1]) + one dot.
        g1 = (jnp.dot(h0, wih1_ref[...], preferred_element_type=jnp.float32)
              + jnp.dot(h1, whh1_ref[...], preferred_element_type=jnp.float32)
              + b1)
        i1, f1, gg1, o1 = activations(g1)
        c1 = f1 * c1 + i1 * gg1
        h1 = o1 * jnp.tanh(c1)

        out_ref[pl.ds(row, Bp), :] = h1
        return (h0, c0, h1, c1)

    z = jnp.zeros((Bp, H), jnp.float32)
    jax.lax.fori_loop(0, T, body, (z, z, z, z), unroll=True)


def lstm_forward(x_flat, T, Bp, wih0, whh0, b0, wih1, whh1, b1):
    """x_flat: (T*Bp, E) time-major flattened input. Returns (T*Bp, H)."""
    H = b0.shape[1] // 4
    vmem_spec = pl.BlockSpec(memory_space=pltpu.MemorySpace.VMEM)
    kernel = functools.partial(_lstm_kernel, T=T, Bp=Bp)
    # No grid: activations + weights are a few tens of KB; everything lives
    # in VMEM and the recurrence runs as an in-kernel unrolled loop.
    return pl.pallas_call(
        kernel,
        out_shape=jax.ShapeDtypeStruct((T * Bp, H), jnp.float32),
        in_specs=[vmem_spec] * 7,
        out_specs=vmem_spec,
        scratch_shapes=[pltpu.VMEM((T * Bp, 4 * H), jnp.float32)],
    )(x_flat, wih0, whh0, b0, wih1, whh1, b1)


# ----------------------------------------------------------------------------
# FC head kernel: 6 lane-aligned vocab tiles (3 pipelined steps per TC on
# v7x, 6 on single-TC chips).  fc_w is bf16 in HBM; f32 MXU math is kept so
# the result matches the f32 reference at 1e-4 (the kernel is output-
# writeback-bound, so the in-kernel upcast hides under the output DMA).
# ----------------------------------------------------------------------------
def _fc_kernel(x_ref, w_ref, b_ref, o_ref):
    w = w_ref[...].astype(jnp.float32)
    o_ref[...] = (jnp.dot(x_ref[...], w, preferred_element_type=jnp.float32)
                  + b_ref[...])


def fc_forward(x, w, b, tile_v=FC_TILE_V):
    """x: (N, H) f32, w: (H, Vpad) bf16, b: (1, Vpad) f32 -> (N, Vpad) f32."""
    N, H = x.shape
    Vpad = w.shape[1]
    assert Vpad % tile_v == 0
    return pl.pallas_call(
        _fc_kernel,
        out_shape=jax.ShapeDtypeStruct((N, Vpad), jnp.float32),
        grid_spec=pltpu.PrefetchScalarGridSpec(
            num_scalar_prefetch=0,
            grid=(Vpad // tile_v,),
            in_specs=[
                pl.BlockSpec((N, H), lambda j: (0, 0)),        # resident x
                pl.BlockSpec((H, tile_v), lambda j: (0, j)),
                pl.BlockSpec((1, tile_v), lambda j: (0, j)),
            ],
            out_specs=pl.BlockSpec((N, tile_v), lambda j: (0, j)),
        ),
        compiler_params=pltpu.CompilerParams(
            dimension_semantics=("parallel",)),
    )(x, w, b)


# ----------------------------------------------------------------------------
# Full model (teacher_forcing=True path of CNN_LSTM.forward)
# ----------------------------------------------------------------------------
def cnn_lstm_forward(params, images, captions):
    B, E = images.shape
    # Embedding lookup (gather) and time-step concat done in plain JAX.
    cap_emb = jnp.take(params["embedding"], captions, axis=0)        # (B, S, E)
    x = jnp.concatenate([images[:, None, :], cap_emb], axis=1)       # (B, T, E)
    x_tme = jnp.transpose(x, (1, 0, 2)).astype(jnp.float32)          # (T, B, E)
    T = x_tme.shape[0]

    # Pad batch to the sublane width (8) so vreg rows / MXU LHS are dense.
    Bp = max(SUBLANE, ((B + SUBLANE - 1) // SUBLANE) * SUBLANE)
    if Bp != B:
        x_tme = jnp.pad(x_tme, ((0, 0), (0, Bp - B), (0, 0)))
    x_flat = x_tme.reshape(T * Bp, E)                                 # (T*Bp, E)

    hid_flat = lstm_forward(
        x_flat, T, Bp,
        params["wih0"], params["whh0"], params["b0"],
        params["wih1"], params["whh1"], params["b1"])                 # (T*Bp, H)
    H = hid_flat.shape[-1]

    # Re-order the hiddens (a 9 KB transpose) so the FC kernel writes logits
    # directly in (batch, time, vocab) row order -> no multi-MB post-kernel
    # logits transpose.
    hid_bt = jnp.transpose(hid_flat.reshape(T, Bp, H), (1, 0, 2)).reshape(Bp * T, H)

    logits_pad = fc_forward(hid_bt, params["fc_w"], params["fc_b"])   # (Bp*T, Vpad)
    logits = logits_pad.reshape(Bp, T, VPAD)[:B, :, :VOCAB]           # (B, T, V)
    return logits


# ----------------------------------------------------------------------------
# Pure-JAX reference (mirrors torch.nn.LSTM + Linear) for correctness check.
# ----------------------------------------------------------------------------
def reference_forward(params, images, captions):
    cap_emb = jnp.take(params["embedding"], captions, axis=0)
    x = jnp.concatenate([images[:, None, :], cap_emb], axis=1)       # (B, T, E)
    B, T, E = x.shape
    H = params["b0"].shape[1] // 4
    hp = jax.lax.Precision.HIGHEST

    def cell(x_in, h, c, wih, whh, b):
        gates = (jnp.dot(x_in, wih, precision=hp)
                 + jnp.dot(h, whh, precision=hp) + b)
        i = jax.nn.sigmoid(gates[:, 0 * H:1 * H])
        f = jax.nn.sigmoid(gates[:, 1 * H:2 * H])
        g = jnp.tanh(gates[:, 2 * H:3 * H])
        o = jax.nn.sigmoid(gates[:, 3 * H:4 * H])
        c_new = f * c + i * g
        return o * jnp.tanh(c_new), c_new

    h0 = jnp.zeros((B, H)); c0 = jnp.zeros((B, H))
    h1 = jnp.zeros((B, H)); c1 = jnp.zeros((B, H))
    outs = []
    for t in range(T):
        h0, c0 = cell(x[:, t], h0, c0, params["wih0"], params["whh0"], params["b0"])
        h1, c1 = cell(h0, h1, c1, params["wih1"], params["whh1"], params["b1"])
        outs.append(h1)
    hid = jnp.stack(outs, axis=1)                                    # (B, T, H)
    fc_w = params["fc_w"][:, :VOCAB].astype(jnp.float32)
    logits = jnp.dot(hid, fc_w, precision=hp) + params["fc_b"][0, :VOCAB]
    return logits                                                    # (B, T, V)


def make_params(key, embedding_size, hidden_size):
    E, H = embedding_size, hidden_size
    ks = jax.random.split(key, 10)
    s = 0.1
    fc_w = jnp.zeros((H, VPAD), jnp.bfloat16).at[:, :VOCAB].set(
        (jax.random.normal(ks[7], (H, VOCAB), jnp.float32) * s
         ).astype(jnp.bfloat16))
    fc_b = jnp.zeros((1, VPAD), jnp.float32).at[0, :VOCAB].set(
        jax.random.normal(ks[8], (VOCAB,), jnp.float32) * s)
    return {
        "embedding": jax.random.normal(ks[0], (VOCAB, E), jnp.float32) * s,
        "wih0": jax.random.normal(ks[1], (E, 4 * H), jnp.float32) * s,
        "whh0": jax.random.normal(ks[2], (H, 4 * H), jnp.float32) * s,
        "b0": jax.random.normal(ks[3], (1, 4 * H), jnp.float32) * s,
        "wih1": jax.random.normal(ks[4], (H, 4 * H), jnp.float32) * s,
        "whh1": jax.random.normal(ks[5], (H, 4 * H), jnp.float32) * s,
        "b1": jax.random.normal(ks[6], (1, 4 * H), jnp.float32) * s,
        "fc_w": fc_w,
        "fc_b": fc_b,
    }


if __name__ == "__main__":
    B, S = 2, 8          # batch, caption length
    E, H = 32, 32        # embedding_size, hidden_size

    key = jax.random.PRNGKey(0)
    kp, ki, kc = jax.random.split(key, 3)
    params = make_params(kp, E, H)

    images = jax.random.normal(ki, (B, E), jnp.float32)
    captions = jax.random.randint(kc, (B, S), 0, VOCAB, dtype=jnp.int32)

    fwd = jax.jit(functools.partial(cnn_lstm_forward, params))
    out = jax.block_until_ready(fwd(images, captions))

    ref = reference_forward(params, images, captions)
    assert out.shape == (B, S + 1, VOCAB), out.shape
    assert jnp.allclose(out, ref, atol=1e-4, rtol=1e-4), float(
        jnp.max(jnp.abs(out - ref)))

    print("KERNEL_OK")
</pallas_src>

<mosaic_0001>
module attributes {stable_mosaic.version = 11 : i64} {
  func.func @_fc_kernel(%arg0: i32, %arg1: memref<72x32xf32, #tpu.memory_space<vmem>>, %arg2: memref<32x2432xbf16, #tpu.memory_space<vmem>>, %arg3: memref<1x2432xf32, #tpu.memory_space<vmem>>, %arg4: memref<72x2432xf32, #tpu.memory_space<vmem>>) attributes {dimension_semantics = [#tpu.dimension_semantics<parallel>], iteration_bounds = array<i64: 6>, scalar_prefetch = 0 : i64, scratch_operands = 0 : i64, tpu.core_type = #tpu.core_type<tc>, window_params = [{pipeline_mode = #tpu.pipeline_mode<synchronous>, transform_indices = @transform_0, window_bounds = array<i64: 72, 32>}, {transform_indices = @transform_1, window_bounds = array<i64: 32, 2432>}, {transform_indices = @transform_2, window_bounds = array<i64: 1, 2432>}, {transform_indices = @transform_3, window_bounds = array<i64: 72, 2432>}]} {
    %c0 = arith.constant 0 : index
    %c0_0 = arith.constant 0 : index
    %0 = vector.load %arg2[%c0, %c0_0] : memref<32x2432xbf16, #tpu.memory_space<vmem>>, vector<32x2432xbf16>
    %1 = arith.extf %0 : vector<32x2432xbf16> to vector<32x2432xf32>
    %c0_1 = arith.constant 0 : index
    %c0_2 = arith.constant 0 : index
    %2 = vector.load %arg1[%c0_1, %c0_2] : memref<72x32xf32, #tpu.memory_space<vmem>>, vector<72x32xf32>
    %cst = arith.constant dense<0.000000e+00> : vector<72x2432xf32>
    %3 = tpu.matmul %2, %1, %cst {dimension_numbers = #tpu.dot_dimension_numbers<[1], [0], [0], [1], [0, 0, 1, 1], [], []>} : vector<72x32xf32>, vector<32x2432xf32>, vector<72x2432xf32> -> vector<72x2432xf32>
    %c0_3 = arith.constant 0 : index
    %c0_4 = arith.constant 0 : index
    %4 = vector.load %arg3[%c0_3, %c0_4] : memref<1x2432xf32, #tpu.memory_space<vmem>>, vector<1x2432xf32>
    %5 = vector.broadcast %4 : vector<1x2432xf32> to vector<72x2432xf32>
    %6 = arith.addf %3, %5 : vector<72x2432xf32>
    %c0_5 = arith.constant 0 : index
    %c0_6 = arith.constant 0 : index
    %7 = vector.load %arg4[%c0_5, %c0_6] : memref<72x2432xf32, #tpu.memory_space<vmem>>, vector<72x2432xf32>
    tpu.vector_store %arg4[%c0_5, %c0_6], %6 {strides = array<i32>} : memref<72x2432xf32, #tpu.memory_space<vmem>>, vector<72x2432xf32>,
    return
  }
  func.func @transform_0(%arg0: i32) -> (i32, i32) {
    %c0_i32 = arith.constant 0 : i32
    %c0_i32_0 = arith.constant 0 : i32
    %c0_i32_1 = arith.constant 0 : i32
    return %c0_i32, %c0_i32_0 : i32, i32
  }
  func.func @transform_1(%arg0: i32) -> (i32, i32) {
    %c0_i32 = arith.constant 0 : i32
    %c0_i32_0 = arith.constant 0 : i32
    return %c0_i32, %arg0 : i32, i32
  }
  func.func @transform_2(%arg0: i32) -> (i32, i32) {
    %c0_i32 = arith.constant 0 : i32
    %c0_i32_0 = arith.constant 0 : i32
    return %c0_i32, %arg0 : i32, i32
  }
  func.func @transform_3(%arg0: i32) -> (i32, i32) {
    %c0_i32 = arith.constant 0 : i32
    %c0_i32_0 = arith.constant 0 : i32
    return %c0_i32, %arg0 : i32, i32
  }
}

module attributes {stable_mosaic.version = 11 : i64} {
  func.func @_lstm_kernel(%arg0: memref<72x32xf32, #tpu.memory_space<vmem>>, %arg1: memref<32x128xf32, #tpu.memory_space<vmem>>, %arg2: memref<32x128xf32, #tpu.memory_space<vmem>>, %arg3: memref<1x128xf32, #tpu.memory_space<vmem>>, %arg4: memref<32x128xf32, #tpu.memory_space<vmem>>, %arg5: memref<32x128xf32, #tpu.memory_space<vmem>>, %arg6: memref<1x128xf32, #tpu.memory_space<vmem>>, %arg7: memref<72x32xf32, #tpu.memory_space<vmem>>, %arg8: memref<72x128xf32, #tpu.memory_space<vmem>>) attributes {dimension_semantics = [], scalar_prefetch = 0 : i64, scratch_operands = 1 : i64, tpu.core_type = #tpu.core_type<tc>} {
    %c0 = arith.constant 0 : index
    %c0_0 = arith.constant 0 : index
    %0 = vector.load %arg0[%c0, %c0_0] : memref<72x32xf32, #tpu.memory_space<vmem>>, vector<72x32xf32>
    %c0_1 = arith.constant 0 : index
    %c0_2 = arith.constant 0 : index
    %1 = vector.load %arg1[%c0_1, %c0_2] : memref<32x128xf32, #tpu.memory_space<vmem>>, vector<32x128xf32>
    %cst = arith.constant dense<0.000000e+00> : vector<72x128xf32>
    %2 = tpu.matmul %0, %1, %cst {dimension_numbers = #tpu.dot_dimension_numbers<[1], [0], [0], [1], [0, 0, 1, 1], [], []>} : vector<72x32xf32>, vector<32x128xf32>, vector<72x128xf32> -> vector<72x128xf32>
    %c0_3 = arith.constant 0 : index
    %c0_4 = arith.constant 0 : index
    %3 = vector.load %arg3[%c0_3, %c0_4] : memref<1x128xf32, #tpu.memory_space<vmem>>, vector<1x128xf32>
    %4 = vector.broadcast %3 : vector<1x128xf32> to vector<72x128xf32>
    %5 = arith.addf %2, %4 : vector<72x128xf32>
    %c0_5 = arith.constant 0 : index
    %c0_6 = arith.constant 0 : index
    %6 = vector.load %arg8[%c0_5, %c0_6] : memref<72x128xf32, #tpu.memory_space<vmem>>, vector<72x128xf32>
    tpu.vector_store %arg8[%c0_5, %c0_6], %5 {strides = array<i32>} : memref<72x128xf32, #tpu.memory_space<vmem>>, vector<72x128xf32>,
    %c0_7 = arith.constant 0 : index
    %c0_8 = arith.constant 0 : index
    %7 = vector.load %arg6[%c0_7, %c0_8] : memref<1x128xf32, #tpu.memory_space<vmem>>, vector<1x128xf32>
    %cst_9 = arith.constant 0.000000e+00 : f32
    %8 = vector.broadcast %cst_9 : f32 to vector<8x32xf32>
    %c0_i32 = arith.constant 0 : i32
    %c8_i32 = arith.constant 8 : i32
    %9 = arith.muli %c0_i32, %c8_i32 : i32
    %10 = tpu.assume_multiple %9, 8 : i32
    %11 = arith.index_cast %10 : i32 to index
    %c0_10 = arith.constant 0 : index
    %12 = vector.load %arg8[%11, %c0_10] : memref<72x128xf32, #tpu.memory_space<vmem>>, vector<8x128xf32>
    %c0_11 = arith.constant 0 : index
    %c0_12 = arith.constant 0 : index
    %13 = vector.load %arg2[%c0_11, %c0_12] : memref<32x128xf32, #tpu.memory_space<vmem>>, vector<32x128xf32>
    %cst_13 = arith.constant dense<0.000000e+00> : vector<8x128xf32>
    %14 = tpu.matmul %8, %13, %cst_13 {dimension_numbers = #tpu.dot_dimension_numbers<[1], [0], [0], [1], [0, 0, 1, 1], [], []>} : vector<8x32xf32>, vector<32x128xf32>, vector<8x128xf32> -> vector<8x128xf32>
    %15 = arith.addf %12, %14 : vector<8x128xf32>
    %16 = arith.negf %15 : vector<8x128xf32>
    %17 = math.exp %16 : vector<8x128xf32>
    %cst_14 = arith.constant 1.000000e+00 : f32
    %18 = vector.broadcast %cst_14 : f32 to vector<8x128xf32>
    %19 = arith.addf %18, %17 : vector<8x128xf32>
    %20 = arith.divf %18, %19 : vector<8x128xf32>
    %21 = math.tanh %15 : vector<8x128xf32>
    %22 = vector.extract_strided_slice %20 {offsets = [0, 0], sizes = [8, 32], strides = [1, 1]} : vector<8x128xf32> to vector<8x32xf32>
    %23 = vector.extract_strided_slice %20 {offsets = [0, 32], sizes = [8, 32], strides = [1, 1]} : vector<8x128xf32> to vector<8x32xf32>
    %24 = vector.extract_strided_slice %21 {offsets = [0, 64], sizes = [8, 32], strides = [1, 1]} : vector<8x128xf32> to vector<8x32xf32>
    %25 = vector.extract_strided_slice %20 {offsets = [0, 96], sizes = [8, 32], strides = [1, 1]} : vector<8x128xf32> to vector<8x32xf32>
    %26 = arith.mulf %23, %8 : vector<8x32xf32>
    %27 = arith.mulf %22, %24 : vector<8x32xf32>
    %28 = arith.addf %26, %27 : vector<8x32xf32>
    %29 = math.tanh %28 : vector<8x32xf32>
    %30 = arith.mulf %25, %29 : vector<8x32xf32>
    %c0_15 = arith.constant 0 : index
    %c0_16 = arith.constant 0 : index
    %31 = vector.load %arg4[%c0_15, %c0_16] : memref<32x128xf32, #tpu.memory_space<vmem>>, vector<32x128xf32>
    %cst_17 = arith.constant dense<0.000000e+00> : vector<8x128xf32>
    %32 = tpu.matmul %30, %31, %cst_17 {dimension_numbers = #tpu.dot_dimension_numbers<[1], [0], [0], [1], [0, 0, 1, 1], [], []>} : vector<8x32xf32>, vector<32x128xf32>, vector<8x128xf32> -> vector<8x128xf32>
    %c0_18 = arith.constant 0 : index
    %c0_19 = arith.constant 0 : index
    %33 = vector.load %arg5[%c0_18, %c0_19] : memref<32x128xf32, #tpu.memory_space<vmem>>, vector<32x128xf32>
    %cst_20 = arith.constant dense<0.000000e+00> : vector<8x128xf32>
    %34 = tpu.matmul %8, %33, %cst_20 {dimension_numbers = #tpu.dot_dimension_numbers<[1], [0], [0], [1], [0, 0, 1, 1], [], []>} : vector<8x32xf32>, vector<32x128xf32>, vector<8x128xf32> -> vector<8x128xf32>
    %35 = arith.addf %32, %34 : vector<8x128xf32>
    %36 = vector.broadcast %7 : vector<1x128xf32> to vector<8x128xf32>
    %37 = arith.addf %35, %36 : vector<8x128xf32>
    %38 = arith.negf %37 : vector<8x128xf32>
    %39 = math.exp %38 : vector<8x128xf32>
    %cst_21 = arith.constant 1.000000e+00 : f32
    %40 = vector.broadcast %cst_21 : f32 to vector<8x128xf32>
    %41 = arith.addf %40, %39 : vector<8x128xf32>
    %42 = arith.divf %40, %41 : vector<8x128xf32>
    %43 = math.tanh %37 : vector<8x128xf32>
    %44 = vector.extract_strided_slice %42 {offsets = [0, 0], sizes = [8, 32], strides = [1, 1]} : vector<8x128xf32> to vector<8x32xf32>
    %45 = vector.extract_strided_slice %42 {offsets = [0, 32], sizes = [8, 32], strides = [1, 1]} : vector<8x128xf32> to vector<8x32xf32>
    %46 = vector.extract_strided_slice %43 {offsets = [0, 64], sizes = [8, 32], strides = [1, 1]} : vector<8x128xf32> to vector<8x32xf32>
    %47 = vector.extract_strided_slice %42 {offsets = [0, 96], sizes = [8, 32], strides = [1, 1]} : vector<8x128xf32> to vector<8x32xf32>
    %48 = arith.mulf %45, %8 : vector<8x32xf32>
    %49 = arith.mulf %44, %46 : vector<8x32xf32>
    %50 = arith.addf %48, %49 : vector<8x32xf32>
    %51 = math.tanh %50 : vector<8x32xf32>
    %52 = arith.mulf %47, %51 : vector<8x32xf32>
    %53 = arith.index_cast %10 : i32 to index
    %c0_22 = arith.constant 0 : index
    %54 = vector.load %arg7[%53, %c0_22] : memref<72x32xf32, #tpu.memory_space<vmem>>, vector<8x32xf32>
    tpu.vector_store %arg7[%53, %c0_22], %52 {strides = array<i32>} : memref<72x32xf32, #tpu.memory_space<vmem>>, vector<8x32xf32>,
    %c1_i32 = arith.constant 1 : i32
    %c8_i32_23 = arith.constant 8 : i32
    %55 = arith.muli %c1_i32, %c8_i32_23 : i32
    %56 = tpu.assume_multiple %55, 8 : i32
    %57 = arith.index_cast %56 : i32 to index
    %c0_24 = arith.constant 0 : index
    %58 = vector.load %arg8[%57, %c0_24] : memref<72x128xf32, #tpu.memory_space<vmem>>, vector<8x128xf32>
    %c0_25 = arith.constant 0 : index
    %c0_26 = arith.constant 0 : index
    %59 = vector.load %arg2[%c0_25, %c0_26] : memref<32x128xf32, #tpu.memory_space<vmem>>, vector<32x128xf32>
    %cst_27 = arith.constant dense<0.000000e+00> : vector<8x128xf32>
    %60 = tpu.matmul %30, %59, %cst_27 {dimension_numbers = #tpu.dot_dimension_numbers<[1], [0], [0], [1], [0, 0, 1, 1], [], []>} : vector<8x32xf32>, vector<32x128xf32>, vector<8x128xf32> -> vector<8x128xf32>
    %61 = arith.addf %58, %60 : vector<8x128xf32>
    %62 = arith.negf %61 : vector<8x128xf32>
    %63 = math.exp %62 : vector<8x128xf32>
    %cst_28 = arith.constant 1.000000e+00 : f32
    %64 = vector.broadcast %cst_28 : f32 to vector<8x128xf32>
    %65 = arith.addf %64, %63 : vector<8x128xf32>
    %66 = arith.divf %64, %65 : vector<8x128xf32>
    %67 = math.tanh %61 : vector<8x128xf32>
    %68 = vector.extract_strided_slice %66 {offsets = [0, 0], sizes = [8, 32], strides = [1, 1]} : vector<8x128xf32> to vector<8x32xf32>
    %69 = vector.extract_strided_slice %66 {offsets = [0, 32], sizes = [8, 32], strides = [1, 1]} : vector<8x128xf32> to vector<8x32xf32>
    %70 = vector.extract_strided_slice %67 {offsets = [0, 64], sizes = [8, 32], strides = [1, 1]} : vector<8x128xf32> to vector<8x32xf32>
    %71 = vector.extract_strided_slice %66 {offsets = [0, 96], sizes = [8, 32], strides = [1, 1]} : vector<8x128xf32> to vector<8x32xf32>
    %72 = arith.mulf %69, %28 : vector<8x32xf32>
    %73 = arith.mulf %68, %70 : vector<8x32xf32>
    %74 = arith.addf %72, %73 : vector<8x32xf32>
    %75 = math.tanh %74 : vector<8x32xf32>
    %76 = arith.mulf %71, %75 : vector<8x32xf32>
    %c0_29 = arith.constant 0 : index
    %c0_30 = arith.constant 0 : index
    %77 = vector.load %arg4[%c0_29, %c0_30] : memref<32x128xf32, #tpu.memory_space<vmem>>, vector<32x128xf32>
    %cst_31 = arith.constant dense<0.000000e+00> : vector<8x128xf32>
    %78 = tpu.matmul %76, %77, %cst_31 {dimension_numbers = #tpu.dot_dimension_numbers<[1], [0], [0], [1], [0, 0, 1, 1], [], []>} : vector<8x32xf32>, vector<32x128xf32>, vector<8x128xf32> -> vector<8x128xf32>
    %c0_32 = arith.constant 0 : index
    %c0_33 = arith.constant 0 : index
    %79 = vector.load %arg5[%c0_32, %c0_33] : memref<32x128xf32, #tpu.memory_space<vmem>>, vector<32x128xf32>
    %cst_34 = arith.constant dense<0.000000e+00> : vector<8x128xf32>
    %80 = tpu.matmul %52, %79, %cst_34 {dimension_numbers = #tpu.dot_dimension_numbers<[1], [0], [0], [1], [0, 0, 1, 1], [], []>} : vector<8x32xf32>, vector<32x128xf32>, vector<8x128xf32> -> vector<8x128xf32>
    %81 = arith.addf %78, %80 : vector<8x128xf32>
    %82 = vector.broadcast %7 : vector<1x128xf32> to vector<8x128xf32>
    %83 = arith.addf %81, %82 : vector<8x128xf32>
    %84 = arith.negf %83 : vector<8x128xf32>
    %85 = math.exp %84 : vector<8x128xf32>
    %cst_35 = arith.constant 1.000000e+00 : f32
    %86 = vector.broadcast %cst_35 : f32 to vector<8x128xf32>
    %87 = arith.addf %86, %85 : vector<8x128xf32>
    %88 = arith.divf %86, %87 : vector<8x128xf32>
    %89 = math.tanh %83 : vector<8x128xf32>
    %90 = vector.extract_strided_slice %88 {offsets = [0, 0], sizes = [8, 32], strides = [1, 1]} : vector<8x128xf32> to vector<8x32xf32>
    %91 = vector.extract_strided_slice %88 {offsets = [0, 32], sizes = [8, 32], strides = [1, 1]} : vector<8x128xf32> to vector<8x32xf32>
    %92 = vector.extract_strided_slice %89 {offsets = [0, 64], sizes = [8, 32], strides = [1, 1]} : vector<8x128xf32> to vector<8x32xf32>
    %93 = vector.extract_strided_slice %88 {offsets = [0, 96], sizes = [8, 32], strides = [1, 1]} : vector<8x128xf32> to vector<8x32xf32>
    %94 = arith.mulf %91, %50 : vector<8x32xf32>
    %95 = arith.mulf %90, %92 : vector<8x32xf32>
    %96 = arith.addf %94, %95 : vector<8x32xf32>
    %97 = math.tanh %96 : vector<8x32xf32>
    %98 = arith.mulf %93, %97 : vector<8x32xf32>
    %99 = arith.index_cast %56 : i32 to index
    %c0_36 = arith.constant 0 : index
    %100 = vector.load %arg7[%99, %c0_36] : memref<72x32xf32, #tpu.memory_space<vmem>>, vector<8x32xf32>
    tpu.vector_store %arg7[%99, %c0_36], %98 {strides = array<i32>} : memref<72x32xf32, #tpu.memory_space<vmem>>, vector<8x32xf32>,
    %c2_i32 = arith.constant 2 : i32
    %c8_i32_37 = arith.constant 8 : i32
    %101 = arith.muli %c2_i32, %c8_i32_37 : i32
    %102 = tpu.assume_multiple %101, 8 : i32
    %103 = arith.index_cast %102 : i32 to index
    %c0_38 = arith.constant 0 : index
    %104 = vector.load %arg8[%103, %c0_38] : memref<72x128xf32, #tpu.memory_space<vmem>>, vector<8x128xf32>
    %c0_39 = arith.constant 0 : index
    %c0_40 = arith.constant 0 : index
    %105 = vector.load %arg2[%c0_39, %c0_40] : memref<32x128xf32, #tpu.memory_space<vmem>>, vector<32x128xf32>
    %cst_41 = arith.constant dense<0.000000e+00> : vector<8x128xf32>
    %106 = tpu.matmul %76, %105, %cst_41 {dimension_numbers = #tpu.dot_dimension_numbers<[1], [0], [0], [1], [0, 0, 1, 1], [], []>} : vector<8x32xf32>, vector<32x128xf32>, vector<8x128xf32> -> vector<8x128xf32>
    %107 = arith.addf %104, %106 : vector<8x128xf32>
    %108 = arith.negf %107 : vector<8x128xf32>
    %109 = math.exp %108 : vector<8x128xf32>
    %cst_42 = arith.constant 1.000000e+00 : f32
    %110 = vector.broadcast %cst_42 : f32 to vector<8x128xf32>
    %111 = arith.addf %110, %109 : vector<8x128xf32>
    %112 = arith.divf %110, %111 : vector<8x128xf32>
    %113 = math.tanh %107 : vector<8x128xf32>
    %114 = vector.extract_strided_slice %112 {offsets = [0, 0], sizes = [8, 32], strides = [1, 1]} : vector<8x128xf32> to vector<8x32xf32>
    %115 = vector.extract_strided_slice %112 {offsets = [0, 32], sizes = [8, 32], strides = [1, 1]} : vector<8x128xf32> to vector<8x32xf32>
    %116 = vector.extract_strided_slice %113 {offsets = [0, 64], sizes = [8, 32], strides = [1, 1]} : vector<8x128xf32> to vector<8x32xf32>
    %117 = vector.extract_strided_slice %112 {offsets = [0, 96], sizes = [8, 32], strides = [1, 1]} : vector<8x128xf32> to vector<8x32xf32>
    %118 = arith.mulf %115, %74 : vector<8x32xf32>
    %119 = arith.mulf %114, %116 : vector<8x32xf32>
    %120 = arith.addf %118, %119 : vector<8x32xf32>
    %121 = math.tanh %120 : vector<8x32xf32>
    %122 = arith.mulf %117, %121 : vector<8x32xf32>
    %c0_43 = arith.constant 0 : index
    %c0_44 = arith.constant 0 : index
    %123 = vector.load %arg4[%c0_43, %c0_44] : memref<32x128xf32, #tpu.memory_space<vmem>>, vector<32x128xf32>
    %cst_45 = arith.constant dense<0.000000e+00> : vector<8x128xf32>
    %124 = tpu.matmul %122, %123, %cst_45 {dimension_numbers = #tpu.dot_dimension_numbers<[1], [0], [0], [1], [0, 0, 1, 1], [], []>} : vector<8x32xf32>, vector<32x128xf32>, vector<8x128xf32> -> vector<8x128xf32>
    %c0_46 = arith.constant 0 : index
    %c0_47 = arith.constant 0 : index
    %125 = vector.load %arg5[%c0_46, %c0_47] : memref<32x128xf32, #tpu.memory_space<vmem>>, vector<32x128xf32>
    %cst_48 = arith.constant dense<0.000000e+00> : vector<8x128xf32>
    %126 = tpu.matmul %98, %125, %cst_48 {dimension_numbers = #tpu.dot_dimension_numbers<[1], [0], [0], [1], [0, 0, 1, 1], [], []>} : vector<8x32xf32>, vector<32x128xf32>, vector<8x128xf32> -> vector<8x128xf32>
    %127 = arith.addf %124, %126 : vector<8x128xf32>
    %128 = vector.broadcast %7 : vector<1x128xf32> to vector<8x128xf32>
    %129 = arith.addf %127, %128 : vector<8x128xf32>
    %130 = arith.negf %129 : vector<8x128xf32>
    %131 = math.exp %130 : vector<8x128xf32>
    %cst_49 = arith.constant 1.000000e+00 : f32
    %132 = vector.broadcast %cst_49 : f32 to vector<8x128xf32>
    %133 = arith.addf %132, %131 : vector<8x128xf32>
    %134 = arith.divf %132, %133 : vector<8x128xf32>
    %135 = math.tanh %129 : vector<8x128xf32>
    %136 = vector.extract_strided_slice %134 {offsets = [0, 0], sizes = [8, 32], strides = [1, 1]} : vector<8x128xf32> to vector<8x32xf32>
    %137 = vector.extract_strided_slice %134 {offsets = [0, 32], sizes = [8, 32], strides = [1, 1]} : vector<8x128xf32> to vector<8x32xf32>
    %138 = vector.extract_strided_slice %135 {offsets = [0, 64], sizes = [8, 32], strides = [1, 1]} : vector<8x128xf32> to vector<8x32xf32>
    %139 = vector.extract_strided_slice %134 {offsets = [0, 96], sizes = [8, 32], strides = [1, 1]} : vector<8x128xf32> to vector<8x32xf32>
    %140 = arith.mulf %137, %96 : vector<8x32xf32>
    %141 = arith.mulf %136, %138 : vector<8x32xf32>
    %142 = arith.addf %140, %141 : vector<8x32xf32>
    %143 = math.tanh %142 : vector<8x32xf32>
    %144 = arith.mulf %139, %143 : vector<8x32xf32>
    %145 = arith.index_cast %102 : i32 to index
    %c0_50 = arith.constant 0 : index
    %146 = vector.load %arg7[%145, %c0_50] : memref<72x32xf32, #tpu.memory_space<vmem>>, vector<8x32xf32>
    tpu.vector_store %arg7[%145, %c0_50], %144 {strides = array<i32>} : memref<72x32xf32, #tpu.memory_space<vmem>>, vector<8x32xf32>,
    %c3_i32 = arith.constant 3 : i32
    %c8_i32_51 = arith.constant 8 : i32
    %147 = arith.muli %c3_i32, %c8_i32_51 : i32
    %148 = tpu.assume_multiple %147, 8 : i32
    %149 = arith.index_cast %148 : i32 to index
    %c0_52 = arith.constant 0 : index
    %150 = vector.load %arg8[%149, %c0_52] : memref<72x128xf32, #tpu.memory_space<vmem>>, vector<8x128xf32>
    %c0_53 = arith.constant 0 : index
    %c0_54 = arith.constant 0 : index
    %151 = vector.load %arg2[%c0_53, %c0_54] : memref<32x128xf32, #tpu.memory_space<vmem>>, vector<32x128xf32>
    %cst_55 = arith.constant dense<0.000000e+00> : vector<8x128xf32>
    %152 = tpu.matmul %122, %151, %cst_55 {dimension_numbers = #tpu.dot_dimension_numbers<[1], [0], [0], [1], [0, 0, 1, 1], [], []>} : vector<8x32xf32>, vector<32x128xf32>, vector<8x128xf32> -> vector<8x128xf32>
    %153 = arith.addf %150, %152 : vector<8x128xf32>
    %154 = arith.negf %153 : vector<8x128xf32>
    %155 = math.exp %154 : vector<8x128xf32>
    %cst_56 = arith.constant 1.000000e+00 : f32
    %156 = vector.broadcast %cst_56 : f32 to vector<8x128xf32>
    %157 = arith.addf %156, %155 : vector<8x128xf32>
    %158 = arith.divf %156, %157 : vector<8x128xf32>
    %159 = math.tanh %153 : vector<8x128xf32>
    %160 = vector.extract_strided_slice %158 {offsets = [0, 0], sizes = [8, 32], strides = [1, 1]} : vector<8x128xf32> to vector<8x32xf32>
    %161 = vector.extract_strided_slice %158 {offsets = [0, 32], sizes = [8, 32], strides = [1, 1]} : vector<8x128xf32> to vector<8x32xf32>
    %162 = vector.extract_strided_slice %159 {offsets = [0, 64], sizes = [8, 32], strides = [1, 1]} : vector<8x128xf32> to vector<8x32xf32>
    %163 = vector.extract_strided_slice %158 {offsets = [0, 96], sizes = [8, 32], strides = [1, 1]} : vector<8x128xf32> to vector<8x32xf32>
    %164 = arith.mulf %161, %120 : vector<8x32xf32>
    %165 = arith.mulf %160, %162 : vector<8x32xf32>
    %166 = arith.addf %164, %165 : vector<8x32xf32>
    %167 = math.tanh %166 : vector<8x32xf32>
    %168 = arith.mulf %163, %167 : vector<8x32xf32>
    %c0_57 = arith.constant 0 : index
    %c0_58 = arith.constant 0 : index
    %169 = vector.load %arg4[%c0_57, %c0_58] : memref<32x128xf32, #tpu.memory_space<vmem>>, vector<32x128xf32>
    %cst_59 = arith.constant dense<0.000000e+00> : vector<8x128xf32>
    %170 = tpu.matmul %168, %169, %cst_59 {dimension_numbers = #tpu.dot_dimension_numbers<[1], [0], [0], [1], [0, 0, 1, 1], [], []>} : vector<8x32xf32>, vector<32x128xf32>, vector<8x128xf32> -> vector<8x128xf32>
    %c0_60 = arith.constant 0 : index
    %c0_61 = arith.constant 0 : index
    %171 = vector.load %arg5[%c0_60, %c0_61] : memref<32x128xf32, #tpu.memory_space<vmem>>, vector<32x128xf32>
    %cst_62 = arith.constant dense<0.000000e+00> : vector<8x128xf32>
    %172 = tpu.matmul %144, %171, %cst_62 {dimension_numbers = #tpu.dot_dimension_numbers<[1], [0], [0], [1], [0, 0, 1, 1], [], []>} : vector<8x32xf32>, vector<32x128xf32>, vector<8x128xf32> -> vector<8x128xf32>
    %173 = arith.addf %170, %172 : vector<8x128xf32>
    %174 = vector.broadcast %7 : vector<1x128xf32> to vector<8x128xf32>
    %175 = arith.addf %173, %174 : vector<8x128xf32>
    %176 = arith.negf %175 : vector<8x128xf32>
    %177 = math.exp %176 : vector<8x128xf32>
    %cst_63 = arith.constant 1.000000e+00 : f32
    %178 = vector.broadcast %cst_63 : f32 to vector<8x128xf32>
    %179 = arith.addf %178, %177 : vector<8x128xf32>
    %180 = arith.divf %178, %179 : vector<8x128xf32>
    %181 = math.tanh %175 : vector<8x128xf32>
    %182 = vector.extract_strided_slice %180 {offsets = [0, 0], sizes = [8, 32], strides = [1, 1]} : vector<8x128xf32> to vector<8x32xf32>
    %183 = vector.extract_strided_slice %180 {offsets = [0, 32], sizes = [8, 32], strides = [1, 1]} : vector<8x128xf32> to vector<8x32xf32>
    %184 = vector.extract_strided_slice %181 {offsets = [0, 64], sizes = [8, 32], strides = [1, 1]} : vector<8x128xf32> to vector<8x32xf32>
    %185 = vector.extract_strided_slice %180 {offsets = [0, 96], sizes = [8, 32], strides = [1, 1]} : vector<8x128xf32> to vector<8x32xf32>
    %186 = arith.mulf %183, %142 : vector<8x32xf32>
    %187 = arith.mulf %182, %184 : vector<8x32xf32>
    %188 = arith.addf %186, %187 : vector<8x32xf32>
    %189 = math.tanh %188 : vector<8x32xf32>
    %190 = arith.mulf %185, %189 : vector<8x32xf32>
    %191 = arith.index_cast %148 : i32 to index
    %c0_64 = arith.constant 0 : index
    %192 = vector.load %arg7[%191, %c0_64] : memref<72x32xf32, #tpu.memory_space<vmem>>, vector<8x32xf32>
    tpu.vector_store %arg7[%191, %c0_64], %190 {strides = array<i32>} : memref<72x32xf32, #tpu.memory_space<vmem>>, vector<8x32xf32>,
    %c4_i32 = arith.constant 4 : i32
    %c8_i32_65 = arith.constant 8 : i32
    %193 = arith.muli %c4_i32, %c8_i32_65 : i32
    %194 = tpu.assume_multiple %193, 8 : i32
    %195 = arith.index_cast %194 : i32 to index
    %c0_66 = arith.constant 0 : index
    %196 = vector.load %arg8[%195, %c0_66] : memref<72x128xf32, #tpu.memory_space<vmem>>, vector<8x128xf32>
    %c0_67 = arith.constant 0 : index
    %c0_68 = arith.constant 0 : index
    %197 = vector.load %arg2[%c0_67, %c0_68] : memref<32x128xf32, #tpu.memory_space<vmem>>, vector<32x128xf32>
    %cst_69 = arith.constant dense<0.000000e+00> : vector<8x128xf32>
    %198 = tpu.matmul %168, %197, %cst_69 {dimension_numbers = #tpu.dot_dimension_numbers<[1], [0], [0], [1], [0, 0, 1, 1], [], []>} : vector<8x32xf32>, vector<32x128xf32>, vector<8x128xf32> -> vector<8x128xf32>
    %199 = arith.addf %196, %198 : vector<8x128xf32>
    %200 = arith.negf %199 : vector<8x128xf32>
    %201 = math.exp %200 : vector<8x128xf32>
    %cst_70 = arith.constant 1.000000e+00 : f32
    %202 = vector.broadcast %cst_70 : f32 to vector<8x128xf32>
    %203 = arith.addf %202, %201 : vector<8x128xf32>
    %204 = arith.divf %202, %203 : vector<8x128xf32>
    %205 = math.tanh %199 : vector<8x128xf32>
    %206 = vector.extract_strided_slice %204 {offsets = [0, 0], sizes = [8, 32], strides = [1, 1]} : vector<8x128xf32> to vector<8x32xf32>
    %207 = vector.extract_strided_slice %204 {offsets = [0, 32], sizes = [8, 32], strides = [1, 1]} : vector<8x128xf32> to vector<8x32xf32>
    %208 = vector.extract_strided_slice %205 {offsets = [0, 64], sizes = [8, 32], strides = [1, 1]} : vector<8x128xf32> to vector<8x32xf32>
    %209 = vector.extract_strided_slice %204 {offsets = [0, 96], sizes = [8, 32], strides = [1, 1]} : vector<8x128xf32> to vector<8x32xf32>
    %210 = arith.mulf %207, %166 : vector<8x32xf32>
    %211 = arith.mulf %206, %208 : vector<8x32xf32>
    %212 = arith.addf %210, %211 : vector<8x32xf32>
    %213 = math.tanh %212 : vector<8x32xf32>
    %214 = arith.mulf %209, %213 : vector<8x32xf32>
    %c0_71 = arith.constant 0 : index
    %c0_72 = arith.constant 0 : index
    %215 = vector.load %arg4[%c0_71, %c0_72] : memref<32x128xf32, #tpu.memory_space<vmem>>, vector<32x128xf32>
    %cst_73 = arith.constant dense<0.000000e+00> : vector<8x128xf32>
    %216 = tpu.matmul %214, %215, %cst_73 {dimension_numbers = #tpu.dot_dimension_numbers<[1], [0], [0], [1], [0, 0, 1, 1], [], []>} : vector<8x32xf32>, vector<32x128xf32>, vector<8x128xf32> -> vector<8x128xf32>
    %c0_74 = arith.constant 0 : index
    %c0_75 = arith.constant 0 : index
    %217 = vector.load %arg5[%c0_74, %c0_75] : memref<32x128xf32, #tpu.memory_space<vmem>>, vector<32x128xf32>
    %cst_76 = arith.constant dense<0.000000e+00> : vector<8x128xf32>
    %218 = tpu.matmul %190, %217, %cst_76 {dimension_numbers = #tpu.dot_dimension_numbers<[1], [0], [0], [1], [0, 0, 1, 1], [], []>} : vector<8x32xf32>, vector<32x128xf32>, vector<8x128xf32> -> vector<8x128xf32>
    %219 = arith.addf %216, %218 : vector<8x128xf32>
    %220 = vector.broadcast %7 : vector<1x128xf32> to vector<8x128xf32>
    %221 = arith.addf %219, %220 : vector<8x128xf32>
    %222 = arith.negf %221 : vector<8x128xf32>
    %223 = math.exp %222 : vector<8x128xf32>
    %cst_77 = arith.constant 1.000000e+00 : f32
    %224 = vector.broadcast %cst_77 : f32 to vector<8x128xf32>
    %225 = arith.addf %224, %223 : vector<8x128xf32>
    %226 = arith.divf %224, %225 : vector<8x128xf32>
    %227 = math.tanh %221 : vector<8x128xf32>
    %228 = vector.extract_strided_slice %226 {offsets = [0, 0], sizes = [8, 32], strides = [1, 1]} : vector<8x128xf32> to vector<8x32xf32>
    %229 = vector.extract_strided_slice %226 {offsets = [0, 32], sizes = [8, 32], strides = [1, 1]} : vector<8x128xf32> to vector<8x32xf32>
    %230 = vector.extract_strided_slice %227 {offsets = [0, 64], sizes = [8, 32], strides = [1, 1]} : vector<8x128xf32> to vector<8x32xf32>
    %231 = vector.extract_strided_slice %226 {offsets = [0, 96], sizes = [8, 32], strides = [1, 1]} : vector<8x128xf32> to vector<8x32xf32>
    %232 = arith.mulf %229, %188 : vector<8x32xf32>
    %233 = arith.mulf %228, %230 : vector<8x32xf32>
    %234 = arith.addf %232, %233 : vector<8x32xf32>
    %235 = math.tanh %234 : vector<8x32xf32>
    %236 = arith.mulf %231, %235 : vector<8x32xf32>
    %237 = arith.index_cast %194 : i32 to index
    %c0_78 = arith.constant 0 : index
    %238 = vector.load %arg7[%237, %c0_78] : memref<72x32xf32, #tpu.memory_space<vmem>>, vector<8x32xf32>
    tpu.vector_store %arg7[%237, %c0_78], %236 {strides = array<i32>} : memref<72x32xf32, #tpu.memory_space<vmem>>, vector<8x32xf32>,
    %c5_i32 = arith.constant 5 : i32
    %c8_i32_79 = arith.constant 8 : i32
    %239 = arith.muli %c5_i32, %c8_i32_79 : i32
    %240 = tpu.assume_multiple %239, 8 : i32
    %241 = arith.index_cast %240 : i32 to index
    %c0_80 = arith.constant 0 : index
    %242 = vector.load %arg8[%241, %c0_80] : memref<72x128xf32, #tpu.memory_space<vmem>>, vector<8x128xf32>
    %c0_81 = arith.constant 0 : index
    %c0_82 = arith.constant 0 : index
    %243 = vector.load %arg2[%c0_81, %c0_82] : memref<32x128xf32, #tpu.memory_space<vmem>>, vector<32x128xf32>
    %cst_83 = arith.constant dense<0.000000e+00> : vector<8x128xf32>
    %244 = tpu.matmul %214, %243, %cst_83 {dimension_numbers = #tpu.dot_dimension_numbers<[1], [0], [0], [1], [0, 0, 1, 1], [], []>} : vector<8x32xf32>, vector<32x128xf32>, vector<8x128xf32> -> vector<8x128xf32>
    %245 = arith.addf %242, %244 : vector<8x128xf32>
    %246 = arith.negf %245 : vector<8x128xf32>
    %247 = math.exp %246 : vector<8x128xf32>
    %cst_84 = arith.constant 1.000000e+00 : f32
    %248 = vector.broadcast %cst_84 : f32 to vector<8x128xf32>
    %249 = arith.addf %248, %247 : vector<8x128xf32>
    %250 = arith.divf %248, %249 : vector<8x128xf32>
    %251 = math.tanh %245 : vector<8x128xf32>
    %252 = vector.extract_strided_slice %250 {offsets = [0, 0], sizes = [8, 32], strides = [1, 1]} : vector<8x128xf32> to vector<8x32xf32>
    %253 = vector.extract_strided_slice %250 {offsets = [0, 32], sizes = [8, 32], strides = [1, 1]} : vector<8x128xf32> to vector<8x32xf32>
    %254 = vector.extract_strided_slice %251 {offsets = [0, 64], sizes = [8, 32], strides = [1, 1]} : vector<8x128xf32> to vector<8x32xf32>
    %255 = vector.extract_strided_slice %250 {offsets = [0, 96], sizes = [8, 32], strides = [1, 1]} : vector<8x128xf32> to vector<8x32xf32>
    %256 = arith.mulf %253, %212 : vector<8x32xf32>
    %257 = arith.mulf %252, %254 : vector<8x32xf32>
    %258 = arith.addf %256, %257 : vector<8x32xf32>
    %259 = math.tanh %258 : vector<8x32xf32>
    %260 = arith.mulf %255, %259 : vector<8x32xf32>
    %c0_85 = arith.constant 0 : index
    %c0_86 = arith.constant 0 : index
    %261 = vector.load %arg4[%c0_85, %c0_86] : memref<32x128xf32, #tpu.memory_space<vmem>>, vector<32x128xf32>
    %cst_87 = arith.constant dense<0.000000e+00> : vector<8x128xf32>
    %262 = tpu.matmul %260, %261, %cst_87 {dimension_numbers = #tpu.dot_dimension_numbers<[1], [0], [0], [1], [0, 0, 1, 1], [], []>} : vector<8x32xf32>, vector<32x128xf32>, vector<8x128xf32> -> vector<8x128xf32>
    %c0_88 = arith.constant 0 : index
    %c0_89 = arith.constant 0 : index
    %263 = vector.load %arg5[%c0_88, %c0_89] : memref<32x128xf32, #tpu.memory_space<vmem>>, vector<32x128xf32>
    %cst_90 = arith.constant dense<0.000000e+00> : vector<8x128xf32>
    %264 = tpu.matmul %236, %263, %cst_90 {dimension_numbers = #tpu.dot_dimension_numbers<[1], [0], [0], [1], [0, 0, 1, 1], [], []>} : vector<8x32xf32>, vector<32x128xf32>, vector<8x128xf32> -> vector<8x128xf32>
    %265 = arith.addf %262, %264 : vector<8x128xf32>
    %266 = vector.broadcast %7 : vector<1x128xf32> to vector<8x128xf32>
    %267 = arith.addf %265, %266 : vector<8x128xf32>
    %268 = arith.negf %267 : vector<8x128xf32>
    %269 = math.exp %268 : vector<8x128xf32>
    %cst_91 = arith.constant 1.000000e+00 : f32
    %270 = vector.broadcast %cst_91 : f32 to vector<8x128xf32>
    %271 = arith.addf %270, %269 : vector<8x128xf32>
    %272 = arith.divf %270, %271 : vector<8x128xf32>
    %273 = math.tanh %267 : vector<8x128xf32>
    %274 = vector.extract_strided_slice %272 {offsets = [0, 0], sizes = [8, 32], strides = [1, 1]} : vector<8x128xf32> to vector<8x32xf32>
    %275 = vector.extract_strided_slice %272 {offsets = [0, 32], sizes = [8, 32], strides = [1, 1]} : vector<8x128xf32> to vector<8x32xf32>
    %276 = vector.extract_strided_slice %273 {offsets = [0, 64], sizes = [8, 32], strides = [1, 1]} : vector<8x128xf32> to vector<8x32xf32>
    %277 = vector.extract_strided_slice %272 {offsets = [0, 96], sizes = [8, 32], strides = [1, 1]} : vector<8x128xf32> to vector<8x32xf32>
    %278 = arith.mulf %275, %234 : vector<8x32xf32>
    %279 = arith.mulf %274, %276 : vector<8x32xf32>
    %280 = arith.addf %278, %279 : vector<8x32xf32>
    %281 = math.tanh %280 : vector<8x32xf32>
    %282 = arith.mulf %277, %281 : vector<8x32xf32>
    %283 = arith.index_cast %240 : i32 to index
    %c0_92 = arith.constant 0 : index
    %284 = vector.load %arg7[%283, %c0_92] : memref<72x32xf32, #tpu.memory_space<vmem>>, vector<8x32xf32>
    tpu.vector_store %arg7[%283, %c0_92], %282 {strides = array<i32>} : memref<72x32xf32, #tpu.memory_space<vmem>>, vector<8x32xf32>,
    %c6_i32 = arith.constant 6 : i32
    %c8_i32_93 = arith.constant 8 : i32
    %285 = arith.muli %c6_i32, %c8_i32_93 : i32
    %286 = tpu.assume_multiple %285, 8 : i32
    %287 = arith.index_cast %286 : i32 to index
    %c0_94 = arith.constant 0 : index
    %288 = vector.load %arg8[%287, %c0_94] : memref<72x128xf32, #tpu.memory_space<vmem>>, vector<8x128xf32>
    %c0_95 = arith.constant 0 : index
    %c0_96 = arith.constant 0 : index
    %289 = vector.load %arg2[%c0_95, %c0_96] : memref<32x128xf32, #tpu.memory_space<vmem>>, vector<32x128xf32>
    %cst_97 = arith.constant dense<0.000000e+00> : vector<8x128xf32>
    %290 = tpu.matmul %260, %289, %cst_97 {dimension_numbers = #tpu.dot_dimension_numbers<[1], [0], [0], [1], [0, 0, 1, 1], [], []>} : vector<8x32xf32>, vector<32x128xf32>, vector<8x128xf32> -> vector<8x128xf32>
    %291 = arith.addf %288, %290 : vector<8x128xf32>
    %292 = arith.negf %291 : vector<8x128xf32>
    %293 = math.exp %292 : vector<8x128xf32>
    %cst_98 = arith.constant 1.000000e+00 : f32
    %294 = vector.broadcast %cst_98 : f32 to vector<8x128xf32>
    %295 = arith.addf %294, %293 : vector<8x128xf32>
    %296 = arith.divf %294, %295 : vector<8x128xf32>
    %297 = math.tanh %291 : vector<8x128xf32>
    %298 = vector.extract_strided_slice %296 {offsets = [0, 0], sizes = [8, 32], strides = [1, 1]} : vector<8x128xf32> to vector<8x32xf32>
    %299 = vector.extract_strided_slice %296 {offsets = [0, 32], sizes = [8, 32], strides = [1, 1]} : vector<8x128xf32> to vector<8x32xf32>
    %300 = vector.extract_strided_slice %297 {offsets = [0, 64], sizes = [8, 32], strides = [1, 1]} : vector<8x128xf32> to vector<8x32xf32>
    %301 = vector.extract_strided_slice %296 {offsets = [0, 96], sizes = [8, 32], strides = [1, 1]} : vector<8x128xf32> to vector<8x32xf32>
    %302 = arith.mulf %299, %258 : vector<8x32xf32>
    %303 = arith.mulf %298, %300 : vector<8x32xf32>
    %304 = arith.addf %302, %303 : vector<8x32xf32>
    %305 = math.tanh %304 : vector<8x32xf32>
    %306 = arith.mulf %301, %305 : vector<8x32xf32>
    %c0_99 = arith.constant 0 : index
    %c0_100 = arith.constant 0 : index
    %307 = vector.load %arg4[%c0_99, %c0_100] : memref<32x128xf32, #tpu.memory_space<vmem>>, vector<32x128xf32>
    %cst_101 = arith.constant dense<0.000000e+00> : vector<8x128xf32>
    %308 = tpu.matmul %306, %307, %cst_101 {dimension_numbers = #tpu.dot_dimension_numbers<[1], [0], [0], [1], [0, 0, 1, 1], [], []>} : vector<8x32xf32>, vector<32x128xf32>, vector<8x128xf32> -> vector<8x128xf32>
    %c0_102 = arith.constant 0 : index
    %c0_103 = arith.constant 0 : index
    %309 = vector.load %arg5[%c0_102, %c0_103] : memref<32x128xf32, #tpu.memory_space<vmem>>, vector<32x128xf32>
    %cst_104 = arith.constant dense<0.000000e+00> : vector<8x128xf32>
    %310 = tpu.matmul %282, %309, %cst_104 {dimension_numbers = #tpu.dot_dimension_numbers<[1], [0], [0], [1], [0, 0, 1, 1], [], []>} : vector<8x32xf32>, vector<32x128xf32>, vector<8x128xf32> -> vector<8x128xf32>
    %311 = arith.addf %308, %310 : vector<8x128xf32>
    %312 = vector.broadcast %7 : vector<1x128xf32> to vector<8x128xf32>
    %313 = arith.addf %311, %312 : vector<8x128xf32>
    %314 = arith.negf %313 : vector<8x128xf32>
    %315 = math.exp %314 : vector<8x128xf32>
    %cst_105 = arith.constant 1.000000e+00 : f32
    %316 = vector.broadcast %cst_105 : f32 to vector<8x128xf32>
    %317 = arith.addf %316, %315 : vector<8x128xf32>
    %318 = arith.divf %316, %317 : vector<8x128xf32>
    %319 = math.tanh %313 : vector<8x128xf32>
    %320 = vector.extract_strided_slice %318 {offsets = [0, 0], sizes = [8, 32], strides = [1, 1]} : vector<8x128xf32> to vector<8x32xf32>
    %321 = vector.extract_strided_slice %318 {offsets = [0, 32], sizes = [8, 32], strides = [1, 1]} : vector<8x128xf32> to vector<8x32xf32>
    %322 = vector.extract_strided_slice %319 {offsets = [0, 64], sizes = [8, 32], strides = [1, 1]} : vector<8x128xf32> to vector<8x32xf32>
    %323 = vector.extract_strided_slice %318 {offsets = [0, 96], sizes = [8, 32], strides = [1, 1]} : vector<8x128xf32> to vector<8x32xf32>
    %324 = arith.mulf %321, %280 : vector<8x32xf32>
    %325 = arith.mulf %320, %322 : vector<8x32xf32>
    %326 = arith.addf %324, %325 : vector<8x32xf32>
    %327 = math.tanh %326 : vector<8x32xf32>
    %328 = arith.mulf %323, %327 : vector<8x32xf32>
    %329 = arith.index_cast %286 : i32 to index
    %c0_106 = arith.constant 0 : index
    %330 = vector.load %arg7[%329, %c0_106] : memref<72x32xf32, #tpu.memory_space<vmem>>, vector<8x32xf32>
    tpu.vector_store %arg7[%329, %c0_106], %328 {strides = array<i32>} : memref<72x32xf32, #tpu.memory_space<vmem>>, vector<8x32xf32>,
    %c7_i32 = arith.constant 7 : i32
    %c8_i32_107 = arith.constant 8 : i32
    %331 = arith.muli %c7_i32, %c8_i32_107 : i32
    %332 = tpu.assume_multiple %331, 8 : i32
    %333 = arith.index_cast %332 : i32 to index
    %c0_108 = arith.constant 0 : index
    %334 = vector.load %arg8[%333, %c0_108] : memref<72x128xf32, #tpu.memory_space<vmem>>, vector<8x128xf32>
    %c0_109 = arith.constant 0 : index
    %c0_110 = arith.constant 0 : index
    %335 = vector.load %arg2[%c0_109, %c0_110] : memref<32x128xf32, #tpu.memory_space<vmem>>, vector<32x128xf32>
    %cst_111 = arith.constant dense<0.000000e+00> : vector<8x128xf32>
    %336 = tpu.matmul %306, %335, %cst_111 {dimension_numbers = #tpu.dot_dimension_numbers<[1], [0], [0], [1], [0, 0, 1, 1], [], []>} : vector<8x32xf32>, vector<32x128xf32>, vector<8x128xf32> -> vector<8x128xf32>
    %337 = arith.addf %334, %336 : vector<8x128xf32>
    %338 = arith.negf %337 : vector<8x128xf32>
    %339 = math.exp %338 : vector<8x128xf32>
    %cst_112 = arith.constant 1.000000e+00 : f32
    %340 = vector.broadcast %cst_112 : f32 to vector<8x128xf32>
    %341 = arith.addf %340, %339 : vector<8x128xf32>
    %342 = arith.divf %340, %341 : vector<8x128xf32>
    %343 = math.tanh %337 : vector<8x128xf32>
    %344 = vector.extract_strided_slice %342 {offsets = [0, 0], sizes = [8, 32], strides = [1, 1]} : vector<8x128xf32> to vector<8x32xf32>
    %345 = vector.extract_strided_slice %342 {offsets = [0, 32], sizes = [8, 32], strides = [1, 1]} : vector<8x128xf32> to vector<8x32xf32>
    %346 = vector.extract_strided_slice %343 {offsets = [0, 64], sizes = [8, 32], strides = [1, 1]} : vector<8x128xf32> to vector<8x32xf32>
    %347 = vector.extract_strided_slice %342 {offsets = [0, 96], sizes = [8, 32], strides = [1, 1]} : vector<8x128xf32> to vector<8x32xf32>
    %348 = arith.mulf %345, %304 : vector<8x32xf32>
    %349 = arith.mulf %344, %346 : vector<8x32xf32>
    %350 = arith.addf %348, %349 : vector<8x32xf32>
    %351 = math.tanh %350 : vector<8x32xf32>
    %352 = arith.mulf %347, %351 : vector<8x32xf32>
    %c0_113 = arith.constant 0 : index
    %c0_114 = arith.constant 0 : index
    %353 = vector.load %arg4[%c0_113, %c0_114] : memref<32x128xf32, #tpu.memory_space<vmem>>, vector<32x128xf32>
    %cst_115 = arith.constant dense<0.000000e+00> : vector<8x128xf32>
    %354 = tpu.matmul %352, %353, %cst_115 {dimension_numbers = #tpu.dot_dimension_numbers<[1], [0], [0], [1], [0, 0, 1, 1], [], []>} : vector<8x32xf32>, vector<32x128xf32>, vector<8x128xf32> -> vector<8x128xf32>
    %c0_116 = arith.constant 0 : index
    %c0_117 = arith.constant 0 : index
    %355 = vector.load %arg5[%c0_116, %c0_117] : memref<32x128xf32, #tpu.memory_space<vmem>>, vector<32x128xf32>
    %cst_118 = arith.constant dense<0.000000e+00> : vector<8x128xf32>
    %356 = tpu.matmul %328, %355, %cst_118 {dimension_numbers = #tpu.dot_dimension_numbers<[1], [0], [0], [1], [0, 0, 1, 1], [], []>} : vector<8x32xf32>, vector<32x128xf32>, vector<8x128xf32> -> vector<8x128xf32>
    %357 = arith.addf %354, %356 : vector<8x128xf32>
    %358 = vector.broadcast %7 : vector<1x128xf32> to vector<8x128xf32>
    %359 = arith.addf %357, %358 : vector<8x128xf32>
    %360 = arith.negf %359 : vector<8x128xf32>
    %361 = math.exp %360 : vector<8x128xf32>
    %cst_119 = arith.constant 1.000000e+00 : f32
    %362 = vector.broadcast %cst_119 : f32 to vector<8x128xf32>
    %363 = arith.addf %362, %361 : vector<8x128xf32>
    %364 = arith.divf %362, %363 : vector<8x128xf32>
    %365 = math.tanh %359 : vector<8x128xf32>
    %366 = vector.extract_strided_slice %364 {offsets = [0, 0], sizes = [8, 32], strides = [1, 1]} : vector<8x128xf32> to vector<8x32xf32>
    %367 = vector.extract_strided_slice %364 {offsets = [0, 32], sizes = [8, 32], strides = [1, 1]} : vector<8x128xf32> to vector<8x32xf32>
    %368 = vector.extract_strided_slice %365 {offsets = [0, 64], sizes = [8, 32], strides = [1, 1]} : vector<8x128xf32> to vector<8x32xf32>
    %369 = vector.extract_strided_slice %364 {offsets = [0, 96], sizes = [8, 32], strides = [1, 1]} : vector<8x128xf32> to vector<8x32xf32>
    %370 = arith.mulf %367, %326 : vector<8x32xf32>
    %371 = arith.mulf %366, %368 : vector<8x32xf32>
    %372 = arith.addf %370, %371 : vector<8x32xf32>
    %373 = math.tanh %372 : vector<8x32xf32>
    %374 = arith.mulf %369, %373 : vector<8x32xf32>
    %375 = arith.index_cast %332 : i32 to index
    %c0_120 = arith.constant 0 : index
    %376 = vector.load %arg7[%375, %c0_120] : memref<72x32xf32, #tpu.memory_space<vmem>>, vector<8x32xf32>
    tpu.vector_store %arg7[%375, %c0_120], %374 {strides = array<i32>} : memref<72x32xf32, #tpu.memory_space<vmem>>, vector<8x32xf32>,
    %c8_i32_121 = arith.constant 8 : i32
    %c8_i32_122 = arith.constant 8 : i32
    %377 = arith.muli %c8_i32_121, %c8_i32_122 : i32
    %378 = tpu.assume_multiple %377, 8 : i32
    %379 = arith.index_cast %378 : i32 to index
    %c0_123 = arith.constant 0 : index
    %380 = vector.load %arg8[%379, %c0_123] : memref<72x128xf32, #tpu.memory_space<vmem>>, vector<8x128xf32>
    %c0_124 = arith.constant 0 : index
    %c0_125 = arith.constant 0 : index
    %381 = vector.load %arg2[%c0_124, %c0_125] : memref<32x128xf32, #tpu.memory_space<vmem>>, vector<32x128xf32>
    %cst_126 = arith.constant dense<0.000000e+00> : vector<8x128xf32>
    %382 = tpu.matmul %352, %381, %cst_126 {dimension_numbers = #tpu.dot_dimension_numbers<[1], [0], [0], [1], [0, 0, 1, 1], [], []>} : vector<8x32xf32>, vector<32x128xf32>, vector<8x128xf32> -> vector<8x128xf32>
    %383 = arith.addf %380, %382 : vector<8x128xf32>
    %384 = arith.negf %383 : vector<8x128xf32>
    %385 = math.exp %384 : vector<8x128xf32>
    %cst_127 = arith.constant 1.000000e+00 : f32
    %386 = vector.broadcast %cst_127 : f32 to vector<8x128xf32>
    %387 = arith.addf %386, %385 : vector<8x128xf32>
    %388 = arith.divf %386, %387 : vector<8x128xf32>
    %389 = math.tanh %383 : vector<8x128xf32>
    %390 = vector.extract_strided_slice %388 {offsets = [0, 0], sizes = [8, 32], strides = [1, 1]} : vector<8x128xf32> to vector<8x32xf32>
    %391 = vector.extract_strided_slice %388 {offsets = [0, 32], sizes = [8, 32], strides = [1, 1]} : vector<8x128xf32> to vector<8x32xf32>
    %392 = vector.extract_strided_slice %389 {offsets = [0, 64], sizes = [8, 32], strides = [1, 1]} : vector<8x128xf32> to vector<8x32xf32>
    %393 = vector.extract_strided_slice %388 {offsets = [0, 96], sizes = [8, 32], strides = [1, 1]} : vector<8x128xf32> to vector<8x32xf32>
    %394 = arith.mulf %391, %350 : vector<8x32xf32>
    %395 = arith.mulf %390, %392 : vector<8x32xf32>
    %396 = arith.addf %394, %395 : vector<8x32xf32>
    %397 = math.tanh %396 : vector<8x32xf32>
    %398 = arith.mulf %393, %397 : vector<8x32xf32>
    %c0_128 = arith.constant 0 : index
    %c0_129 = arith.constant 0 : index
    %399 = vector.load %arg4[%c0_128, %c0_129] : memref<32x128xf32, #tpu.memory_space<vmem>>, vector<32x128xf32>
    %cst_130 = arith.constant dense<0.000000e+00> : vector<8x128xf32>
    %400 = tpu.matmul %398, %399, %cst_130 {dimension_numbers = #tpu.dot_dimension_numbers<[1], [0], [0], [1], [0, 0, 1, 1], [], []>} : vector<8x32xf32>, vector<32x128xf32>, vector<8x128xf32> -> vector<8x128xf32>
    %c0_131 = arith.constant 0 : index
    %c0_132 = arith.constant 0 : index
    %401 = vector.load %arg5[%c0_131, %c0_132] : memref<32x128xf32, #tpu.memory_space<vmem>>, vector<32x128xf32>
    %cst_133 = arith.constant dense<0.000000e+00> : vector<8x128xf32>
    %402 = tpu.matmul %374, %401, %cst_133 {dimension_numbers = #tpu.dot_dimension_numbers<[1], [0], [0], [1], [0, 0, 1, 1], [], []>} : vector<8x32xf32>, vector<32x128xf32>, vector<8x128xf32> -> vector<8x128xf32>
    %403 = arith.addf %400, %402 : vector<8x128xf32>
    %404 = vector.broadcast %7 : vector<1x128xf32> to vector<8x128xf32>
    %405 = arith.addf %403, %404 : vector<8x128xf32>
    %406 = arith.negf %405 : vector<8x128xf32>
    %407 = math.exp %406 : vector<8x128xf32>
    %cst_134 = arith.constant 1.000000e+00 : f32
    %408 = vector.broadcast %cst_134 : f32 to vector<8x128xf32>
    %409 = arith.addf %408, %407 : vector<8x128xf32>
    %410 = arith.divf %408, %409 : vector<8x128xf32>
    %411 = math.tanh %405 : vector<8x128xf32>
    %412 = vector.extract_strided_slice %410 {offsets = [0, 0], sizes = [8, 32], strides = [1, 1]} : vector<8x128xf32> to vector<8x32xf32>
    %413 = vector.extract_strided_slice %410 {offsets = [0, 32], sizes = [8, 32], strides = [1, 1]} : vector<8x128xf32> to vector<8x32xf32>
    %414 = vector.extract_strided_slice %411 {offsets = [0, 64], sizes = [8, 32], strides = [1, 1]} : vector<8x128xf32> to vector<8x32xf32>
    %415 = vector.extract_strided_slice %410 {offsets = [0, 96], sizes = [8, 32], strides = [1, 1]} : vector<8x128xf32> to vector<8x32xf32>
    %416 = arith.mulf %413, %372 : vector<8x32xf32>
    %417 = arith.mulf %412, %414 : vector<8x32xf32>
    %418 = arith.addf %416, %417 : vector<8x32xf32>
    %419 = math.tanh %418 : vector<8x32xf32>
    %420 = arith.mulf %415, %419 : vector<8x32xf32>
    %421 = arith.index_cast %378 : i32 to index
    %c0_135 = arith.constant 0 : index
    %422 = vector.load %arg7[%421, %c0_135] : memref<72x32xf32, #tpu.memory_space<vmem>>, vector<8x32xf32>
    tpu.vector_store %arg7[%421, %c0_135], %420 {strides = array<i32>} : memref<72x32xf32, #tpu.memory_space<vmem>>, vector<8x32xf32>,
    %c9_i32 = arith.constant 9 : i32
    return
  }
}

</mosaic_0001>

<llo_original>
// kernel: cnn_lstm_forward.3
$region0: #{cnn_lstm_forward.3}
  #allocation0 [shape = 'u32[]', space=smem, size = 0x4, offset = 0x4, fixed_abs, tag = 'smem constant byte address 0x4 - core index']
  #allocation1 [shape = 'u32[144,128]{1,0:T(1,128)}', space=vmem, size = 0x12000, scoped, tag = 'internal scratch']
  %s0 = inlined_call_operand.vmem [shape: f32[72,32], index: 0, kind: input, shape index: {}]
  %s1 = inlined_call_operand.hbm [shape: bf16[32,14592], index: 1, kind: input, shape index: {}]
  %s2 = inlined_call_operand.hbm [shape: f32[1,14592], index: 2, kind: input, shape index: {}]
  %s3 = inlined_call_operand.vmem [shape: f32[72,14592], index: 3, kind: output, shape index: {}]
  %s4 = sld [smem:[#allocation0]]
  $region72: #{cnn_lstm_forward.3} parent=0
    _
  %s6 = ssub.s32 1, %s4
  %s7 = scalar_select 0, %s6, %s4
  $region1: #{cnn_lstm_forward.3} parent=0
    #allocation2 [shape = 'u8[311296]{0}', space=vmem, size = 0x4c000, scoped, tag = 'input window, operand 1']
    #allocation3 [shape = 's32[2]{0}', space=sflag, size = 0x8, scoped, tag = 'scoped memory for cnn_lstm_forward.3']
    #allocation4 [shape = 'u8[19456]{0}', space=vmem, size = 0x4c00, scoped, tag = 'input window, operand 2']
    #allocation5 [shape = 's32[2]{0}', space=sflag, size = 0x8, scoped, tag = 'scoped memory for cnn_lstm_forward.3']
    #allocation6 [shape = 'u8[1400832]{0}', space=vmem, size = 0x156000, scoped, tag = 'output window, operand 0']
    %8 = vsyncpa [#allocation3], 0
    %s9 = scalar_lea.sflag [#allocation3], 1
    %10 = vsyncpa %s9, 0
    %11 = vsyncpa [#allocation5], 0
    %s12 = scalar_lea.sflag [#allocation5], 1
    %13 = vsyncpa %s12, 0
    loop: start=0, step=1, limit=8
    $region2: #{cnn_lstm_forward.3} parent=1 // loop_pre_header
      _
    $region3: #{cnn_lstm_forward.3} parent=1 // loop_header
      %s15 = sphi 0, %s19
      %p16 = scmp.ge.s32.totalorder %s15, 8
      %s23 = sphi 0, %s23
      %s25 = sphi 0, %s23
      %s26 = sphi 0, %s25
      %s40 = sphi 0, %s26
      %s46 = sphi 0, %s48
      %s49 = sphi 0, %s46
      %s50 = sphi 0, %s49
      %s66 = sphi 0, %s50
      %s72 = sphi 0, %s74
      %s75 = sphi 0, %s72
      %s76 = sphi 0, %s75
      %s92 = sphi 0, %s76
      %s98 = sphi 0, %s100
      %s101 = sphi 0, %s98
      %s102 = sphi 0, %s101
      %s118 = sphi 0, %s102
    $region4: #{cnn_lstm_forward.3} parent=1 // loop_header_branch
      %18 = sbr.rel (%p16) target = $region8
    $region5: #{cnn_lstm_forward.3} parent=1 // loop_body
      %s20 = ssub.s32 %s15, 1
      %s21 = ssub.s32 %s15, 2
      %s22 = sadd.s32 %s15, 1
      %s24 = sadd.s32 %s23, 1
      %p27 = scmp.eq.s32.totalorder %s15, 5
      %p28 = scmp.ne.s32.totalorder %s23, %s25
      %p29 = scmp.eq.s32.totalorder %s15, 0
      %p30 = por %p28, %p29
      %p31 = scmp.ne.s32.totalorder %s23, %s25
      %p32 = scmp.eq.s32.totalorder %s20, 5
      %p33 = por %p31, %p32
      %p34 = scmp.ne.s32.totalorder %s25, %s26
      %p35 = scmp.eq.s32.totalorder %s20, 0
      %p36 = por %p34, %p35
      %p37 = scmp.ne.s32.totalorder %s25, %s26
      %p38 = scmp.eq.s32.totalorder %s21, 5
      %p39 = por %p37, %p38
      %p41 = scmp.ne.s32.totalorder %s26, %s40
      %p42 = scmp.eq.s32.totalorder %s21, 0
      %p43 = por %p41, %p42
      %s44 = ssub.s32 %s15, %s22
      %p45 = scmp.eq.s32.totalorder %s44, 0
      %s47 = sadd.s32 %s46, 1
      %s48 = scalar_select %p45, %s46, %s47
      %p51 = pneg %p45
      %p52 = scmp.eq.s32.totalorder %s15, 5
      %p53 = por %p51, %p52
      %p54 = scmp.ne.s32.totalorder %s46, %s49
      %p55 = scmp.eq.s32.totalorder %s15, 0
      %p56 = por %p54, %p55
      %p57 = scmp.ne.s32.totalorder %s46, %s49
      %p58 = scmp.eq.s32.totalorder %s20, 5
      %p59 = por %p57, %p58
      %p60 = scmp.ne.s32.totalorder %s49, %s50
      %p61 = scmp.eq.s32.totalorder %s20, 0
      %p62 = por %p60, %p61
      %p63 = scmp.ne.s32.totalorder %s49, %s50
      %p64 = scmp.eq.s32.totalorder %s21, 5
      %p65 = por %p63, %p64
      %p67 = scmp.ne.s32.totalorder %s50, %s66
      %p68 = scmp.eq.s32.totalorder %s21, 0
      %p69 = por %p67, %p68
      %s70 = ssub.s32 %s15, %s22
      %p71 = scmp.eq.s32.totalorder %s70, 0
      %s73 = sadd.s32 %s72, 1
      %s74 = scalar_select %p71, %s72, %s73
      %p77 = pneg %p71
      %p78 = scmp.eq.s32.totalorder %s15, 5
      %p79 = por %p77, %p78
      %p80 = scmp.ne.s32.totalorder %s72, %s75
      %p81 = scmp.eq.s32.totalorder %s15, 0
      %p82 = por %p80, %p81
      %p83 = scmp.ne.s32.totalorder %s72, %s75
      %p84 = scmp.eq.s32.totalorder %s20, 5
      %p85 = por %p83, %p84
      %p86 = scmp.ne.s32.totalorder %s75, %s76
      %p87 = scmp.eq.s32.totalorder %s20, 0
      %p88 = por %p86, %p87
      %p89 = scmp.ne.s32.totalorder %s75, %s76
      %p90 = scmp.eq.s32.totalorder %s21, 5
      %p91 = por %p89, %p90
      %p93 = scmp.ne.s32.totalorder %s76, %s92
      %p94 = scmp.eq.s32.totalorder %s21, 0
      %p95 = por %p93, %p94
      %s96 = ssub.s32 %s15, %s22
      %p97 = scmp.eq.s32.totalorder %s96, 0
      %s99 = sadd.s32 %s98, 1
      %s100 = scalar_select %p97, %s98, %s99
      %p103 = pneg %p97
      %p104 = scmp.eq.s32.totalorder %s15, 5
      %p105 = por %p103, %p104
      %p106 = scmp.ne.s32.totalorder %s98, %s101
      %p107 = scmp.eq.s32.totalorder %s15, 0
      %p108 = por %p106, %p107
      %p109 = scmp.ne.s32.totalorder %s98, %s101
      %p110 = scmp.eq.s32.totalorder %s20, 5
      %p111 = por %p109, %p110
      %p112 = scmp.ne.s32.totalorder %s101, %s102
      %p113 = scmp.eq.s32.totalorder %s20, 0
      %p114 = por %p112, %p113
      %p115 = scmp.ne.s32.totalorder %s101, %s102
      %p116 = scmp.eq.s32.totalorder %s21, 5
      %p117 = por %p115, %p116
      %p119 = scmp.ne.s32.totalorder %s102, %s118
      %p120 = scmp.eq.s32.totalorder %s21, 0
      %p121 = por %p119, %p120
      %p122 = scmp.le.s32.totalorder 1, %s15
      %p123 = scmp.lt.s32.totalorder %s15, 7
      %p124 = pnand %p122, %p123
      %p125 = pneg %p124
      // Predicated region
      $region9: #{cnn_lstm_forward.3} parent=5 // pred_check
        _
      $region10: #{cnn_lstm_forward.3} parent=5 // pred_check_branch
        %127 = sbr.rel (%p124) target = $region12
      $region11: #{cnn_lstm_forward.3} parent=5 // pred_region
        %s128 = ssub.s32 %s15, 1
        // Predicated region
        $region13: #{cnn_lstm_forward.3} parent=11 // pred_check
          %p129 = pneg %p36
        $region14: #{cnn_lstm_forward.3} parent=11 // pred_check_branch
          %131 = sbr.rel (%p129) target = $region16
        $region15: #{cnn_lstm_forward.3} parent=11 // pred_region
          _
        $region16: #{cnn_lstm_forward.3} parent=11 // pred_fallthru
          _
      $region12: #{cnn_lstm_forward.3} parent=5 // pred_fallthru
        _
      %p132 = scmp.lt.s32.totalorder %s15, 6
      // Predicated region
      $region17: #{cnn_lstm_forward.3} parent=5 // pred_check
        %p133 = pneg %p132
      $region18: #{cnn_lstm_forward.3} parent=5 // pred_check_branch
        %135 = sbr.rel (%p133) target = $region20
      $region19: #{cnn_lstm_forward.3} parent=5 // pred_region
        // Predicated region
        $region21: #{cnn_lstm_forward.3} parent=19 // pred_check
          %p136 = pneg %p56
        $region22: #{cnn_lstm_forward.3} parent=19 // pred_check_branch
          %138 = sbr.rel (%p136) target = $region24
        $region23: #{cnn_lstm_forward.3} parent=19 // pred_region
          %s139 = sand.u32 %s46, 1
          %s140 = scalar_lea.sflag [#allocation3], %s139
          %s141 = sand.u32 %s46, 1
          %s142 = smul.addr %s141, 304
          %s143 = scalar_lea.vmem [#allocation2], %s142
          %s144 = smul.u32 19, %s15
          %s146 = ssub.s32 4864, 4864
          %147 = vsyncadd %s140, %s146
          %s148 = smul.addr %s144, 64
          %s149 = scalar_lea.hbm %s1, %s148
          %s150 = sshll.u32 %s143, 4
          %s151 = int_to_ptr.vmem [resolvable:$true] %s150
          %156 = dma.hbm_to_vmem [thread:$0]  %s149, 4864, %s151, %s140, 7296, 1216, 76
        $region24: #{cnn_lstm_forward.3} parent=19 // pred_fallthru
          _
        // Predicated region
        $region25: #{cnn_lstm_forward.3} parent=19 // pred_check
          %p157 = pneg %p82
        $region26: #{cnn_lstm_forward.3} parent=19 // pred_check_branch
          %159 = sbr.rel (%p157) target = $region28
        $region27: #{cnn_lstm_forward.3} parent=19 // pred_region
          %s160 = sand.u32 %s72, 1
          %s161 = scalar_lea.sflag [#allocation5], %s160
          %s162 = sand.u32 %s72, 1
          %s163 = smul.addr %s162, 19
          %s164 = scalar_lea.vmem [#allocation4], %s163
          %s165 = smul.u32 19, %s15
          %s167 = ssub.s32 304, 304
          %168 = vsyncadd %s161, %s167
          %s169 = smul.addr %s165, 16
          %s170 = scalar_lea.hbm %s2, %s169
          %s172 = sshll.u32 %s164, 4
          %s173 = int_to_ptr.vmem [resolvable:$true] %s172
          %175 = dma.hbm_to_vmem [thread:$0]  %s170, 304, %s173, %s161
        $region28: #{cnn_lstm_forward.3} parent=19 // pred_fallthru
          _
      $region20: #{cnn_lstm_forward.3} parent=5 // pred_fallthru
        _
      %p176 = scmp.le.s32.totalorder 1, %s15
      %p177 = scmp.lt.s32.totalorder %s15, 7
      %p178 = pnand %p176, %p177
      %p179 = pneg %p178
      // Predicated region
      $region29: #{cnn_lstm_forward.3} parent=5 // pred_check
        _
      $region30: #{cnn_lstm_forward.3} parent=5 // pred_check_branch
        %181 = sbr.rel (%p178) target = $region32
      $region31: #{cnn_lstm_forward.3} parent=5 // pred_region
        %s182 = ssub.s32 %s15, 1
        %s183 = sand.u32 %s49, 1
        %s184 = scalar_lea.sflag [#allocation3], %s183
        %s185 = sand.u32 %s49, 1
        %s186 = smul.addr %s185, 304
        %s187 = scalar_lea.vmem [#allocation2], %s186
        // Predicated region
        $region33: #{cnn_lstm_forward.3} parent=31 // pred_check
          %p188 = pneg %p62
        $region34: #{cnn_lstm_forward.3} parent=31 // pred_check_branch
          %190 = sbr.rel (%p188) target = $region36
        $region35: #{cnn_lstm_forward.3} parent=31 // pred_region
          %191 = dma.done %s184, 4864
        $region36: #{cnn_lstm_forward.3} parent=31 // pred_fallthru
          _
        %s192 = sand.u32 %s75, 1
        %s193 = scalar_lea.sflag [#allocation5], %s192
        %s194 = sand.u32 %s75, 1
        %s195 = smul.addr %s194, 19
        %s196 = scalar_lea.vmem [#allocation4], %s195
        // Predicated region
        $region37: #{cnn_lstm_forward.3} parent=31 // pred_check
          %p197 = pneg %p88
        $region38: #{cnn_lstm_forward.3} parent=31 // pred_check_branch
          %199 = sbr.rel (%p197) target = $region40
        $region39: #{cnn_lstm_forward.3} parent=31 // pred_region
          %200 = dma.done %s193, 304
        $region40: #{cnn_lstm_forward.3} parent=31 // pred_fallthru
          _
        %p201 = pneg %p36
        %p202 = pneg %p33
        %s203 = sand.u32 %s49, 1
        %s204 = scalar_lea.sflag [#allocation3], %s203
        %s205 = sand.u32 %s49, 1
        %s206 = smul.addr %s205, 304
        %s207 = scalar_lea.vmem [#allocation2], %s206
        %p208 = pneg %p62
        %p209 = pneg %p59
        %s210 = sand.u32 %s75, 1
        %s211 = scalar_lea.sflag [#allocation5], %s210
        %s212 = sand.u32 %s75, 1
        %s213 = smul.addr %s212, 19
        %s214 = scalar_lea.vmem [#allocation4], %s213
        %p215 = pneg %p88
        %p216 = pneg %p85
        %p217 = pneg %p114
        %p218 = pneg %p111
        %s219 = sand.u32 %s101, 1
        %s220 = sand.u32 %s101, 1
        %s221 = smul.addr %s220, 1368
        %s222 = scalar_lea.vmem [#allocation6], %s221
        %s223 = smul.u32 19, %s20
        %s224 = smul.u32 19, %s20
        %s225 = smul.u32 19, %s20
        %v226 = vld [vmem:[%s187] sm:$0xff]
        %v227 = vld [vmem:[%s187 + $0x8] sm:$0xff]
        %v228 = vld [vmem:[%s187 + $0x10] sm:$0xff]
        %v229 = vld [vmem:[%s187 + $0x18] sm:$0xff]
        %v230 = vld [vmem:[%s187 + $0x20] sm:$0xff]
        %v231 = vld [vmem:[%s187 + $0x28] sm:$0xff]
        %v232 = vld [vmem:[%s187 + $0x30] sm:$0xff]
        %v233 = vld [vmem:[%s187 + $0x38] sm:$0xff]
        %v234 = vld [vmem:[%s187 + $0x40] sm:$0xff]
        %v235 = vld [vmem:[%s187 + $0x48] sm:$0xf]
        %v236 = vld [vmem:[%s187 + $0x4c] sm:$0xff]
        %v237 = vld [vmem:[%s187 + $0x54] sm:$0xff]
        %v238 = vld [vmem:[%s187 + $0x5c] sm:$0xff]
        %v239 = vld [vmem:[%s187 + $0x64] sm:$0xff]
        %v240 = vld [vmem:[%s187 + $0x6c] sm:$0xff]
        %v241 = vld [vmem:[%s187 + $0x74] sm:$0xff]
        %v242 = vld [vmem:[%s187 + $0x7c] sm:$0xff]
        %v243 = vld [vmem:[%s187 + $0x84] sm:$0xff]
        %v244 = vld [vmem:[%s187 + $0x8c] sm:$0xff]
        %v245 = vld [vmem:[%s187 + $0x94] sm:$0xf]
        %v246 = vld [vmem:[%s187 + $0x98] sm:$0xff]
        %v247 = vld [vmem:[%s187 + $0xa0] sm:$0xff]
        %v248 = vld [vmem:[%s187 + $0xa8] sm:$0xff]
        %v249 = vld [vmem:[%s187 + $0xb0] sm:$0xff]
        %v250 = vld [vmem:[%s187 + $0xb8] sm:$0xff]
        %v251 = vld [vmem:[%s187 + $0xc0] sm:$0xff]
        %v252 = vld [vmem:[%s187 + $0xc8] sm:$0xff]
        %v253 = vld [vmem:[%s187 + $0xd0] sm:$0xff]
        %v254 = vld [vmem:[%s187 + $0xd8] sm:$0xff]
        %v255 = vld [vmem:[%s187 + $0xe0] sm:$0xf]
        %v256 = vld [vmem:[%s187 + $0xe4] sm:$0xff]
        %v257 = vld [vmem:[%s187 + $0xec] sm:$0xff]
        %v258 = vld [vmem:[%s187 + $0xf4] sm:$0xff]
        %v259 = vld [vmem:[%s187 + $0xfc] sm:$0xff]
        %v260 = vld [vmem:[%s187 + $0x104] sm:$0xff]
        %v261 = vld [vmem:[%s187 + $0x10c] sm:$0xff]
        %v262 = vld [vmem:[%s187 + $0x114] sm:$0xff]
        %v263 = vld [vmem:[%s187 + $0x11c] sm:$0xff]
        %v264 = vld [vmem:[%s187 + $0x124] sm:$0xff]
        %v265 = vld [vmem:[%s187 + $0x12c] sm:$0xf]
        %v266 = vunpack.c.l.bf16 %v226
        %v267 = vunpack.c.h.bf16 %v226
        %v268 = vunpack.c.l.bf16 %v227
        %v269 = vunpack.c.h.bf16 %v227
        %v270 = vunpack.c.l.bf16 %v228
        %v271 = vunpack.c.h.bf16 %v228
        %v272 = vunpack.c.l.bf16 %v229
        %v273 = vunpack.c.h.bf16 %v229
        %v274 = vunpack.c.l.bf16 %v230
        %v275 = vunpack.c.h.bf16 %v230
        %v276 = vunpack.c.l.bf16 %v231
        %v277 = vunpack.c.h.bf16 %v231
        %v278 = vunpack.c.l.bf16 %v232
        %v279 = vunpack.c.h.bf16 %v232
        %v280 = vunpack.c.l.bf16 %v233
        %v281 = vunpack.c.h.bf16 %v233
        %v282 = vunpack.c.l.bf16 %v234
        %v283 = vunpack.c.h.bf16 %v234
        %v284 = vunpack.c.l.bf16 %v235
        %v285 = vunpack.c.l.bf16 %v236
        %v286 = vunpack.c.h.bf16 %v236
        %v287 = vunpack.c.l.bf16 %v237
        %v288 = vunpack.c.h.bf16 %v237
        %v289 = vunpack.c.l.bf16 %v238
        %v290 = vunpack.c.h.bf16 %v238
        %v291 = vunpack.c.l.bf16 %v239
        %v292 = vunpack.c.h.bf16 %v239
        %v293 = vunpack.c.l.bf16 %v240
        %v294 = vunpack.c.h.bf16 %v240
        %v295 = vunpack.c.l.bf16 %v241
        %v296 = vunpack.c.h.bf16 %v241
        %v297 = vunpack.c.l.bf16 %v242
        %v298 = vunpack.c.h.bf16 %v242
        %v299 = vunpack.c.l.bf16 %v243
        %v300 = vunpack.c.h.bf16 %v243
        %v301 = vunpack.c.l.bf16 %v244
        %v302 = vunpack.c.h.bf16 %v244
        %v303 = vunpack.c.l.bf16 %v245
        %v304 = vunpack.c.l.bf16 %v246
        %v305 = vunpack.c.h.bf16 %v246
        %v306 = vunpack.c.l.bf16 %v247
        %v307 = vunpack.c.h.bf16 %v247
        %v308 = vunpack.c.l.bf16 %v248
        %v309 = vunpack.c.h.bf16 %v248
        %v310 = vunpack.c.l.bf16 %v249
        %v311 = vunpack.c.h.bf16 %v249
        %v312 = vunpack.c.l.bf16 %v250
        %v313 = vunpack.c.h.bf16 %v250
        %v314 = vunpack.c.l.bf16 %v251
        %v315 = vunpack.c.h.bf16 %v251
        %v316 = vunpack.c.l.bf16 %v252
        %v317 = vunpack.c.h.bf16 %v252
        %v318 = vunpack.c.l.bf16 %v253
        %v319 = vunpack.c.h.bf16 %v253
        %v320 = vunpack.c.l.bf16 %v254
        %v321 = vunpack.c.h.bf16 %v254
        %v322 = vunpack.c.l.bf16 %v255
        %v323 = vunpack.c.l.bf16 %v256
        %v324 = vunpack.c.h.bf16 %v256
        %v325 = vunpack.c.l.bf16 %v257
        %v326 = vunpack.c.h.bf16 %v257
        %v327 = vunpack.c.l.bf16 %v258
        %v328 = vunpack.c.h.bf16 %v258
        %v329 = vunpack.c.l.bf16 %v259
        %v330 = vunpack.c.h.bf16 %v259
        %v331 = vunpack.c.l.bf16 %v260
        %v332 = vunpack.c.h.bf16 %v260
        %v333 = vunpack.c.l.bf16 %v261
        %v334 = vunpack.c.h.bf16 %v261
        %v335 = vunpack.c.l.bf16 %v262
        %v336 = vunpack.c.h.bf16 %v262
        %v337 = vunpack.c.l.bf16 %v263
        %v338 = vunpack.c.h.bf16 %v263
        %v339 = vunpack.c.l.bf16 %v264
        %v340 = vunpack.c.h.bf16 %v264
        %v341 = vunpack.c.l.bf16 %v265
        %v342 = vld [vmem:[%s0] sm:$0xff]
        %v343 = vld [vmem:[%s0 + $0x8] sm:$0xff]
        %v344 = vld [vmem:[%s0 + $0x10] sm:$0xff]
        %v345 = vld [vmem:[%s0 + $0x18] sm:$0xff]
        %v346 = vld [vmem:[%s0 + $0x20] sm:$0xff]
        %v347 = vld [vmem:[%s0 + $0x28] sm:$0xff]
        %v348 = vld [vmem:[%s0 + $0x30] sm:$0xff]
        %v349 = vld [vmem:[%s0 + $0x38] sm:$0xff]
        %v350 = vld [vmem:[%s0 + $0x40] sm:$0xff]
        %v351 = vld [vmem:[%s196] sm:$0xff]
        %v352 = vld [vmem:[%s196 + $0x8] sm:$0xff]
        %v353 = vld [vmem:[%s196 + $0x10] sm:$0x7]
        %v357 = vlaneseq
        %v358 = vshrl.u32 %v357, 7
        %v359 = vsub.s32 0, %v358
        %v360 = vrot.slane %v351, %v359
        %v361 = vlaneseq
        %v362 = vshrl.u32 %v361, 7
        %v363 = vsub.s32 1, %v362
        %v364 = vrot.slane %v351, %v363
        %v365 = vlaneseq
        %v366 = vshrl.u32 %v365, 7
        %v367 = vsub.s32 2, %v366
        %v368 = vrot.slane %v351, %v367
        %v369 = vlaneseq
        %v370 = vshrl.u32 %v369, 7
        %v371 = vsub.s32 3, %v370
        %v372 = vrot.slane %v351, %v371
        %v373 = vlaneseq
        %v374 = vshrl.u32 %v373, 7
        %v375 = vsub.s32 4, %v374
        %v376 = vrot.slane %v351, %v375
        %v377 = vlaneseq
        %v378 = vshrl.u32 %v377, 7
        %v379 = vsub.s32 5, %v378
        %v380 = vrot.slane %v351, %v379
        %v381 = vlaneseq
        %v382 = vshrl.u32 %v381, 7
        %v383 = vsub.s32 6, %v382
        %v384 = vrot.slane %v351, %v383
        %v385 = vlaneseq
        %v386 = vshrl.u32 %v385, 7
        %v387 = vsub.s32 7, %v386
        %v388 = vrot.slane %v351, %v387
        %v389 = vlaneseq
        %v390 = vshrl.u32 %v389, 7
        %v391 = vsub.s32 0, %v390
        %v392 = vrot.slane %v352, %v391
        %v393 = vlaneseq
        %v394 = vshrl.u32 %v393, 7
        %v395 = vsub.s32 1, %v394
        %v396 = vrot.slane %v352, %v395
        %v397 = vlaneseq
        %v398 = vshrl.u32 %v397, 7
        %v399 = vsub.s32 2, %v398
        %v400 = vrot.slane %v352, %v399
        %v401 = vlaneseq
        %v402 = vshrl.u32 %v401, 7
        %v403 = vsub.s32 3, %v402
        %v404 = vrot.slane %v352, %v403
        %v405 = vlaneseq
        %v406 = vshrl.u32 %v405, 7
        %v407 = vsub.s32 4, %v406
        %v408 = vrot.slane %v352, %v407
        %v409 = vlaneseq
        %v410 = vshrl.u32 %v409, 7
        %v411 = vsub.s32 5, %v410
        %v412 = vrot.slane %v352, %v411
        %v413 = vlaneseq
        %v414 = vshrl.u32 %v413, 7
        %v415 = vsub.s32 6, %v414
        %v416 = vrot.slane %v352, %v415
        %v417 = vlaneseq
        %v418 = vshrl.u32 %v417, 7
        %v419 = vsub.s32 7, %v418
        %v420 = vrot.slane %v352, %v419
        %v421 = vlaneseq
        %v422 = vshrl.u32 %v421, 7
        %v423 = vsub.s32 0, %v422
        %v424 = vrot.slane %v353, %v423
        %v425 = vlaneseq
        %v426 = vshrl.u32 %v425, 7
        %v427 = vsub.s32 1, %v426
        %v428 = vrot.slane %v353, %v427
        %v429 = vlaneseq
        %v430 = vshrl.u32 %v429, 7
        %v431 = vsub.s32 2, %v430
        %v432 = vrot.slane %v353, %v431
        %vm452 = vcmask 261120
        %v454 = vsel %vm452, %v342, 0
        %v457 = vsel %vm452, %v343, 0
        %v460 = vsel %vm452, %v344, 0
        %v463 = vsel %vm452, %v345, 0
        %v466 = vsel %vm452, %v346, 0
        %v469 = vsel %vm452, %v347, 0
        %v472 = vsel %vm452, %v348, 0
        %v475 = vsel %vm452, %v349, 0
        %v478 = vsel %vm452, %v350, 0
        %480 = vmatprep.subr.mxu0 0.0
        %481 = vmatpush1.msra.mxu0 0.0
        %482 = vmatprep.subr.mxu0 0.0
        %483 = vmatpush1.msra.mxu0 0.0
        %484 = vmatprep.subr.mxu0 0.0
        %485 = vmatpush1.msra.mxu0 0.0
        %486 = vmatprep.subr.mxu0 0.0
        %487 = vmatpush1.msra.mxu0 0.0
        %488 = vmatprep.subr.mxu0 0.0
        %489 = vmatpush1.msra.mxu0 0.0
        %490 = vmatprep.subr.mxu0 0.0
        %491 = vmatpush1.msra.mxu0 0.0
        %492 = vmatprep.subr.mxu0 0.0
        %493 = vmatpush1.msra.mxu0 0.0
        %494 = vmatprep.subr.mxu0 0.0
        %495 = vmatpush1.msra.mxu0 0.0
        %496 = vmatprep.subr.mxu0 0.0
        %497 = vmatpush1.msra.mxu0 0.0
        %498 = vmatprep.subr.mxu0 0.0
        %499 = vmatpush1.msra.mxu0 0.0
        %500 = vmatprep.subr.mxu0 0.0
        %501 = vmatpush1.msra.mxu0 0.0
        %502 = vmatprep.subr.mxu0 0.0
        %503 = vmatpush1.msra.mxu0 0.0
        %504 = vmatprep.subr.mxu0 %v324
        %505 = vmatpush1.msra.mxu0 %v323
        %506 = vmatprep.subr.mxu0 %v305
        %507 = vmatpush1.msra.mxu0 %v304
        %508 = vmatprep.subr.mxu0 %v286
        %509 = vmatpush1.msra.mxu0 %v285
        %510 = vmatprep.subr.mxu0 %v267
        %511 = vmatpush1.msra.mxu0 %v266
        %512 = vmatprep.subr.mxu0 0.0
        %513 = vmatpush2.msra.mxu0 0.0
        %514 = vmatprep.subr.mxu0 0.0
        %515 = vmatpush2.msra.mxu0 0.0
        %516 = vmatprep.subr.mxu0 0.0
        %517 = vmatpush2.msra.mxu0 0.0
        %518 = vmatprep.subr.mxu0 0.0
        %519 = vmatpush2.msra.mxu0 0.0
        %520 = vmatprep.subr.mxu0 0.0
        %521 = vmatpush2.msra.mxu0 0.0
        %522 = vmatprep.subr.mxu0 0.0
        %523 = vmatpush2.msra.mxu0 0.0
        %524 = vmatprep.subr.mxu0 0.0
        %525 = vmatpush2.msra.mxu0 0.0
        %526 = vmatprep.subr.mxu0 0.0
        %527 = vmatpush2.msra.mxu0 0.0
        %528 = vmatprep.subr.mxu0 0.0
        %529 = vmatpush2.msra.mxu0 0.0
        %530 = vmatprep.subr.mxu0 0.0
        %531 = vmatpush2.msra.mxu0 0.0
        %532 = vmatprep.subr.mxu0 0.0
        %533 = vmatpush2.msra.mxu0 0.0
        %534 = vmatprep.subr.mxu0 0.0
        %535 = vmatpush2.msra.mxu0 0.0
        %536 = vmatprep.subr.mxu0 0.0
        %537 = vmatpush2.msra.mxu0 0.0
        %538 = vmatprep.subr.mxu0 0.0
        %539 = vmatpush2.msra.mxu0 0.0
        %540 = vmatprep.subr.mxu0 0.0
        %541 = vmatpush2.msra.mxu0 0.0
        %542 = vmatprep.subr.mxu0 0.0
        %543 = vmatpush2.msra.mxu0 0.0
        %544 = vmatprep.mubr.f32.mxu0 0.0
        %545 = vmatmul.mubr.f32.gmra.mxu0 %v454
        %v546 = vpop.f32.mrf.mxu0
        %v547 = vadd.f32 %v360, %v546
        %v548 = vpop.f32.mrf.mxu0
        %v549 = vadd.f32 %v364, %v548
        %550 = vmatprep.mubr.f32.mxu0 0.0
        %551 = vmatmul.mubr.f32.gmra.mxu0 %v457
        %v552 = vpop.f32.mrf.mxu0
        %v553 = vadd.f32 %v360, %v552
        %v554 = vpop.f32.mrf.mxu0
        %v555 = vadd.f32 %v364, %v554
        %556 = vmatprep.mubr.f32.mxu0 0.0
        %557 = vmatmul.mubr.f32.gmra.mxu0 %v460
        %v558 = vpop.f32.mrf.mxu0
        %v559 = vadd.f32 %v360, %v558
        %v560 = vpop.f32.mrf.mxu0
        %v561 = vadd.f32 %v364, %v560
        %562 = vmatprep.mubr.f32.mxu0 0.0
        %563 = vmatmul.mubr.f32.gmra.mxu0 %v463
        %v564 = vpop.f32.mrf.mxu0
        %v565 = vadd.f32 %v360, %v564
        %v566 = vpop.f32.mrf.mxu0
        %v567 = vadd.f32 %v364, %v566
        %568 = vmatprep.mubr.f32.mxu0 0.0
        %569 = vmatmul.mubr.f32.gmra.mxu0 %v466
        %v570 = vpop.f32.mrf.mxu0
        %v571 = vadd.f32 %v360, %v570
        %v572 = vpop.f32.mrf.mxu0
        %v573 = vadd.f32 %v364, %v572
        %574 = vmatprep.mubr.f32.mxu0 0.0
        %575 = vmatmul.mubr.f32.gmra.mxu0 %v469
        %v576 = vpop.f32.mrf.mxu0
        %v577 = vadd.f32 %v360, %v576
        %v578 = vpop.f32.mrf.mxu0
        %v579 = vadd.f32 %v364, %v578
        %580 = vmatprep.mubr.f32.mxu0 0.0
        %581 = vmatmul.mubr.f32.gmra.mxu0 %v472
        %v582 = vpop.f32.mrf.mxu0
        %v583 = vadd.f32 %v360, %v582
        %v584 = vpop.f32.mrf.mxu0
        %v585 = vadd.f32 %v364, %v584
        %586 = vmatprep.mubr.f32.mxu0 0.0
        %587 = vmatmul.mubr.f32.gmra.mxu0 %v475
        %v588 = vpop.f32.mrf.mxu0
        %v589 = vadd.f32 %v360, %v588
        %v590 = vpop.f32.mrf.mxu0
        %v591 = vadd.f32 %v364, %v590
        %592 = vmatprep.mubr.f32.mxu0 0.0
        %593 = vmatmul.mubr.f32.gmra.mxu0 %v478
        %v594 = vpop.f32.mrf.mxu0
        %v595 = vadd.f32 %v360, %v594
        %v596 = vpop.f32.mrf.mxu0
        %v597 = vadd.f32 %v364, %v596
        %598 = vdwg.mxu0
        %599 = vmatprep.subr.mxu0 0.0
        %600 = vmatpush1.msra.mxu0 0.0
        %601 = vmatprep.subr.mxu0 0.0
        %602 = vmatpush1.msra.mxu0 0.0
        %603 = vmatprep.subr.mxu0 0.0
        %604 = vmatpush1.msra.mxu0 0.0
        %605 = vmatprep.subr.mxu0 0.0
        %606 = vmatpush1.msra.mxu0 0.0
        %607 = vmatprep.subr.mxu0 0.0
        %608 = vmatpush1.msra.mxu0 0.0
        %609 = vmatprep.subr.mxu0 0.0
        %610 = vmatpush1.msra.mxu0 0.0
        %611 = vmatprep.subr.mxu0 0.0
        %612 = vmatpush1.msra.mxu0 0.0
        %613 = vmatprep.subr.mxu0 0.0
        %614 = vmatpush1.msra.mxu0 0.0
        %615 = vmatprep.subr.mxu0 0.0
        %616 = vmatpush1.msra.mxu0 0.0
        %617 = vmatprep.subr.mxu0 0.0
        %618 = vmatpush1.msra.mxu0 0.0
        %619 = vmatprep.subr.mxu0 0.0
        %620 = vmatpush1.msra.mxu0 0.0
        %621 = vmatprep.subr.mxu0 0.0
        %622 = vmatpush1.msra.mxu0 0.0
        %623 = vmatprep.subr.mxu0 %v326
        %624 = vmatpush1.msra.mxu0 %v325
        %625 = vmatprep.subr.mxu0 %v307
        %626 = vmatpush1.msra.mxu0 %v306
        %627 = vmatprep.subr.mxu0 %v288
        %628 = vmatpush1.msra.mxu0 %v287
        %629 = vmatprep.subr.mxu0 %v269
        %630 = vmatpush1.msra.mxu0 %v268
        %631 = vmatprep.subr.mxu0 0.0
        %632 = vmatpush2.msra.mxu0 0.0
        %633 = vmatprep.subr.mxu0 0.0
        %634 = vmatpush2.msra.mxu0 0.0
        %635 = vmatprep.subr.mxu0 0.0
        %636 = vmatpush2.msra.mxu0 0.0
        %637 = vmatprep.subr.mxu0 0.0
        %638 = vmatpush2.msra.mxu0 0.0
        %639 = vmatprep.subr.mxu0 0.0
        %640 = vmatpush2.msra.mxu0 0.0
        %641 = vmatprep.subr.mxu0 0.0
        %642 = vmatpush2.msra.mxu0 0.0
        %643 = vmatprep.subr.mxu0 0.0
        %644 = vmatpush2.msra.mxu0 0.0
        %645 = vmatprep.subr.mxu0 0.0
        %646 = vmatpush2.msra.mxu0 0.0
        %647 = vmatprep.subr.mxu0 0.0
        %648 = vmatpush2.msra.mxu0 0.0
        %649 = vmatprep.subr.mxu0 0.0
        %650 = vmatpush2.msra.mxu0 0.0
        %651 = vmatprep.subr.mxu0 0.0
        %652 = vmatpush2.msra.mxu0 0.0
        %653 = vmatprep.subr.mxu0 0.0
        %654 = vmatpush2.msra.mxu0 0.0
        %655 = vmatprep.subr.mxu0 0.0
        %656 = vmatpush2.msra.mxu0 0.0
        %657 = vmatprep.subr.mxu0 0.0
        %658 = vmatpush2.msra.mxu0 0.0
        %659 = vmatprep.subr.mxu0 0.0
        %660 = vmatpush2.msra.mxu0 0.0
        %661 = vmatprep.subr.mxu0 0.0
        %662 = vmatpush2.msra.mxu0 0.0
        %663 = vmatprep.mubr.f32.mxu0 0.0
        %664 = vmatmul.mubr.f32.gmra.mxu0 %v454
        %v665 = vpop.f32.mrf.mxu0
        %v666 = vadd.f32 %v368, %v665
        %v667 = vpop.f32.mrf.mxu0
        %v668 = vadd.f32 %v372, %v667
        %669 = vmatprep.mubr.f32.mxu0 0.0
        %670 = vmatmul.mubr.f32.gmra.mxu0 %v457
        %v671 = vpop.f32.mrf.mxu0
        %v672 = vadd.f32 %v368, %v671
        %v673 = vpop.f32.mrf.mxu0
        %v674 = vadd.f32 %v372, %v673
        %675 = vmatprep.mubr.f32.mxu0 0.0
        %676 = vmatmul.mubr.f32.gmra.mxu0 %v460
        %v677 = vpop.f32.mrf.mxu0
        %v678 = vadd.f32 %v368, %v677
        %v679 = vpop.f32.mrf.mxu0
        %v680 = vadd.f32 %v372, %v679
        %681 = vmatprep.mubr.f32.mxu0 0.0
        %682 = vmatmul.mubr.f32.gmra.mxu0 %v463
        %v683 = vpop.f32.mrf.mxu0
        %v684 = vadd.f32 %v368, %v683
        %v685 = vpop.f32.mrf.mxu0
        %v686 = vadd.f32 %v372, %v685
        %687 = vmatprep.mubr.f32.mxu0 0.0
        %688 = vmatmul.mubr.f32.gmra.mxu0 %v466
        %v689 = vpop.f32.mrf.mxu0
        %v690 = vadd.f32 %v368, %v689
        %v691 = vpop.f32.mrf.mxu0
        %v692 = vadd.f32 %v372, %v691
        %693 = vmatprep.mubr.f32.mxu0 0.0
        %694 = vmatmul.mubr.f32.gmra.mxu0 %v469
        %v695 = vpop.f32.mrf.mxu0
        %v696 = vadd.f32 %v368, %v695
        %v697 = vpop.f32.mrf.mxu0
        %v698 = vadd.f32 %v372, %v697
        %699 = vmatprep.mubr.f32.mxu0 0.0
        %700 = vmatmul.mubr.f32.gmra.mxu0 %v472
        %v701 = vpop.f32.mrf.mxu0
        %v702 = vadd.f32 %v368, %v701
        %v703 = vpop.f32.mrf.mxu0
        %v704 = vadd.f32 %v372, %v703
        %705 = vmatprep.mubr.f32.mxu0 0.0
        %706 = vmatmul.mubr.f32.gmra.mxu0 %v475
        %v707 = vpop.f32.mrf.mxu0
        %v708 = vadd.f32 %v368, %v707
        %v709 = vpop.f32.mrf.mxu0
        %v710 = vadd.f32 %v372, %v709
        %711 = vmatprep.mubr.f32.mxu0 0.0
        %712 = vmatmul.mubr.f32.gmra.mxu0 %v478
        %v713 = vpop.f32.mrf.mxu0
        %v714 = vadd.f32 %v368, %v713
        %v715 = vpop.f32.mrf.mxu0
        %v716 = vadd.f32 %v372, %v715
        %717 = vdwg.mxu0
        %718 = vmatprep.subr.mxu0 0.0
        %719 = vmatpush1.msra.mxu0 0.0
        %720 = vmatprep.subr.mxu0 0.0
        %721 = vmatpush1.msra.mxu0 0.0
        %722 = vmatprep.subr.mxu0 0.0
        %723 = vmatpush1.msra.mxu0 0.0
        %724 = vmatprep.subr.mxu0 0.0
        %725 = vmatpush1.msra.mxu0 0.0
        %726 = vmatprep.subr.mxu0 0.0
        %727 = vmatpush1.msra.mxu0 0.0
        %728 = vmatprep.subr.mxu0 0.0
        %729 = vmatpush1.msra.mxu0 0.0
        %730 = vmatprep.subr.mxu0 0.0
        %731 = vmatpush1.msra.mxu0 0.0
        %732 = vmatprep.subr.mxu0 0.0
        %733 = vmatpush1.msra.mxu0 0.0
        %734 = vmatprep.subr.mxu0 0.0
        %735 = vmatpush1.msra.mxu0 0.0
        %736 = vmatprep.subr.mxu0 0.0
        %737 = vmatpush1.msra.mxu0 0.0
        %738 = vmatprep.subr.mxu0 0.0
        %739 = vmatpush1.msra.mxu0 0.0
        %740 = vmatprep.subr.mxu0 0.0
        %741 = vmatpush1.msra.mxu0 0.0
        %742 = vmatprep.subr.mxu0 %v328
        %743 = vmatpush1.msra.mxu0 %v327
        %744 = vmatprep.subr.mxu0 %v309
        %745 = vmatpush1.msra.mxu0 %v308
        %746 = vmatprep.subr.mxu0 %v290
        %747 = vmatpush1.msra.mxu0 %v289
        %748 = vmatprep.subr.mxu0 %v271
        %749 = vmatpush1.msra.mxu0 %v270
        %750 = vmatprep.subr.mxu0 0.0
        %751 = vmatpush2.msra.mxu0 0.0
        %752 = vmatprep.subr.mxu0 0.0
        %753 = vmatpush2.msra.mxu0 0.0
        %754 = vmatprep.subr.mxu0 0.0
        %755 = vmatpush2.msra.mxu0 0.0
        %756 = vmatprep.subr.mxu0 0.0
        %757 = vmatpush2.msra.mxu0 0.0
        %758 = vmatprep.subr.mxu0 0.0
        %759 = vmatpush2.msra.mxu0 0.0
        %760 = vmatprep.subr.mxu0 0.0
        %761 = vmatpush2.msra.mxu0 0.0
        %762 = vmatprep.subr.mxu0 0.0
        %763 = vmatpush2.msra.mxu0 0.0
        %764 = vmatprep.subr.mxu0 0.0
        %765 = vmatpush2.msra.mxu0 0.0
        %766 = vmatprep.subr.mxu0 0.0
        %767 = vmatpush2.msra.mxu0 0.0
        %768 = vmatprep.subr.mxu0 0.0
        %769 = vmatpush2.msra.mxu0 0.0
        %770 = vmatprep.subr.mxu0 0.0
        %771 = vmatpush2.msra.mxu0 0.0
        %772 = vmatprep.subr.mxu0 0.0
        %773 = vmatpush2.msra.mxu0 0.0
        %774 = vmatprep.subr.mxu0 0.0
        %775 = vmatpush2.msra.mxu0 0.0
        %776 = vmatprep.subr.mxu0 0.0
        %777 = vmatpush2.msra.mxu0 0.0
        %778 = vmatprep.subr.mxu0 0.0
        %779 = vmatpush2.msra.mxu0 0.0
        %780 = vmatprep.subr.mxu0 0.0
        %781 = vmatpush2.msra.mxu0 0.0
        %782 = vmatprep.mubr.f32.mxu0 0.0
        %783 = vmatmul.mubr.f32.gmra.mxu0 %v454
        %v784 = vpop.f32.mrf.mxu0
        %v785 = vadd.f32 %v376, %v784
        %v786 = vpop.f32.mrf.mxu0
        %v787 = vadd.f32 %v380, %v786
        %788 = vmatprep.mubr.f32.mxu0 0.0
        %789 = vmatmul.mubr.f32.gmra.mxu0 %v457
        %v790 = vpop.f32.mrf.mxu0
        %v791 = vadd.f32 %v376, %v790
        %v792 = vpop.f32.mrf.mxu0
        %v793 = vadd.f32 %v380, %v792
        %794 = vmatprep.mubr.f32.mxu0 0.0
        %795 = vmatmul.mubr.f32.gmra.mxu0 %v460
        %v796 = vpop.f32.mrf.mxu0
        %v797 = vadd.f32 %v376, %v796
        %v798 = vpop.f32.mrf.mxu0
        %v799 = vadd.f32 %v380, %v798
        %800 = vmatprep.mubr.f32.mxu0 0.0
        %801 = vmatmul.mubr.f32.gmra.mxu0 %v463
        %v802 = vpop.f32.mrf.mxu0
        %v803 = vadd.f32 %v376, %v802
        %v804 = vpop.f32.mrf.mxu0
        %v805 = vadd.f32 %v380, %v804
        %806 = vmatprep.mubr.f32.mxu0 0.0
        %807 = vmatmul.mubr.f32.gmra.mxu0 %v466
        %v808 = vpop.f32.mrf.mxu0
        %v809 = vadd.f32 %v376, %v808
        %v810 = vpop.f32.mrf.mxu0
        %v811 = vadd.f32 %v380, %v810
        %812 = vmatprep.mubr.f32.mxu0 0.0
        %813 = vmatmul.mubr.f32.gmra.mxu0 %v469
        %v814 = vpop.f32.mrf.mxu0
        %v815 = vadd.f32 %v376, %v814
        %v816 = vpop.f32.mrf.mxu0
        %v817 = vadd.f32 %v380, %v816
        %818 = vmatprep.mubr.f32.mxu0 0.0
        %819 = vmatmul.mubr.f32.gmra.mxu0 %v472
        %v820 = vpop.f32.mrf.mxu0
        %v821 = vadd.f32 %v376, %v820
        %v822 = vpop.f32.mrf.mxu0
        %v823 = vadd.f32 %v380, %v822
        %824 = vmatprep.mubr.f32.mxu0 0.0
        %825 = vmatmul.mubr.f32.gmra.mxu0 %v475
        %v826 = vpop.f32.mrf.mxu0
        %v827 = vadd.f32 %v376, %v826
        %v828 = vpop.f32.mrf.mxu0
        %v829 = vadd.f32 %v380, %v828
        %830 = vmatprep.mubr.f32.mxu0 0.0
        %831 = vmatmul.mubr.f32.gmra.mxu0 %v478
        %v832 = vpop.f32.mrf.mxu0
        %v833 = vadd.f32 %v376, %v832
        %v834 = vpop.f32.mrf.mxu0
        %v835 = vadd.f32 %v380, %v834
        %836 = vdwg.mxu0
        %837 = vmatprep.subr.mxu0 0.0
        %838 = vmatpush1.msra.mxu0 0.0
        %839 = vmatprep.subr.mxu0 0.0
        %840 = vmatpush1.msra.mxu0 0.0
        %841 = vmatprep.subr.mxu0 0.0
        %842 = vmatpush1.msra.mxu0 0.0
        %843 = vmatprep.subr.mxu0 0.0
        %844 = vmatpush1.msra.mxu0 0.0
        %845 = vmatprep.subr.mxu0 0.0
        %846 = vmatpush1.msra.mxu0 0.0
        %847 = vmatprep.subr.mxu0 0.0
        %848 = vmatpush1.msra.mxu0 0.0
        %849 = vmatprep.subr.mxu0 0.0
        %850 = vmatpush1.msra.mxu0 0.0
        %851 = vmatprep.subr.mxu0 0.0
        %852 = vmatpush1.msra.mxu0 0.0
        %853 = vmatprep.subr.mxu0 0.0
        %854 = vmatpush1.msra.mxu0 0.0
        %855 = vmatprep.subr.mxu0 0.0
        %856 = vmatpush1.msra.mxu0 0.0
        %857 = vmatprep.subr.mxu0 0.0
        %858 = vmatpush1.msra.mxu0 0.0
        %859 = vmatprep.subr.mxu0 0.0
        %860 = vmatpush1.msra.mxu0 0.0
        %861 = vmatprep.subr.mxu0 %v330
        %862 = vmatpush1.msra.mxu0 %v329
        %863 = vmatprep.subr.mxu0 %v311
        %864 = vmatpush1.msra.mxu0 %v310
        %865 = vmatprep.subr.mxu0 %v292
        %866 = vmatpush1.msra.mxu0 %v291
        %867 = vmatprep.subr.mxu0 %v273
        %868 = vmatpush1.msra.mxu0 %v272
        %869 = vmatprep.subr.mxu0 0.0
        %870 = vmatpush2.msra.mxu0 0.0
        %871 = vmatprep.subr.mxu0 0.0
        %872 = vmatpush2.msra.mxu0 0.0
        %873 = vmatprep.subr.mxu0 0.0
        %874 = vmatpush2.msra.mxu0 0.0
        %875 = vmatprep.subr.mxu0 0.0
        %876 = vmatpush2.msra.mxu0 0.0
        %877 = vmatprep.subr.mxu0 0.0
        %878 = vmatpush2.msra.mxu0 0.0
        %879 = vmatprep.subr.mxu0 0.0
        %880 = vmatpush2.msra.mxu0 0.0
        %881 = vmatprep.subr.mxu0 0.0
        %882 = vmatpush2.msra.mxu0 0.0
        %883 = vmatprep.subr.mxu0 0.0
        %884 = vmatpush2.msra.mxu0 0.0
        %885 = vmatprep.subr.mxu0 0.0
        %886 = vmatpush2.msra.mxu0 0.0
        %887 = vmatprep.subr.mxu0 0.0
        %888 = vmatpush2.msra.mxu0 0.0
        %889 = vmatprep.subr.mxu0 0.0
        %890 = vmatpush2.msra.mxu0 0.0
        %891 = vmatprep.subr.mxu0 0.0
        %892 = vmatpush2.msra.mxu0 0.0
        %893 = vmatprep.subr.mxu0 0.0
        %894 = vmatpush2.msra.mxu0 0.0
        %895 = vmatprep.subr.mxu0 0.0
        %896 = vmatpush2.msra.mxu0 0.0
        %897 = vmatprep.subr.mxu0 0.0
        %898 = vmatpush2.msra.mxu0 0.0
        %899 = vmatprep.subr.mxu0 0.0
        %900 = vmatpush2.msra.mxu0 0.0
        %901 = vmatprep.mubr.f32.mxu0 0.0
        %902 = vmatmul.mubr.f32.gmra.mxu0 %v454
        %v903 = vpop.f32.mrf.mxu0
        %v904 = vadd.f32 %v384, %v903
        %v905 = vpop.f32.mrf.mxu0
        %v906 = vadd.f32 %v388, %v905
        %907 = vmatprep.mubr.f32.mxu0 0.0
        %908 = vmatmul.mubr.f32.gmra.mxu0 %v457
        %v909 = vpop.f32.mrf.mxu0
        %v910 = vadd.f32 %v384, %v909
        %v911 = vpop.f32.mrf.mxu0
        %v912 = vadd.f32 %v388, %v911
        %913 = vmatprep.mubr.f32.mxu0 0.0
        %914 = vmatmul.mubr.f32.gmra.mxu0 %v460
        %v915 = vpop.f32.mrf.mxu0
        %v916 = vadd.f32 %v384, %v915
        %v917 = vpop.f32.mrf.mxu0
        %v918 = vadd.f32 %v388, %v917
        %919 = vmatprep.mubr.f32.mxu0 0.0
        %920 = vmatmul.mubr.f32.gmra.mxu0 %v463
        %v921 = vpop.f32.mrf.mxu0
        %v922 = vadd.f32 %v384, %v921
        %v923 = vpop.f32.mrf.mxu0
        %v924 = vadd.f32 %v388, %v923
        %925 = vmatprep.mubr.f32.mxu0 0.0
        %926 = vmatmul.mubr.f32.gmra.mxu0 %v466
        %v927 = vpop.f32.mrf.mxu0
        %v928 = vadd.f32 %v384, %v927
        %v929 = vpop.f32.mrf.mxu0
        %v930 = vadd.f32 %v388, %v929
        %931 = vmatprep.mubr.f32.mxu0 0.0
        %932 = vmatmul.mubr.f32.gmra.mxu0 %v469
        %v933 = vpop.f32.mrf.mxu0
        %v934 = vadd.f32 %v384, %v933
        %v935 = vpop.f32.mrf.mxu0
        %v936 = vadd.f32 %v388, %v935
        %937 = vmatprep.mubr.f32.mxu0 0.0
        %938 = vmatmul.mubr.f32.gmra.mxu0 %v472
        %v939 = vpop.f32.mrf.mxu0
        %v940 = vadd.f32 %v384, %v939
        %v941 = vpop.f32.mrf.mxu0
        %v942 = vadd.f32 %v388, %v941
        %943 = vmatprep.mubr.f32.mxu0 0.0
        %944 = vmatmul.mubr.f32.gmra.mxu0 %v475
        %v945 = vpop.f32.mrf.mxu0
        %v946 = vadd.f32 %v384, %v945
        %v947 = vpop.f32.mrf.mxu0
        %v948 = vadd.f32 %v388, %v947
        %949 = vmatprep.mubr.f32.mxu0 0.0
        %950 = vmatmul.mubr.f32.gmra.mxu0 %v478
        %v951 = vpop.f32.mrf.mxu0
        %v952 = vadd.f32 %v384, %v951
        %v953 = vpop.f32.mrf.mxu0
        %v954 = vadd.f32 %v388, %v953
        %955 = vdwg.mxu0
        %956 = vmatprep.subr.mxu0 0.0
        %957 = vmatpush1.msra.mxu0 0.0
        %958 = vmatprep.subr.mxu0 0.0
        %959 = vmatpush1.msra.mxu0 0.0
        %960 = vmatprep.subr.mxu0 0.0
        %961 = vmatpush1.msra.mxu0 0.0
        %962 = vmatprep.subr.mxu0 0.0
        %963 = vmatpush1.msra.mxu0 0.0
        %964 = vmatprep.subr.mxu0 0.0
        %965 = vmatpush1.msra.mxu0 0.0
        %966 = vmatprep.subr.mxu0 0.0
        %967 = vmatpush1.msra.mxu0 0.0
        %968 = vmatprep.subr.mxu0 0.0
        %969 = vmatpush1.msra.mxu0 0.0
        %970 = vmatprep.subr.mxu0 0.0
        %971 = vmatpush1.msra.mxu0 0.0
        %972 = vmatprep.subr.mxu0 0.0
        %973 = vmatpush1.msra.mxu0 0.0
        %974 = vmatprep.subr.mxu0 0.0
        %975 = vmatpush1.msra.mxu0 0.0
        %976 = vmatprep.subr.mxu0 0.0
        %977 = vmatpush1.msra.mxu0 0.0
        %978 = vmatprep.subr.mxu0 0.0
        %979 = vmatpush1.msra.mxu0 0.0
        %980 = vmatprep.subr.mxu0 %v332
        %981 = vmatpush1.msra.mxu0 %v331
        %982 = vmatprep.subr.mxu0 %v313
        %983 = vmatpush1.msra.mxu0 %v312
        %984 = vmatprep.subr.mxu0 %v294
        %985 = vmatpush1.msra.mxu0 %v293
        %986 = vmatprep.subr.mxu0 %v275
        %987 = vmatpush1.msra.mxu0 %v274
        %988 = vmatprep.subr.mxu0 0.0
        %989 = vmatpush2.msra.mxu0 0.0
        %990 = vmatprep.subr.mxu0 0.0
        %991 = vmatpush2.msra.mxu0 0.0
        %992 = vmatprep.subr.mxu0 0.0
        %993 = vmatpush2.msra.mxu0 0.0
        %994 = vmatprep.subr.mxu0 0.0
        %995 = vmatpush2.msra.mxu0 0.0
        %996 = vmatprep.subr.mxu0 0.0
        %997 = vmatpush2.msra.mxu0 0.0
        %998 = vmatprep.subr.mxu0 0.0
        %999 = vmatpush2.msra.mxu0 0.0
        %1000 = vmatprep.subr.mxu0 0.0
        %1001 = vmatpush2.msra.mxu0 0.0
        %1002 = vmatprep.subr.mxu0 0.0
        %1003 = vmatpush2.msra.mxu0 0.0
        %1004 = vmatprep.subr.mxu0 0.0
        %1005 = vmatpush2.msra.mxu0 0.0
        %1006 = vmatprep.subr.mxu0 0.0
        %1007 = vmatpush2.msra.mxu0 0.0
        %1008 = vmatprep.subr.mxu0 0.0
        %1009 = vmatpush2.msra.mxu0 0.0
        %1010 = vmatprep.subr.mxu0 0.0
        %1011 = vmatpush2.msra.mxu0 0.0
        %1012 = vmatprep.subr.mxu0 0.0
        %1013 = vmatpush2.msra.mxu0 0.0
        %1014 = vmatprep.subr.mxu0 0.0
        %1015 = vmatpush2.msra.mxu0 0.0
        %1016 = vmatprep.subr.mxu0 0.0
        %1017 = vmatpush2.msra.mxu0 0.0
        %1018 = vmatprep.subr.mxu0 0.0
        %1019 = vmatpush2.msra.mxu0 0.0
        %1020 = vmatprep.mubr.f32.mxu0 0.0
        %1021 = vmatmul.mubr.f32.gmra.mxu0 %v454
        %v1022 = vpop.f32.mrf.mxu0
        %v1023 = vadd.f32 %v392, %v1022
        %v1024 = vpop.f32.mrf.mxu0
        %v1025 = vadd.f32 %v396, %v1024
        %1026 = vmatprep.mubr.f32.mxu0 0.0
        %1027 = vmatmul.mubr.f32.gmra.mxu0 %v457
        %v1028 = vpop.f32.mrf.mxu0
        %v1029 = vadd.f32 %v392, %v1028
        %v1030 = vpop.f32.mrf.mxu0
        %v1031 = vadd.f32 %v396, %v1030
        %1032 = vmatprep.mubr.f32.mxu0 0.0
        %1033 = vmatmul.mubr.f32.gmra.mxu0 %v460
        %v1034 = vpop.f32.mrf.mxu0
        %v1035 = vadd.f32 %v392, %v1034
        %v1036 = vpop.f32.mrf.mxu0
        %v1037 = vadd.f32 %v396, %v1036
        %1038 = vmatprep.mubr.f32.mxu0 0.0
        %1039 = vmatmul.mubr.f32.gmra.mxu0 %v463
        %v1040 = vpop.f32.mrf.mxu0
        %v1041 = vadd.f32 %v392, %v1040
        %v1042 = vpop.f32.mrf.mxu0
        %v1043 = vadd.f32 %v396, %v1042
        %1044 = vmatprep.mubr.f32.mxu0 0.0
        %1045 = vmatmul.mubr.f32.gmra.mxu0 %v466
        %v1046 = vpop.f32.mrf.mxu0
        %v1047 = vadd.f32 %v392, %v1046
        %v1048 = vpop.f32.mrf.mxu0
        %v1049 = vadd.f32 %v396, %v1048
        %1050 = vmatprep.mubr.f32.mxu0 0.0
        %1051 = vmatmul.mubr.f32.gmra.mxu0 %v469
        %v1052 = vpop.f32.mrf.mxu0
        %v1053 = vadd.f32 %v392, %v1052
        %v1054 = vpop.f32.mrf.mxu0
        %v1055 = vadd.f32 %v396, %v1054
        %1056 = vmatprep.mubr.f32.mxu0 0.0
        %1057 = vmatmul.mubr.f32.gmra.mxu0 %v472
        %v1058 = vpop.f32.mrf.mxu0
        %v1059 = vadd.f32 %v392, %v1058
        %v1060 = vpop.f32.mrf.mxu0
        %v1061 = vadd.f32 %v396, %v1060
        %1062 = vmatprep.mubr.f32.mxu0 0.0
        %1063 = vmatmul.mubr.f32.gmra.mxu0 %v475
        %v1064 = vpop.f32.mrf.mxu0
        %v1065 = vadd.f32 %v392, %v1064
        %v1066 = vpop.f32.mrf.mxu0
        %v1067 = vadd.f32 %v396, %v1066
        %1068 = vmatprep.mubr.f32.mxu0 0.0
        %1069 = vmatmul.mubr.f32.gmra.mxu0 %v478
        %v1070 = vpop.f32.mrf.mxu0
        %v1071 = vadd.f32 %v392, %v1070
        %v1072 = vpop.f32.mrf.mxu0
        %v1073 = vadd.f32 %v396, %v1072
        %1074 = vdwg.mxu0
        %1075 = vmatprep.subr.mxu0 0.0
        %1076 = vmatpush1.msra.mxu0 0.0
        %1077 = vmatprep.subr.mxu0 0.0
        %1078 = vmatpush1.msra.mxu0 0.0
        %1079 = vmatprep.subr.mxu0 0.0
        %1080 = vmatpush1.msra.mxu0 0.0
        %1081 = vmatprep.subr.mxu0 0.0
        %1082 = vmatpush1.msra.mxu0 0.0
        %1083 = vmatprep.subr.mxu0 0.0
        %1084 = vmatpush1.msra.mxu0 0.0
        %1085 = vmatprep.subr.mxu0 0.0
        %1086 = vmatpush1.msra.mxu0 0.0
        %1087 = vmatprep.subr.mxu0 0.0
        %1088 = vmatpush1.msra.mxu0 0.0
        %1089 = vmatprep.subr.mxu0 0.0
        %1090 = vmatpush1.msra.mxu0 0.0
        %1091 = vmatprep.subr.mxu0 0.0
        %1092 = vmatpush1.msra.mxu0 0.0
        %1093 = vmatprep.subr.mxu0 0.0
        %1094 = vmatpush1.msra.mxu0 0.0
        %1095 = vmatprep.subr.mxu0 0.0
        %1096 = vmatpush1.msra.mxu0 0.0
        %1097 = vmatprep.subr.mxu0 0.0
        %1098 = vmatpush1.msra.mxu0 0.0
        %1099 = vmatprep.subr.mxu0 %v334
        %1100 = vmatpush1.msra.mxu0 %v333
        %1101 = vmatprep.subr.mxu0 %v315
        %1102 = vmatpush1.msra.mxu0 %v314
        %1103 = vmatprep.subr.mxu0 %v296
        %1104 = vmatpush1.msra.mxu0 %v295
        %1105 = vmatprep.subr.mxu0 %v277
        %1106 = vmatpush1.msra.mxu0 %v276
        %1107 = vmatprep.subr.mxu0 0.0
        %1108 = vmatpush2.msra.mxu0 0.0
        %1109 = vmatprep.subr.mxu0 0.0
        %1110 = vmatpush2.msra.mxu0 0.0
        %1111 = vmatprep.subr.mxu0 0.0
        %1112 = vmatpush2.msra.mxu0 0.0
        %1113 = vmatprep.subr.mxu0 0.0
        %1114 = vmatpush2.msra.mxu0 0.0
        %1115 = vmatprep.subr.mxu0 0.0
        %1116 = vmatpush2.msra.mxu0 0.0
        %1117 = vmatprep.subr.mxu0 0.0
        %1118 = vmatpush2.msra.mxu0 0.0
        %1119 = vmatprep.subr.mxu0 0.0
        %1120 = vmatpush2.msra.mxu0 0.0
        %1121 = vmatprep.subr.mxu0 0.0
        %1122 = vmatpush2.msra.mxu0 0.0
        %1123 = vmatprep.subr.mxu0 0.0
        %1124 = vmatpush2.msra.mxu0 0.0
        %1125 = vmatprep.subr.mxu0 0.0
        %1126 = vmatpush2.msra.mxu0 0.0
        %1127 = vmatprep.subr.mxu0 0.0
        %1128 = vmatpush2.msra.mxu0 0.0
        %1129 = vmatprep.subr.mxu0 0.0
        %1130 = vmatpush2.msra.mxu0 0.0
        %1131 = vmatprep.subr.mxu0 0.0
        %1132 = vmatpush2.msra.mxu0 0.0
        %1133 = vmatprep.subr.mxu0 0.0
        %1134 = vmatpush2.msra.mxu0 0.0
        %1135 = vmatprep.subr.mxu0 0.0
        %1136 = vmatpush2.msra.mxu0 0.0
        %1137 = vmatprep.subr.mxu0 0.0
        %1138 = vmatpush2.msra.mxu0 0.0
        %1139 = vmatprep.mubr.f32.mxu0 0.0
        %1140 = vmatmul.mubr.f32.gmra.mxu0 %v454
        %v1141 = vpop.f32.mrf.mxu0
        %v1142 = vadd.f32 %v400, %v1141
        %v1143 = vpop.f32.mrf.mxu0
        %v1144 = vadd.f32 %v404, %v1143
        %1145 = vmatprep.mubr.f32.mxu0 0.0
        %1146 = vmatmul.mubr.f32.gmra.mxu0 %v457
        %v1147 = vpop.f32.mrf.mxu0
        %v1148 = vadd.f32 %v400, %v1147
        %v1149 = vpop.f32.mrf.mxu0
        %v1150 = vadd.f32 %v404, %v1149
        %1151 = vmatprep.mubr.f32.mxu0 0.0
        %1152 = vmatmul.mubr.f32.gmra.mxu0 %v460
        %v1153 = vpop.f32.mrf.mxu0
        %v1154 = vadd.f32 %v400, %v1153
        %v1155 = vpop.f32.mrf.mxu0
        %v1156 = vadd.f32 %v404, %v1155
        %1157 = vmatprep.mubr.f32.mxu0 0.0
        %1158 = vmatmul.mubr.f32.gmra.mxu0 %v463
        %v1159 = vpop.f32.mrf.mxu0
        %v1160 = vadd.f32 %v400, %v1159
        %v1161 = vpop.f32.mrf.mxu0
        %v1162 = vadd.f32 %v404, %v1161
        %1163 = vmatprep.mubr.f32.mxu0 0.0
        %1164 = vmatmul.mubr.f32.gmra.mxu0 %v466
        %v1165 = vpop.f32.mrf.mxu0
        %v1166 = vadd.f32 %v400, %v1165
        %v1167 = vpop.f32.mrf.mxu0
        %v1168 = vadd.f32 %v404, %v1167
        %1169 = vmatprep.mubr.f32.mxu0 0.0
        %1170 = vmatmul.mubr.f32.gmra.mxu0 %v469
        %v1171 = vpop.f32.mrf.mxu0
        %v1172 = vadd.f32 %v400, %v1171
        %v1173 = vpop.f32.mrf.mxu0
        %v1174 = vadd.f32 %v404, %v1173
        %1175 = vmatprep.mubr.f32.mxu0 0.0
        %1176 = vmatmul.mubr.f32.gmra.mxu0 %v472
        %v1177 = vpop.f32.mrf.mxu0
        %v1178 = vadd.f32 %v400, %v1177
        %v1179 = vpop.f32.mrf.mxu0
        %v1180 = vadd.f32 %v404, %v1179
        %1181 = vmatprep.mubr.f32.mxu0 0.0
        %1182 = vmatmul.mubr.f32.gmra.mxu0 %v475
        %v1183 = vpop.f32.mrf.mxu0
        %v1184 = vadd.f32 %v400, %v1183
        %v1185 = vpop.f32.mrf.mxu0
        %v1186 = vadd.f32 %v404, %v1185
        %1187 = vmatprep.mubr.f32.mxu0 0.0
        %1188 = vmatmul.mubr.f32.gmra.mxu0 %v478
        %v1189 = vpop.f32.mrf.mxu0
        %v1190 = vadd.f32 %v400, %v1189
        %v1191 = vpop.f32.mrf.mxu0
        %v1192 = vadd.f32 %v404, %v1191
        %1193 = vdwg.mxu0
        %1194 = vmatprep.subr.mxu0 0.0
        %1195 = vmatpush1.msra.mxu0 0.0
        %1196 = vmatprep.subr.mxu0 0.0
        %1197 = vmatpush1.msra.mxu0 0.0
        %1198 = vmatprep.subr.mxu0 0.0
        %1199 = vmatpush1.msra.mxu0 0.0
        %1200 = vmatprep.subr.mxu0 0.0
        %1201 = vmatpush1.msra.mxu0 0.0
        %1202 = vmatprep.subr.mxu0 0.0
        %1203 = vmatpush1.msra.mxu0 0.0
        %1204 = vmatprep.subr.mxu0 0.0
        %1205 = vmatpush1.msra.mxu0 0.0
        %1206 = vmatprep.subr.mxu0 0.0
        %1207 = vmatpush1.msra.mxu0 0.0
        %1208 = vmatprep.subr.mxu0 0.0
        %1209 = vmatpush1.msra.mxu0 0.0
        %1210 = vmatprep.subr.mxu0 0.0
        %1211 = vmatpush1.msra.mxu0 0.0
        %1212 = vmatprep.subr.mxu0 0.0
        %1213 = vmatpush1.msra.mxu0 0.0
        %1214 = vmatprep.subr.mxu0 0.0
        %1215 = vmatpush1.msra.mxu0 0.0
        %1216 = vmatprep.subr.mxu0 0.0
        %1217 = vmatpush1.msra.mxu0 0.0
        %1218 = vmatprep.subr.mxu0 %v336
        %1219 = vmatpush1.msra.mxu0 %v335
        %1220 = vmatprep.subr.mxu0 %v317
        %1221 = vmatpush1.msra.mxu0 %v316
        %1222 = vmatprep.subr.mxu0 %v298
        %1223 = vmatpush1.msra.mxu0 %v297
        %1224 = vmatprep.subr.mxu0 %v279
        %1225 = vmatpush1.msra.mxu0 %v278
        %1226 = vmatprep.subr.mxu0 0.0
        %1227 = vmatpush2.msra.mxu0 0.0
        %1228 = vmatprep.subr.mxu0 0.0
        %1229 = vmatpush2.msra.mxu0 0.0
        %1230 = vmatprep.subr.mxu0 0.0
        %1231 = vmatpush2.msra.mxu0 0.0
        %1232 = vmatprep.subr.mxu0 0.0
        %1233 = vmatpush2.msra.mxu0 0.0
        %1234 = vmatprep.subr.mxu0 0.0
        %1235 = vmatpush2.msra.mxu0 0.0
        %1236 = vmatprep.subr.mxu0 0.0
        %1237 = vmatpush2.msra.mxu0 0.0
        %1238 = vmatprep.subr.mxu0 0.0
        %1239 = vmatpush2.msra.mxu0 0.0
        %1240 = vmatprep.subr.mxu0 0.0
        %1241 = vmatpush2.msra.mxu0 0.0
        %1242 = vmatprep.subr.mxu0 0.0
        %1243 = vmatpush2.msra.mxu0 0.0
        %1244 = vmatprep.subr.mxu0 0.0
        %1245 = vmatpush2.msra.mxu0 0.0
        %1246 = vmatprep.subr.mxu0 0.0
        %1247 = vmatpush2.msra.mxu0 0.0
        %1248 = vmatprep.subr.mxu0 0.0
        %1249 = vmatpush2.msra.mxu0 0.0
        %1250 = vmatprep.subr.mxu0 0.0
        %1251 = vmatpush2.msra.mxu0 0.0
        %1252 = vmatprep.subr.mxu0 0.0
        %1253 = vmatpush2.msra.mxu0 0.0
        %1254 = vmatprep.subr.mxu0 0.0
        %1255 = vmatpush2.msra.mxu0 0.0
        %1256 = vmatprep.subr.mxu0 0.0
        %1257 = vmatpush2.msra.mxu0 0.0
        %1258 = vmatprep.mubr.f32.mxu0 0.0
        %1259 = vmatmul.mubr.f32.gmra.mxu0 %v454
        %v1260 = vpop.f32.mrf.mxu0
        %v1261 = vadd.f32 %v408, %v1260
        %v1262 = vpop.f32.mrf.mxu0
        %v1263 = vadd.f32 %v412, %v1262
        %1264 = vmatprep.mubr.f32.mxu0 0.0
        %1265 = vmatmul.mubr.f32.gmra.mxu0 %v457
        %v1266 = vpop.f32.mrf.mxu0
        %v1267 = vadd.f32 %v408, %v1266
        %v1268 = vpop.f32.mrf.mxu0
        %v1269 = vadd.f32 %v412, %v1268
        %1270 = vmatprep.mubr.f32.mxu0 0.0
        %1271 = vmatmul.mubr.f32.gmra.mxu0 %v460
        %v1272 = vpop.f32.mrf.mxu0
        %v1273 = vadd.f32 %v408, %v1272
        %v1274 = vpop.f32.mrf.mxu0
        %v1275 = vadd.f32 %v412, %v1274
        %1276 = vmatprep.mubr.f32.mxu0 0.0
        %1277 = vmatmul.mubr.f32.gmra.mxu0 %v463
        %v1278 = vpop.f32.mrf.mxu0
        %v1279 = vadd.f32 %v408, %v1278
        %v1280 = vpop.f32.mrf.mxu0
        %v1281 = vadd.f32 %v412, %v1280
        %1282 = vmatprep.mubr.f32.mxu0 0.0
        %1283 = vmatmul.mubr.f32.gmra.mxu0 %v466
        %v1284 = vpop.f32.mrf.mxu0
        %v1285 = vadd.f32 %v408, %v1284
        %v1286 = vpop.f32.mrf.mxu0
        %v1287 = vadd.f32 %v412, %v1286
        %1288 = vmatprep.mubr.f32.mxu0 0.0
        %1289 = vmatmul.mubr.f32.gmra.mxu0 %v469
        %v1290 = vpop.f32.mrf.mxu0
        %v1291 = vadd.f32 %v408, %v1290
        %v1292 = vpop.f32.mrf.mxu0
        %v1293 = vadd.f32 %v412, %v1292
        %1294 = vmatprep.mubr.f32.mxu0 0.0
        %1295 = vmatmul.mubr.f32.gmra.mxu0 %v472
        %v1296 = vpop.f32.mrf.mxu0
        %v1297 = vadd.f32 %v408, %v1296
        %v1298 = vpop.f32.mrf.mxu0
        %v1299 = vadd.f32 %v412, %v1298
        %1300 = vmatprep.mubr.f32.mxu0 0.0
        %1301 = vmatmul.mubr.f32.gmra.mxu0 %v475
        %v1302 = vpop.f32.mrf.mxu0
        %v1303 = vadd.f32 %v408, %v1302
        %v1304 = vpop.f32.mrf.mxu0
        %v1305 = vadd.f32 %v412, %v1304
        %1306 = vmatprep.mubr.f32.mxu0 0.0
        %1307 = vmatmul.mubr.f32.gmra.mxu0 %v478
        %v1308 = vpop.f32.mrf.mxu0
        %v1309 = vadd.f32 %v408, %v1308
        %v1310 = vpop.f32.mrf.mxu0
        %v1311 = vadd.f32 %v412, %v1310
        %1312 = vdwg.mxu0
        %1313 = vmatprep.subr.mxu0 0.0
        %1314 = vmatpush1.msra.mxu0 0.0
        %1315 = vmatprep.subr.mxu0 0.0
        %1316 = vmatpush1.msra.mxu0 0.0
        %1317 = vmatprep.subr.mxu0 0.0
        %1318 = vmatpush1.msra.mxu0 0.0
        %1319 = vmatprep.subr.mxu0 0.0
        %1320 = vmatpush1.msra.mxu0 0.0
        %1321 = vmatprep.subr.mxu0 0.0
        %1322 = vmatpush1.msra.mxu0 0.0
        %1323 = vmatprep.subr.mxu0 0.0
        %1324 = vmatpush1.msra.mxu0 0.0
        %1325 = vmatprep.subr.mxu0 0.0
        %1326 = vmatpush1.msra.mxu0 0.0
        %1327 = vmatprep.subr.mxu0 0.0
        %1328 = vmatpush1.msra.mxu0 0.0
        %1329 = vmatprep.subr.mxu0 0.0
        %1330 = vmatpush1.msra.mxu0 0.0
        %1331 = vmatprep.subr.mxu0 0.0
        %1332 = vmatpush1.msra.mxu0 0.0
        %1333 = vmatprep.subr.mxu0 0.0
        %1334 = vmatpush1.msra.mxu0 0.0
        %1335 = vmatprep.subr.mxu0 0.0
        %1336 = vmatpush1.msra.mxu0 0.0
        %1337 = vmatprep.subr.mxu0 %v338
        %1338 = vmatpush1.msra.mxu0 %v337
        %1339 = vmatprep.subr.mxu0 %v319
        %1340 = vmatpush1.msra.mxu0 %v318
        %1341 = vmatprep.subr.mxu0 %v300
        %1342 = vmatpush1.msra.mxu0 %v299
        %1343 = vmatprep.subr.mxu0 %v281
        %1344 = vmatpush1.msra.mxu0 %v280
        %1345 = vmatprep.subr.mxu0 0.0
        %1346 = vmatpush2.msra.mxu0 0.0
        %1347 = vmatprep.subr.mxu0 0.0
        %1348 = vmatpush2.msra.mxu0 0.0
        %1349 = vmatprep.subr.mxu0 0.0
        %1350 = vmatpush2.msra.mxu0 0.0
        %1351 = vmatprep.subr.mxu0 0.0
        %1352 = vmatpush2.msra.mxu0 0.0
        %1353 = vmatprep.subr.mxu0 0.0
        %1354 = vmatpush2.msra.mxu0 0.0
        %1355 = vmatprep.subr.mxu0 0.0
        %1356 = vmatpush2.msra.mxu0 0.0
        %1357 = vmatprep.subr.mxu0 0.0
        %1358 = vmatpush2.msra.mxu0 0.0
        %1359 = vmatprep.subr.mxu0 0.0
        %1360 = vmatpush2.msra.mxu0 0.0
        %1361 = vmatprep.subr.mxu0 0.0
        %1362 = vmatpush2.msra.mxu0 0.0
        %1363 = vmatprep.subr.mxu0 0.0
        %1364 = vmatpush2.msra.mxu0 0.0
        %1365 = vmatprep.subr.mxu0 0.0
        %1366 = vmatpush2.msra.mxu0 0.0
        %1367 = vmatprep.subr.mxu0 0.0
        %1368 = vmatpush2.msra.mxu0 0.0
        %1369 = vmatprep.subr.mxu0 0.0
        %1370 = vmatpush2.msra.mxu0 0.0
        %1371 = vmatprep.subr.mxu0 0.0
        %1372 = vmatpush2.msra.mxu0 0.0
        %1373 = vmatprep.subr.mxu0 0.0
        %1374 = vmatpush2.msra.mxu0 0.0
        %1375 = vmatprep.subr.mxu0 0.0
        %1376 = vmatpush2.msra.mxu0 0.0
        %1377 = vmatprep.mubr.f32.mxu0 0.0
        %1378 = vmatmul.mubr.f32.gmra.mxu0 %v454
        %v1379 = vpop.f32.mrf.mxu0
        %v1380 = vadd.f32 %v416, %v1379
        %v1381 = vpop.f32.mrf.mxu0
        %v1382 = vadd.f32 %v420, %v1381
        %1383 = vmatprep.mubr.f32.mxu0 0.0
        %1384 = vmatmul.mubr.f32.gmra.mxu0 %v457
        %v1385 = vpop.f32.mrf.mxu0
        %v1386 = vadd.f32 %v416, %v1385
        %v1387 = vpop.f32.mrf.mxu0
        %v1388 = vadd.f32 %v420, %v1387
        %1389 = vmatprep.mubr.f32.mxu0 0.0
        %1390 = vmatmul.mubr.f32.gmra.mxu0 %v460
        %v1391 = vpop.f32.mrf.mxu0
        %v1392 = vadd.f32 %v416, %v1391
        %v1393 = vpop.f32.mrf.mxu0
        %v1394 = vadd.f32 %v420, %v1393
        %1395 = vmatprep.mubr.f32.mxu0 0.0
        %1396 = vmatmul.mubr.f32.gmra.mxu0 %v463
        %v1397 = vpop.f32.mrf.mxu0
        %v1398 = vadd.f32 %v416, %v1397
        %v1399 = vpop.f32.mrf.mxu0
        %v1400 = vadd.f32 %v420, %v1399
        %1401 = vmatprep.mubr.f32.mxu0 0.0
        %1402 = vmatmul.mubr.f32.gmra.mxu0 %v466
        %v1403 = vpop.f32.mrf.mxu0
        %v1404 = vadd.f32 %v416, %v1403
        %v1405 = vpop.f32.mrf.mxu0
        %v1406 = vadd.f32 %v420, %v1405
        %1407 = vmatprep.mubr.f32.mxu0 0.0
        %1408 = vmatmul.mubr.f32.gmra.mxu0 %v469
        %v1409 = vpop.f32.mrf.mxu0
        %v1410 = vadd.f32 %v416, %v1409
        %v1411 = vpop.f32.mrf.mxu0
        %v1412 = vadd.f32 %v420, %v1411
        %1413 = vmatprep.mubr.f32.mxu0 0.0
        %1414 = vmatmul.mubr.f32.gmra.mxu0 %v472
        %v1415 = vpop.f32.mrf.mxu0
        %v1416 = vadd.f32 %v416, %v1415
        %v1417 = vpop.f32.mrf.mxu0
        %v1418 = vadd.f32 %v420, %v1417
        %1419 = vmatprep.mubr.f32.mxu0 0.0
        %1420 = vmatmul.mubr.f32.gmra.mxu0 %v475
        %v1421 = vpop.f32.mrf.mxu0
        %v1422 = vadd.f32 %v416, %v1421
        %v1423 = vpop.f32.mrf.mxu0
        %v1424 = vadd.f32 %v420, %v1423
        %1425 = vmatprep.mubr.f32.mxu0 0.0
        %1426 = vmatmul.mubr.f32.gmra.mxu0 %v478
        %v1427 = vpop.f32.mrf.mxu0
        %v1428 = vadd.f32 %v416, %v1427
        %v1429 = vpop.f32.mrf.mxu0
        %v1430 = vadd.f32 %v420, %v1429
        %1431 = vdwg.mxu0
        %1432 = vmatprep.subr.mxu0 0.0
        %1433 = vmatpush1.msra.mxu0 0.0
        %1434 = vmatprep.subr.mxu0 0.0
        %1435 = vmatpush1.msra.mxu0 0.0
        %1436 = vmatprep.subr.mxu0 0.0
        %1437 = vmatpush1.msra.mxu0 0.0
        %1438 = vmatprep.subr.mxu0 0.0
        %1439 = vmatpush1.msra.mxu0 0.0
        %1440 = vmatprep.subr.mxu0 0.0
        %1441 = vmatpush1.msra.mxu0 0.0
        %1442 = vmatprep.subr.mxu0 0.0
        %1443 = vmatpush1.msra.mxu0 0.0
        %1444 = vmatprep.subr.mxu0 0.0
        %1445 = vmatpush1.msra.mxu0 0.0
        %1446 = vmatprep.subr.mxu0 0.0
        %1447 = vmatpush1.msra.mxu0 0.0
        %1448 = vmatprep.subr.mxu0 0.0
        %1449 = vmatpush1.msra.mxu0 0.0
        %1450 = vmatprep.subr.mxu0 0.0
        %1451 = vmatpush1.msra.mxu0 0.0
        %1452 = vmatprep.subr.mxu0 0.0
        %1453 = vmatpush1.msra.mxu0 0.0
        %1454 = vmatprep.subr.mxu0 0.0
        %1455 = vmatpush1.msra.mxu0 0.0
        %1456 = vmatprep.subr.mxu0 %v340
        %1457 = vmatpush1.msra.mxu0 %v339
        %1458 = vmatprep.subr.mxu0 %v321
        %1459 = vmatpush1.msra.mxu0 %v320
        %1460 = vmatprep.subr.mxu0 %v302
        %1461 = vmatpush1.msra.mxu0 %v301
        %1462 = vmatprep.subr.mxu0 %v283
        %1463 = vmatpush1.msra.mxu0 %v282
        %1464 = vmatprep.subr.mxu0 0.0
        %1465 = vmatpush2.msra.mxu0 0.0
        %1466 = vmatprep.subr.mxu0 0.0
        %1467 = vmatpush2.msra.mxu0 0.0
        %1468 = vmatprep.subr.mxu0 0.0
        %1469 = vmatpush2.msra.mxu0 0.0
        %1470 = vmatprep.subr.mxu0 0.0
        %1471 = vmatpush2.msra.mxu0 0.0
        %1472 = vmatprep.subr.mxu0 0.0
        %1473 = vmatpush2.msra.mxu0 0.0
        %1474 = vmatprep.subr.mxu0 0.0
        %1475 = vmatpush2.msra.mxu0 0.0
        %1476 = vmatprep.subr.mxu0 0.0
        %1477 = vmatpush2.msra.mxu0 0.0
        %1478 = vmatprep.subr.mxu0 0.0
        %1479 = vmatpush2.msra.mxu0 0.0
        %1480 = vmatprep.subr.mxu0 0.0
        %1481 = vmatpush2.msra.mxu0 0.0
        %1482 = vmatprep.subr.mxu0 0.0
        %1483 = vmatpush2.msra.mxu0 0.0
        %1484 = vmatprep.subr.mxu0 0.0
        %1485 = vmatpush2.msra.mxu0 0.0
        %1486 = vmatprep.subr.mxu0 0.0
        %1487 = vmatpush2.msra.mxu0 0.0
        %1488 = vmatprep.subr.mxu0 0.0
        %1489 = vmatpush2.msra.mxu0 0.0
        %1490 = vmatprep.subr.mxu0 0.0
        %1491 = vmatpush2.msra.mxu0 0.0
        %1492 = vmatprep.subr.mxu0 0.0
        %1493 = vmatpush2.msra.mxu0 0.0
        %1494 = vmatprep.subr.mxu0 0.0
        %1495 = vmatpush2.msra.mxu0 0.0
        %1496 = vmatprep.mubr.f32.mxu0 0.0
        %1497 = vmatmul.mubr.f32.gmra.mxu0 %v454
        %v1498 = vpop.f32.mrf.mxu0
        %v1499 = vadd.f32 %v424, %v1498
        %v1500 = vpop.f32.mrf.mxu0
        %v1501 = vadd.f32 %v428, %v1500
        %1502 = vmatprep.mubr.f32.mxu0 0.0
        %1503 = vmatmul.mubr.f32.gmra.mxu0 %v457
        %v1504 = vpop.f32.mrf.mxu0
        %v1505 = vadd.f32 %v424, %v1504
        %v1506 = vpop.f32.mrf.mxu0
        %v1507 = vadd.f32 %v428, %v1506
        %1508 = vmatprep.mubr.f32.mxu0 0.0
        %1509 = vmatmul.mubr.f32.gmra.mxu0 %v460
        %v1510 = vpop.f32.mrf.mxu0
        %v1511 = vadd.f32 %v424, %v1510
        %v1512 = vpop.f32.mrf.mxu0
        %v1513 = vadd.f32 %v428, %v1512
        %1514 = vmatprep.mubr.f32.mxu0 0.0
        %1515 = vmatmul.mubr.f32.gmra.mxu0 %v463
        %v1516 = vpop.f32.mrf.mxu0
        %v1517 = vadd.f32 %v424, %v1516
        %v1518 = vpop.f32.mrf.mxu0
        %v1519 = vadd.f32 %v428, %v1518
        %1520 = vmatprep.mubr.f32.mxu0 0.0
        %1521 = vmatmul.mubr.f32.gmra.mxu0 %v466
        %v1522 = vpop.f32.mrf.mxu0
        %v1523 = vadd.f32 %v424, %v1522
        %v1524 = vpop.f32.mrf.mxu0
        %v1525 = vadd.f32 %v428, %v1524
        %1526 = vmatprep.mubr.f32.mxu0 0.0
        %1527 = vmatmul.mubr.f32.gmra.mxu0 %v469
        %v1528 = vpop.f32.mrf.mxu0
        %v1529 = vadd.f32 %v424, %v1528
        %v1530 = vpop.f32.mrf.mxu0
        %v1531 = vadd.f32 %v428, %v1530
        %1532 = vmatprep.mubr.f32.mxu0 0.0
        %1533 = vmatmul.mubr.f32.gmra.mxu0 %v472
        %v1534 = vpop.f32.mrf.mxu0
        %v1535 = vadd.f32 %v424, %v1534
        %v1536 = vpop.f32.mrf.mxu0
        %v1537 = vadd.f32 %v428, %v1536
        %1538 = vmatprep.mubr.f32.mxu0 0.0
        %1539 = vmatmul.mubr.f32.gmra.mxu0 %v475
        %v1540 = vpop.f32.mrf.mxu0
        %v1541 = vadd.f32 %v424, %v1540
        %v1542 = vpop.f32.mrf.mxu0
        %v1543 = vadd.f32 %v428, %v1542
        %1544 = vmatprep.mubr.f32.mxu0 0.0
        %1545 = vmatmul.mubr.f32.gmra.mxu0 %v478
        %v1546 = vpop.f32.mrf.mxu0
        %v1547 = vadd.f32 %v424, %v1546
        %v1548 = vpop.f32.mrf.mxu0
        %v1549 = vadd.f32 %v428, %v1548
        %1550 = vdwg.mxu0
        %1551 = vmatprep.subr.mxu0 0.0
        %1552 = vmatpush1.msra.mxu0 0.0
        %1553 = vmatprep.subr.mxu0 0.0
        %1554 = vmatpush1.msra.mxu0 0.0
        %1555 = vmatprep.subr.mxu0 0.0
        %1556 = vmatpush1.msra.mxu0 0.0
        %1557 = vmatprep.subr.mxu0 0.0
        %1558 = vmatpush1.msra.mxu0 0.0
        %1559 = vmatprep.subr.mxu0 0.0
        %1560 = vmatpush1.msra.mxu0 0.0
        %1561 = vmatprep.subr.mxu0 0.0
        %1562 = vmatpush1.msra.mxu0 0.0
        %1563 = vmatprep.subr.mxu0 0.0
        %1564 = vmatpush1.msra.mxu0 0.0
        %1565 = vmatprep.subr.mxu0 0.0
        %1566 = vmatpush1.msra.mxu0 0.0
        %1567 = vmatprep.subr.mxu0 0.0
        %1568 = vmatpush1.msra.mxu0 0.0
        %1569 = vmatprep.subr.mxu0 0.0
        %1570 = vmatpush1.msra.mxu0 0.0
        %1571 = vmatprep.subr.mxu0 0.0
        %1572 = vmatpush1.msra.mxu0 0.0
        %1573 = vmatprep.subr.mxu0 0.0
        %1574 = vmatpush1.msra.mxu0 0.0
        %1575 = vmatprep.subr.mxu0 0.0
        %1576 = vmatpush1.msra.mxu0 %v341
        %1577 = vmatprep.subr.mxu0 0.0
        %1578 = vmatpush1.msra.mxu0 %v322
        %1579 = vmatprep.subr.mxu0 0.0
        %1580 = vmatpush1.msra.mxu0 %v303
        %1581 = vmatprep.subr.mxu0 0.0
        %1582 = vmatpush1.msra.mxu0 %v284
        %1583 = vmatprep.subr.mxu0 0.0
        %1584 = vmatpush2.msra.mxu0 0.0
        %1585 = vmatprep.subr.mxu0 0.0
        %1586 = vmatpush2.msra.mxu0 0.0
        %1587 = vmatprep.subr.mxu0 0.0
        %1588 = vmatpush2.msra.mxu0 0.0
        %1589 = vmatprep.subr.mxu0 0.0
        %1590 = vmatpush2.msra.mxu0 0.0
        %1591 = vmatprep.subr.mxu0 0.0
        %1592 = vmatpush2.msra.mxu0 0.0
        %1593 = vmatprep.subr.mxu0 0.0
        %1594 = vmatpush2.msra.mxu0 0.0
        %1595 = vmatprep.subr.mxu0 0.0
        %1596 = vmatpush2.msra.mxu0 0.0
        %1597 = vmatprep.subr.mxu0 0.0
        %1598 = vmatpush2.msra.mxu0 0.0
        %1599 = vmatprep.subr.mxu0 0.0
        %1600 = vmatpush2.msra.mxu0 0.0
        %1601 = vmatprep.subr.mxu0 0.0
        %1602 = vmatpush2.msra.mxu0 0.0
        %1603 = vmatprep.subr.mxu0 0.0
        %1604 = vmatpush2.msra.mxu0 0.0
        %1605 = vmatprep.subr.mxu0 0.0
        %1606 = vmatpush2.msra.mxu0 0.0
        %1607 = vmatprep.subr.mxu0 0.0
        %1608 = vmatpush2.msra.mxu0 0.0
        %1609 = vmatprep.subr.mxu0 0.0
        %1610 = vmatpush2.msra.mxu0 0.0
        %1611 = vmatprep.subr.mxu0 0.0
        %1612 = vmatpush2.msra.mxu0 0.0
        %1613 = vmatprep.subr.mxu0 0.0
        %1614 = vmatpush2.msra.mxu0 0.0
        %1615 = vmatprep.mubr.f32.mxu0 0.0
        %1616 = vmatmul.mubr.f32.gmra.mxu0 %v454
        %v1617 = vpop.f32.mrf.mxu0
        %v1618 = vadd.f32 %v432, %v1617
        %v1619 = vpop.f32.mrf.mxu0
        %1620 = vmatprep.mubr.f32.mxu0 0.0
        %1621 = vmatmul.mubr.f32.gmra.mxu0 %v457
        %v1622 = vpop.f32.mrf.mxu0
        %v1623 = vadd.f32 %v432, %v1622
        %v1624 = vpop.f32.mrf.mxu0
        %1625 = vmatprep.mubr.f32.mxu0 0.0
        %1626 = vmatmul.mubr.f32.gmra.mxu0 %v460
        %v1627 = vpop.f32.mrf.mxu0
        %v1628 = vadd.f32 %v432, %v1627
        %v1629 = vpop.f32.mrf.mxu0
        %1630 = vmatprep.mubr.f32.mxu0 0.0
        %1631 = vmatmul.mubr.f32.gmra.mxu0 %v463
        %v1632 = vpop.f32.mrf.mxu0
        %v1633 = vadd.f32 %v432, %v1632
        %v1634 = vpop.f32.mrf.mxu0
        %1635 = vmatprep.mubr.f32.mxu0 0.0
        %1636 = vmatmul.mubr.f32.gmra.mxu0 %v466
        %v1637 = vpop.f32.mrf.mxu0
        %v1638 = vadd.f32 %v432, %v1637
        %v1639 = vpop.f32.mrf.mxu0
        %1640 = vmatprep.mubr.f32.mxu0 0.0
        %1641 = vmatmul.mubr.f32.gmra.mxu0 %v469
        %v1642 = vpop.f32.mrf.mxu0
        %v1643 = vadd.f32 %v432, %v1642
        %v1644 = vpop.f32.mrf.mxu0
        %1645 = vmatprep.mubr.f32.mxu0 0.0
        %1646 = vmatmul.mubr.f32.gmra.mxu0 %v472
        %v1647 = vpop.f32.mrf.mxu0
        %v1648 = vadd.f32 %v432, %v1647
        %v1649 = vpop.f32.mrf.mxu0
        %1650 = vmatprep.mubr.f32.mxu0 0.0
        %1651 = vmatmul.mubr.f32.gmra.mxu0 %v475
        %v1652 = vpop.f32.mrf.mxu0
        %v1653 = vadd.f32 %v432, %v1652
        %v1654 = vpop.f32.mrf.mxu0
        %1655 = vmatprep.mubr.f32.mxu0 0.0
        %1656 = vmatmul.mubr.f32.gmra.mxu0 %v478
        %v1657 = vpop.f32.mrf.mxu0
        %v1658 = vadd.f32 %v432, %v1657
        %v1659 = vpop.f32.mrf.mxu0
        %1660 = vdwg.mxu0
        %1661 = vst [vmem:[%s222] sm:$0xff] %v547
        %1662 = vst [vmem:[%s222 + $0x8] sm:$0xff] %v549
        %1663 = vst [vmem:[%s222 + $0x10] sm:$0xff] %v666
        %1664 = vst [vmem:[%s222 + $0x18] sm:$0xff] %v668
        %1665 = vst [vmem:[%s222 + $0x20] sm:$0xff] %v785
        %1666 = vst [vmem:[%s222 + $0x28] sm:$0xff] %v787
        %1667 = vst [vmem:[%s222 + $0x30] sm:$0xff] %v904
        %1668 = vst [vmem:[%s222 + $0x38] sm:$0xff] %v906
        %1669 = vst [vmem:[%s222 + $0x40] sm:$0xff] %v1023
        %1670 = vst [vmem:[%s222 + $0x48] sm:$0xff] %v1025
        %1671 = vst [vmem:[%s222 + $0x50] sm:$0xff] %v1142
        %1672 = vst [vmem:[%s222 + $0x58] sm:$0xff] %v1144
        %1673 = vst [vmem:[%s222 + $0x60] sm:$0xff] %v1261
        %1674 = vst [vmem:[%s222 + $0x68] sm:$0xff] %v1263
        %1675 = vst [vmem:[%s222 + $0x70] sm:$0xff] %v1380
        %1676 = vst [vmem:[%s222 + $0x78] sm:$0xff] %v1382
        %1677 = vst [vmem:[%s222 + $0x80] sm:$0xff] %v1499
        %1678 = vst [vmem:[%s222 + $0x88] sm:$0xff] %v1501
        %1679 = vst [vmem:[%s222 + $0x90] sm:$0xff] %v1618
        %1680 = vst [vmem:[%s222 + $0x98] sm:$0xff] %v553
        %1681 = vst [vmem:[%s222 + $0xa0] sm:$0xff] %v555
        %1682 = vst [vmem:[%s222 + $0xa8] sm:$0xff] %v672
        %1683 = vst [vmem:[%s222 + $0xb0] sm:$0xff] %v674
        %1684 = vst [vmem:[%s222 + $0xb8] sm:$0xff] %v791
        %1685 = vst [vmem:[%s222 + $0xc0] sm:$0xff] %v793
        %1686 = vst [vmem:[%s222 + $0xc8] sm:$0xff] %v910
        %1687 = vst [vmem:[%s222 + $0xd0] sm:$0xff] %v912
        %1688 = vst [vmem:[%s222 + $0xd8] sm:$0xff] %v1029
        %1689 = vst [vmem:[%s222 + $0xe0] sm:$0xff] %v1031
        %1690 = vst [vmem:[%s222 + $0xe8] sm:$0xff] %v1148
        %1691 = vst [vmem:[%s222 + $0xf0] sm:$0xff] %v1150
        %1692 = vst [vmem:[%s222 + $0xf8] sm:$0xff] %v1267
        %1693 = vst [vmem:[%s222 + $0x100] sm:$0xff] %v1269
        %1694 = vst [vmem:[%s222 + $0x108] sm:$0xff] %v1386
        %1695 = vst [vmem:[%s222 + $0x110] sm:$0xff] %v1388
        %1696 = vst [vmem:[%s222 + $0x118] sm:$0xff] %v1505
        %1697 = vst [vmem:[%s222 + $0x120] sm:$0xff] %v1507
        %1698 = vst [vmem:[%s222 + $0x128] sm:$0xff] %v1623
        %1699 = vst [vmem:[%s222 + $0x130] sm:$0xff] %v559
        %1700 = vst [vmem:[%s222 + $0x138] sm:$0xff] %v561
        %1701 = vst [vmem:[%s222 + $0x140] sm:$0xff] %v678
        %1702 = vst [vmem:[%s222 + $0x148] sm:$0xff] %v680
        %1703 = vst [vmem:[%s222 + $0x150] sm:$0xff] %v797
        %1704 = vst [vmem:[%s222 + $0x158] sm:$0xff] %v799
        %1705 = vst [vmem:[%s222 + $0x160] sm:$0xff] %v916
        %1706 = vst [vmem:[%s222 + $0x168] sm:$0xff] %v918
        %1707 = vst [vmem:[%s222 + $0x170] sm:$0xff] %v1035
        %1708 = vst [vmem:[%s222 + $0x178] sm:$0xff] %v1037
        %1709 = vst [vmem:[%s222 + $0x180] sm:$0xff] %v1154
        %1710 = vst [vmem:[%s222 + $0x188] sm:$0xff] %v1156
        %1711 = vst [vmem:[%s222 + $0x190] sm:$0xff] %v1273
        %1712 = vst [vmem:[%s222 + $0x198] sm:$0xff] %v1275
        %1713 = vst [vmem:[%s222 + $0x1a0] sm:$0xff] %v1392
        %1714 = vst [vmem:[%s222 + $0x1a8] sm:$0xff] %v1394
        %1715 = vst [vmem:[%s222 + $0x1b0] sm:$0xff] %v1511
        %1716 = vst [vmem:[%s222 + $0x1b8] sm:$0xff] %v1513
        %1717 = vst [vmem:[%s222 + $0x1c0] sm:$0xff] %v1628
        %1718 = vst [vmem:[%s222 + $0x1c8] sm:$0xff] %v565
        %1719 = vst [vmem:[%s222 + $0x1d0] sm:$0xff] %v567
        %1720 = vst [vmem:[%s222 + $0x1d8] sm:$0xff] %v684
        %1721 = vst [vmem:[%s222 + $0x1e0] sm:$0xff] %v686
        %1722 = vst [vmem:[%s222 + $0x1e8] sm:$0xff] %v803
        %1723 = vst [vmem:[%s222 + $0x1f0] sm:$0xff] %v805
        %1724 = vst [vmem:[%s222 + $0x1f8] sm:$0xff] %v922
        %1725 = vst [vmem:[%s222 + $0x200] sm:$0xff] %v924
        %1726 = vst [vmem:[%s222 + $0x208] sm:$0xff] %v1041
        %1727 = vst [vmem:[%s222 + $0x210] sm:$0xff] %v1043
        %1728 = vst [vmem:[%s222 + $0x218] sm:$0xff] %v1160
        %1729 = vst [vmem:[%s222 + $0x220] sm:$0xff] %v1162
        %1730 = vst [vmem:[%s222 + $0x228] sm:$0xff] %v1279
        %1731 = vst [vmem:[%s222 + $0x230] sm:$0xff] %v1281
        %1732 = vst [vmem:[%s222 + $0x238] sm:$0xff] %v1398
        %1733 = vst [vmem:[%s222 + $0x240] sm:$0xff] %v1400
        %1734 = vst [vmem:[%s222 + $0x248] sm:$0xff] %v1517
        %1735 = vst [vmem:[%s222 + $0x250] sm:$0xff] %v1519
        %1736 = vst [vmem:[%s222 + $0x258] sm:$0xff] %v1633
        %1737 = vst [vmem:[%s222 + $0x260] sm:$0xff] %v571
        %1738 = vst [vmem:[%s222 + $0x268] sm:$0xff] %v573
        %1739 = vst [vmem:[%s222 + $0x270] sm:$0xff] %v690
        %1740 = vst [vmem:[%s222 + $0x278] sm:$0xff] %v692
        %1741 = vst [vmem:[%s222 + $0x280] sm:$0xff] %v809
        %1742 = vst [vmem:[%s222 + $0x288] sm:$0xff] %v811
        %1743 = vst [vmem:[%s222 + $0x290] sm:$0xff] %v928
        %1744 = vst [vmem:[%s222 + $0x298] sm:$0xff] %v930
        %1745 = vst [vmem:[%s222 + $0x2a0] sm:$0xff] %v1047
        %1746 = vst [vmem:[%s222 + $0x2a8] sm:$0xff] %v1049
        %1747 = vst [vmem:[%s222 + $0x2b0] sm:$0xff] %v1166
        %1748 = vst [vmem:[%s222 + $0x2b8] sm:$0xff] %v1168
        %1749 = vst [vmem:[%s222 + $0x2c0] sm:$0xff] %v1285
        %1750 = vst [vmem:[%s222 + $0x2c8] sm:$0xff] %v1287
        %1751 = vst [vmem:[%s222 + $0x2d0] sm:$0xff] %v1404
        %1752 = vst [vmem:[%s222 + $0x2d8] sm:$0xff] %v1406
        %1753 = vst [vmem:[%s222 + $0x2e0] sm:$0xff] %v1523
        %1754 = vst [vmem:[%s222 + $0x2e8] sm:$0xff] %v1525
        %1755 = vst [vmem:[%s222 + $0x2f0] sm:$0xff] %v1638
        %1756 = vst [vmem:[%s222 + $0x2f8] sm:$0xff] %v577
        %1757 = vst [vmem:[%s222 + $0x300] sm:$0xff] %v579
        %1758 = vst [vmem:[%s222 + $0x308] sm:$0xff] %v696
        %1759 = vst [vmem:[%s222 + $0x310] sm:$0xff] %v698
        %1760 = vst [vmem:[%s222 + $0x318] sm:$0xff] %v815
        %1761 = vst [vmem:[%s222 + $0x320] sm:$0xff] %v817
        %1762 = vst [vmem:[%s222 + $0x328] sm:$0xff] %v934
        %1763 = vst [vmem:[%s222 + $0x330] sm:$0xff] %v936
        %1764 = vst [vmem:[%s222 + $0x338] sm:$0xff] %v1053
        %1765 = vst [vmem:[%s222 + $0x340] sm:$0xff] %v1055
        %1766 = vst [vmem:[%s222 + $0x348] sm:$0xff] %v1172
        %1767 = vst [vmem:[%s222 + $0x350] sm:$0xff] %v1174
        %1768 = vst [vmem:[%s222 + $0x358] sm:$0xff] %v1291
        %1769 = vst [vmem:[%s222 + $0x360] sm:$0xff] %v1293
        %1770 = vst [vmem:[%s222 + $0x368] sm:$0xff] %v1410
        %1771 = vst [vmem:[%s222 + $0x370] sm:$0xff] %v1412
        %1772 = vst [vmem:[%s222 + $0x378] sm:$0xff] %v1529
        %1773 = vst [vmem:[%s222 + $0x380] sm:$0xff] %v1531
        %1774 = vst [vmem:[%s222 + $0x388] sm:$0xff] %v1643
        %1775 = vst [vmem:[%s222 + $0x390] sm:$0xff] %v583
        %1776 = vst [vmem:[%s222 + $0x398] sm:$0xff] %v585
        %1777 = vst [vmem:[%s222 + $0x3a0] sm:$0xff] %v702
        %1778 = vst [vmem:[%s222 + $0x3a8] sm:$0xff] %v704
        %1779 = vst [vmem:[%s222 + $0x3b0] sm:$0xff] %v821
        %1780 = vst [vmem:[%s222 + $0x3b8] sm:$0xff] %v823
        %1781 = vst [vmem:[%s222 + $0x3c0] sm:$0xff] %v940
        %1782 = vst [vmem:[%s222 + $0x3c8] sm:$0xff] %v942
        %1783 = vst [vmem:[%s222 + $0x3d0] sm:$0xff] %v1059
        %1784 = vst [vmem:[%s222 + $0x3d8] sm:$0xff] %v1061
        %1785 = vst [vmem:[%s222 + $0x3e0] sm:$0xff] %v1178
        %1786 = vst [vmem:[%s222 + $0x3e8] sm:$0xff] %v1180
        %1787 = vst [vmem:[%s222 + $0x3f0] sm:$0xff] %v1297
        %1788 = vst [vmem:[%s222 + $0x3f8] sm:$0xff] %v1299
        %1789 = vst [vmem:[%s222 + $0x400] sm:$0xff] %v1416
        %1790 = vst [vmem:[%s222 + $0x408] sm:$0xff] %v1418
        %1791 = vst [vmem:[%s222 + $0x410] sm:$0xff] %v1535
        %1792 = vst [vmem:[%s222 + $0x418] sm:$0xff] %v1537
        %1793 = vst [vmem:[%s222 + $0x420] sm:$0xff] %v1648
        %1794 = vst [vmem:[%s222 + $0x428] sm:$0xff] %v589
        %1795 = vst [vmem:[%s222 + $0x430] sm:$0xff] %v591
        %1796 = vst [vmem:[%s222 + $0x438] sm:$0xff] %v708
        %1797 = vst [vmem:[%s222 + $0x440] sm:$0xff] %v710
        %1798 = vst [vmem:[%s222 + $0x448] sm:$0xff] %v827
        %1799 = vst [vmem:[%s222 + $0x450] sm:$0xff] %v829
        %1800 = vst [vmem:[%s222 + $0x458] sm:$0xff] %v946
        %1801 = vst [vmem:[%s222 + $0x460] sm:$0xff] %v948
        %1802 = vst [vmem:[%s222 + $0x468] sm:$0xff] %v1065
        %1803 = vst [vmem:[%s222 + $0x470] sm:$0xff] %v1067
        %1804 = vst [vmem:[%s222 + $0x478] sm:$0xff] %v1184
        %1805 = vst [vmem:[%s222 + $0x480] sm:$0xff] %v1186
        %1806 = vst [vmem:[%s222 + $0x488] sm:$0xff] %v1303
        %1807 = vst [vmem:[%s222 + $0x490] sm:$0xff] %v1305
        %1808 = vst [vmem:[%s222 + $0x498] sm:$0xff] %v1422
        %1809 = vst [vmem:[%s222 + $0x4a0] sm:$0xff] %v1424
        %1810 = vst [vmem:[%s222 + $0x4a8] sm:$0xff] %v1541
        %1811 = vst [vmem:[%s222 + $0x4b0] sm:$0xff] %v1543
        %1812 = vst [vmem:[%s222 + $0x4b8] sm:$0xff] %v1653
        %1813 = vst [vmem:[%s222 + $0x4c0] sm:$0xff] %v595
        %1814 = vst [vmem:[%s222 + $0x4c8] sm:$0xff] %v597
        %1815 = vst [vmem:[%s222 + $0x4d0] sm:$0xff] %v714
        %1816 = vst [vmem:[%s222 + $0x4d8] sm:$0xff] %v716
        %1817 = vst [vmem:[%s222 + $0x4e0] sm:$0xff] %v833
        %1818 = vst [vmem:[%s222 + $0x4e8] sm:$0xff] %v835
        %1819 = vst [vmem:[%s222 + $0x4f0] sm:$0xff] %v952
        %1820 = vst [vmem:[%s222 + $0x4f8] sm:$0xff] %v954
        %1821 = vst [vmem:[%s222 + $0x500] sm:$0xff] %v1071
        %1822 = vst [vmem:[%s222 + $0x508] sm:$0xff] %v1073
        %1823 = vst [vmem:[%s222 + $0x510] sm:$0xff] %v1190
        %1824 = vst [vmem:[%s222 + $0x518] sm:$0xff] %v1192
        %1825 = vst [vmem:[%s222 + $0x520] sm:$0xff] %v1309
        %1826 = vst [vmem:[%s222 + $0x528] sm:$0xff] %v1311
        %1827 = vst [vmem:[%s222 + $0x530] sm:$0xff] %v1428
        %1828 = vst [vmem:[%s222 + $0x538] sm:$0xff] %v1430
        %1829 = vst [vmem:[%s222 + $0x540] sm:$0xff] %v1547
        %1830 = vst [vmem:[%s222 + $0x548] sm:$0xff] %v1549
        %1831 = vst [vmem:[%s222 + $0x550] sm:$0xff] %v1658
        %s1832 = sand.u32 %s101, 1
        %s1833 = sand.u32 %s101, 1
        %s1834 = smul.addr %s1833, 1368
        %s1835 = scalar_lea.vmem [#allocation6], %s1834
        // Predicated region
        $region41: #{cnn_lstm_forward.3} parent=31 // pred_check
          %p1836 = pneg %p111
        $region42: #{cnn_lstm_forward.3} parent=31 // pred_check_branch
          %1838 = sbr.rel (%p1836) target = $region44
        $region43: #{cnn_lstm_forward.3} parent=31 // pred_region
          %s1839 = smul.u32 19, %s20
          %s1840 = smul.addr %s1839, 8
          %s1841 = scalar_lea.vmem %s3, %s1840
          // Predicated region
          $region45: #{cnn_lstm_forward.3} parent=43 // pred_check
            _
          $region46: #{cnn_lstm_forward.3} parent=43 // pred_check_branch
            %1843 = sbr.rel (0) target = $region48
          $region47: #{cnn_lstm_forward.3} parent=43 // pred_region
            // Predicated region
            $region49: #{cnn_lstm_forward.3} parent=47 // pred_check
              _
            $region50: #{cnn_lstm_forward.3} parent=47 // pred_check_branch
              %1845 = sbr.rel (0) target = $region52
            $region51: #{cnn_lstm_forward.3} parent=47 // pred_region
              loop: start=0, step=1, limit=1
              $region53: #{cnn_lstm_forward.3} parent=51 // loop_pre_header
                _
              $region54: #{cnn_lstm_forward.3} parent=51 // loop_header
                %s1847 = sphi 0, %s1851
                %p1848 = scmp.ge.s32.totalorder %s1847, 1
                %s1852 = sphi %s1835, %s1835
                %s1853 = sphi %s1841, %s1841
              $region55: #{cnn_lstm_forward.3} parent=51 // loop_header_branch
                %1850 = sbr.rel (%p1848) target = $region59
              $region56: #{cnn_lstm_forward.3} parent=51 // loop_body
                %v1854 = vld [vmem:[%s1852] sm:$0xff]
                %1855 = vst [vmem:[%s1853] sm:$0xff] %v1854
                %v1856 = vld [vmem:[%s1852 + $0x8] sm:$0xff]
                %1857 = vst [vmem:[%s1853 + $0x8] sm:$0xff] %v1856
                %v1858 = vld [vmem:[%s1852 + $0x10] sm:$0xff]
                %1859 = vst [vmem:[%s1853 + $0x10] sm:$0xff] %v1858
                %v1860 = vld [vmem:[%s1852 + $0x18] sm:$0xff]
                %1861 = vst [vmem:[%s1853 + $0x18] sm:$0xff] %v1860
                %v1862 = vld [vmem:[%s1852 + $0x20] sm:$0xff]
                %1863 = vst [vmem:[%s1853 + $0x20] sm:$0xff] %v1862
                %v1864 = vld [vmem:[%s1852 + $0x28] sm:$0xff]
                %1865 = vst [vmem:[%s1853 + $0x28] sm:$0xff] %v1864
                %v1866 = vld [vmem:[%s1852 + $0x30] sm:$0xff]
                %1867 = vst [vmem:[%s1853 + $0x30] sm:$0xff] %v1866
                %v1868 = vld [vmem:[%s1852 + $0x38] sm:$0xff]
                %1869 = vst [vmem:[%s1853 + $0x38] sm:$0xff] %v1868
                %v1870 = vld [vmem:[%s1852 + $0x40] sm:$0xff]
                %1871 = vst [vmem:[%s1853 + $0x40] sm:$0xff] %v1870
                %v1872 = vld [vmem:[%s1852 + $0x48] sm:$0xff]
                %1873 = vst [vmem:[%s1853 + $0x48] sm:$0xff] %v1872
                %v1874 = vld [vmem:[%s1852 + $0x50] sm:$0xff]
                %1875 = vst [vmem:[%s1853 + $0x50] sm:$0xff] %v1874
                %v1876 = vld [vmem:[%s1852 + $0x58] sm:$0xff]
                %1877 = vst [vmem:[%s1853 + $0x58] sm:$0xff] %v1876
                %v1878 = vld [vmem:[%s1852 + $0x60] sm:$0xff]
                %1879 = vst [vmem:[%s1853 + $0x60] sm:$0xff] %v1878
                %v1880 = vld [vmem:[%s1852 + $0x68] sm:$0xff]
                %1881 = vst [vmem:[%s1853 + $0x68] sm:$0xff] %v1880
                %v1882 = vld [vmem:[%s1852 + $0x70] sm:$0xff]
                %1883 = vst [vmem:[%s1853 + $0x70] sm:$0xff] %v1882
                %v1884 = vld [vmem:[%s1852 + $0x78] sm:$0xff]
                %1885 = vst [vmem:[%s1853 + $0x78] sm:$0xff] %v1884
                %v1886 = vld [vmem:[%s1852 + $0x80] sm:$0xff]
                %1887 = vst [vmem:[%s1853 + $0x80] sm:$0xff] %v1886
                %v1888 = vld [vmem:[%s1852 + $0x88] sm:$0xff]
                %1889 = vst [vmem:[%s1853 + $0x88] sm:$0xff] %v1888
                %v1890 = vld [vmem:[%s1852 + $0x90] sm:$0xff]
                %1891 = vst [vmem:[%s1853 + $0x90] sm:$0xff] %v1890
                %v1892 = vld [vmem:[%s1852 + $0x98] sm:$0xff]
                %1893 = vst [vmem:[%s1853 + $0x390] sm:$0xff] %v1892
                %v1894 = vld [vmem:[%s1852 + $0xa0] sm:$0xff]
                %1895 = vst [vmem:[%s1853 + $0x398] sm:$0xff] %v1894
                %v1896 = vld [vmem:[%s1852 + $0xa8] sm:$0xff]
                %1897 = vst [vmem:[%s1853 + $0x3a0] sm:$0xff] %v1896
                %v1898 = vld [vmem:[%s1852 + $0xb0] sm:$0xff]
                %1899 = vst [vmem:[%s1853 + $0x3a8] sm:$0xff] %v1898
                %v1900 = vld [vmem:[%s1852 + $0xb8] sm:$0xff]
                %1901 = vst [vmem:[%s1853 + $0x3b0] sm:$0xff] %v1900
                %v1902 = vld [vmem:[%s1852 + $0xc0] sm:$0xff]
                %1903 = vst [vmem:[%s1853 + $0x3b8] sm:$0xff] %v1902
                %v1904 = vld [vmem:[%s1852 + $0xc8] sm:$0xff]
                %1905 = vst [vmem:[%s1853 + $0x3c0] sm:$0xff] %v1904
                %v1906 = vld [vmem:[%s1852 + $0xd0] sm:$0xff]
                %1907 = vst [vmem:[%s1853 + $0x3c8] sm:$0xff] %v1906
                %v1908 = vld [vmem:[%s1852 + $0xd8] sm:$0xff]
                %1909 = vst [vmem:[%s1853 + $0x3d0] sm:$0xff] %v1908
                %v1910 = vld [vmem:[%s1852 + $0xe0] sm:$0xff]
                %1911 = vst [vmem:[%s1853 + $0x3d8] sm:$0xff] %v1910
                %v1912 = vld [vmem:[%s1852 + $0xe8] sm:$0xff]
                %1913 = vst [vmem:[%s1853 + $0x3e0] sm:$0xff] %v1912
                %v1914 = vld [vmem:[%s1852 + $0xf0] sm:$0xff]
                %1915 = vst [vmem:[%s1853 + $0x3e8] sm:$0xff] %v1914
                %v1916 = vld [vmem:[%s1852 + $0xf8] sm:$0xff]
                %1917 = vst [vmem:[%s1853 + $0x3f0] sm:$0xff] %v1916
                %v1918 = vld [vmem:[%s1852 + $0x100] sm:$0xff]
                %1919 = vst [vmem:[%s1853 + $0x3f8] sm:$0xff] %v1918
                %v1920 = vld [vmem:[%s1852 + $0x108] sm:$0xff]
                %1921 = vst [vmem:[%s1853 + $0x400] sm:$0xff] %v1920
                %v1922 = vld [vmem:[%s1852 + $0x110] sm:$0xff]
                %1923 = vst [vmem:[%s1853 + $0x408] sm:$0xff] %v1922
                %v1924 = vld [vmem:[%s1852 + $0x118] sm:$0xff]
                %1925 = vst [vmem:[%s1853 + $0x410] sm:$0xff] %v1924
                %v1926 = vld [vmem:[%s1852 + $0x120] sm:$0xff]
                %1927 = vst [vmem:[%s1853 + $0x418] sm:$0xff] %v1926
                %v1928 = vld [vmem:[%s1852 + $0x128] sm:$0xff]
                %1929 = vst [vmem:[%s1853 + $0x420] sm:$0xff] %v1928
                %v1930 = vld [vmem:[%s1852 + $0x130] sm:$0xff]
                %1931 = vst [vmem:[%s1853 + $0x720] sm:$0xff] %v1930
                %v1932 = vld [vmem:[%s1852 + $0x138] sm:$0xff]
                %1933 = vst [vmem:[%s1853 + $0x728] sm:$0xff] %v1932
                %v1934 = vld [vmem:[%s1852 + $0x140] sm:$0xff]
                %1935 = vst [vmem:[%s1853 + $0x730] sm:$0xff] %v1934
                %v1936 = vld [vmem:[%s1852 + $0x148] sm:$0xff]
                %1937 = vst [vmem:[%s1853 + $0x738] sm:$0xff] %v1936
                %v1938 = vld [vmem:[%s1852 + $0x150] sm:$0xff]
                %1939 = vst [vmem:[%s1853 + $0x740] sm:$0xff] %v1938
                %v1940 = vld [vmem:[%s1852 + $0x158] sm:$0xff]
                %1941 = vst [vmem:[%s1853 + $0x748] sm:$0xff] %v1940
                %v1942 = vld [vmem:[%s1852 + $0x160] sm:$0xff]
                %1943 = vst [vmem:[%s1853 + $0x750] sm:$0xff] %v1942
                %v1944 = vld [vmem:[%s1852 + $0x168] sm:$0xff]
                %1945 = vst [vmem:[%s1853 + $0x758] sm:$0xff] %v1944
                %v1946 = vld [vmem:[%s1852 + $0x170] sm:$0xff]
                %1947 = vst [vmem:[%s1853 + $0x760] sm:$0xff] %v1946
                %v1948 = vld [vmem:[%s1852 + $0x178] sm:$0xff]
                %1949 = vst [vmem:[%s1853 + $0x768] sm:$0xff] %v1948
                %v1950 = vld [vmem:[%s1852 + $0x180] sm:$0xff]
                %1951 = vst [vmem:[%s1853 + $0x770] sm:$0xff] %v1950
                %v1952 = vld [vmem:[%s1852 + $0x188] sm:$0xff]
                %1953 = vst [vmem:[%s1853 + $0x778] sm:$0xff] %v1952
                %v1954 = vld [vmem:[%s1852 + $0x190] sm:$0xff]
                %1955 = vst [vmem:[%s1853 + $0x780] sm:$0xff] %v1954
                %v1956 = vld [vmem:[%s1852 + $0x198] sm:$0xff]
                %1957 = vst [vmem:[%s1853 + $0x788] sm:$0xff] %v1956
                %v1958 = vld [vmem:[%s1852 + $0x1a0] sm:$0xff]
                %1959 = vst [vmem:[%s1853 + $0x790] sm:$0xff] %v1958
                %v1960 = vld [vmem:[%s1852 + $0x1a8] sm:$0xff]
                %1961 = vst [vmem:[%s1853 + $0x798] sm:$0xff] %v1960
                %v1962 = vld [vmem:[%s1852 + $0x1b0] sm:$0xff]
                %1963 = vst [vmem:[%s1853 + $0x7a0] sm:$0xff] %v1962
                %v1964 = vld [vmem:[%s1852 + $0x1b8] sm:$0xff]
                %1965 = vst [vmem:[%s1853 + $0x7a8] sm:$0xff] %v1964
                %v1966 = vld [vmem:[%s1852 + $0x1c0] sm:$0xff]
                %1967 = vst [vmem:[%s1853 + $0x7b0] sm:$0xff] %v1966
                %v1968 = vld [vmem:[%s1852 + $0x1c8] sm:$0xff]
                %1969 = vst [vmem:[%s1853 + $0xab0] sm:$0xff] %v1968
                %v1970 = vld [vmem:[%s1852 + $0x1d0] sm:$0xff]
                %1971 = vst [vmem:[%s1853 + $0xab8] sm:$0xff] %v1970
                %v1972 = vld [vmem:[%s1852 + $0x1d8] sm:$0xff]
                %1973 = vst [vmem:[%s1853 + $0xac0] sm:$0xff] %v1972
                %v1974 = vld [vmem:[%s1852 + $0x1e0] sm:$0xff]
                %1975 = vst [vmem:[%s1853 + $0xac8] sm:$0xff] %v1974
                %v1976 = vld [vmem:[%s1852 + $0x1e8] sm:$0xff]
                %1977 = vst [vmem:[%s1853 + $0xad0] sm:$0xff] %v1976
                %v1978 = vld [vmem:[%s1852 + $0x1f0] sm:$0xff]
                %1979 = vst [vmem:[%s1853 + $0xad8] sm:$0xff] %v1978
                %v1980 = vld [vmem:[%s1852 + $0x1f8] sm:$0xff]
                %1981 = vst [vmem:[%s1853 + $0xae0] sm:$0xff] %v1980
                %v1982 = vld [vmem:[%s1852 + $0x200] sm:$0xff]
                %1983 = vst [vmem:[%s1853 + $0xae8] sm:$0xff] %v1982
                %v1984 = vld [vmem:[%s1852 + $0x208] sm:$0xff]
                %1985 = vst [vmem:[%s1853 + $0xaf0] sm:$0xff] %v1984
                %v1986 = vld [vmem:[%s1852 + $0x210] sm:$0xff]
                %1987 = vst [vmem:[%s1853 + $0xaf8] sm:$0xff] %v1986
                %v1988 = vld [vmem:[%s1852 + $0x218] sm:$0xff]
                %1989 = vst [vmem:[%s1853 + $0xb00] sm:$0xff] %v1988
                %v1990 = vld [vmem:[%s1852 + $0x220] sm:$0xff]
                %1991 = vst [vmem:[%s1853 + $0xb08] sm:$0xff] %v1990
                %v1992 = vld [vmem:[%s1852 + $0x228] sm:$0xff]
                %1993 = vst [vmem:[%s1853 + $0xb10] sm:$0xff] %v1992
                %v1994 = vld [vmem:[%s1852 + $0x230] sm:$0xff]
                %1995 = vst [vmem:[%s1853 + $0xb18] sm:$0xff] %v1994
                %v1996 = vld [vmem:[%s1852 + $0x238] sm:$0xff]
                %1997 = vst [vmem:[%s1853 + $0xb20] sm:$0xff] %v1996
                %v1998 = vld [vmem:[%s1852 + $0x240] sm:$0xff]
                %1999 = vst [vmem:[%s1853 + $0xb28] sm:$0xff] %v1998
                %v2000 = vld [vmem:[%s1852 + $0x248] sm:$0xff]
                %2001 = vst [vmem:[%s1853 + $0xb30] sm:$0xff] %v2000
                %v2002 = vld [vmem:[%s1852 + $0x250] sm:$0xff]
                %2003 = vst [vmem:[%s1853 + $0xb38] sm:$0xff] %v2002
                %v2004 = vld [vmem:[%s1852 + $0x258] sm:$0xff]
                %2005 = vst [vmem:[%s1853 + $0xb40] sm:$0xff] %v2004
                %v2006 = vld [vmem:[%s1852 + $0x260] sm:$0xff]
                %2007 = vst [vmem:[%s1853 + $0xe40] sm:$0xff] %v2006
                %v2008 = vld [vmem:[%s1852 + $0x268] sm:$0xff]
                %2009 = vst [vmem:[%s1853 + $0xe48] sm:$0xff] %v2008
                %v2010 = vld [vmem:[%s1852 + $0x270] sm:$0xff]
                %2011 = vst [vmem:[%s1853 + $0xe50] sm:$0xff] %v2010
                %v2012 = vld [vmem:[%s1852 + $0x278] sm:$0xff]
                %2013 = vst [vmem:[%s1853 + $0xe58] sm:$0xff] %v2012
                %v2014 = vld [vmem:[%s1852 + $0x280] sm:$0xff]
                %2015 = vst [vmem:[%s1853 + $0xe60] sm:$0xff] %v2014
                %v2016 = vld [vmem:[%s1852 + $0x288] sm:$0xff]
                %2017 = vst [vmem:[%s1853 + $0xe68] sm:$0xff] %v2016
                %v2018 = vld [vmem:[%s1852 + $0x290] sm:$0xff]
                %2019 = vst [vmem:[%s1853 + $0xe70] sm:$0xff] %v2018
                %v2020 = vld [vmem:[%s1852 + $0x298] sm:$0xff]
                %2021 = vst [vmem:[%s1853 + $0xe78] sm:$0xff] %v2020
                %v2022 = vld [vmem:[%s1852 + $0x2a0] sm:$0xff]
                %2023 = vst [vmem:[%s1853 + $0xe80] sm:$0xff] %v2022
                %v2024 = vld [vmem:[%s1852 + $0x2a8] sm:$0xff]
                %2025 = vst [vmem:[%s1853 + $0xe88] sm:$0xff] %v2024
                %v2026 = vld [vmem:[%s1852 + $0x2b0] sm:$0xff]
                %2027 = vst [vmem:[%s1853 + $0xe90] sm:$0xff] %v2026
                %v2028 = vld [vmem:[%s1852 + $0x2b8] sm:$0xff]
                %2029 = vst [vmem:[%s1853 + $0xe98] sm:$0xff] %v2028
                %v2030 = vld [vmem:[%s1852 + $0x2c0] sm:$0xff]
                %2031 = vst [vmem:[%s1853 + $0xea0] sm:$0xff] %v2030
                %v2032 = vld [vmem:[%s1852 + $0x2c8] sm:$0xff]
                %2033 = vst [vmem:[%s1853 + $0xea8] sm:$0xff] %v2032
                %v2034 = vld [vmem:[%s1852 + $0x2d0] sm:$0xff]
                %2035 = vst [vmem:[%s1853 + $0xeb0] sm:$0xff] %v2034
                %v2036 = vld [vmem:[%s1852 + $0x2d8] sm:$0xff]
                %2037 = vst [vmem:[%s1853 + $0xeb8] sm:$0xff] %v2036
                %v2038 = vld [vmem:[%s1852 + $0x2e0] sm:$0xff]
                %2039 = vst [vmem:[%s1853 + $0xec0] sm:$0xff] %v2038
                %v2040 = vld [vmem:[%s1852 + $0x2e8] sm:$0xff]
                %2041 = vst [vmem:[%s1853 + $0xec8] sm:$0xff] %v2040
                %v2042 = vld [vmem:[%s1852 + $0x2f0] sm:$0xff]
                %2043 = vst [vmem:[%s1853 + $0xed0] sm:$0xff] %v2042
                %v2044 = vld [vmem:[%s1852 + $0x2f8] sm:$0xff]
                %2045 = vst [vmem:[%s1853 + $0x11d0] sm:$0xff] %v2044
                %v2046 = vld [vmem:[%s1852 + $0x300] sm:$0xff]
                %2047 = vst [vmem:[%s1853 + $0x11d8] sm:$0xff] %v2046
                %v2048 = vld [vmem:[%s1852 + $0x308] sm:$0xff]
                %2049 = vst [vmem:[%s1853 + $0x11e0] sm:$0xff] %v2048
                %v2050 = vld [vmem:[%s1852 + $0x310] sm:$0xff]
                %2051 = vst [vmem:[%s1853 + $0x11e8] sm:$0xff] %v2050
                %v2052 = vld [vmem:[%s1852 + $0x318] sm:$0xff]
                %2053 = vst [vmem:[%s1853 + $0x11f0] sm:$0xff] %v2052
                %v2054 = vld [vmem:[%s1852 + $0x320] sm:$0xff]
                %2055 = vst [vmem:[%s1853 + $0x11f8] sm:$0xff] %v2054
                %v2056 = vld [vmem:[%s1852 + $0x328] sm:$0xff]
                %2057 = vst [vmem:[%s1853 + $0x1200] sm:$0xff] %v2056
                %v2058 = vld [vmem:[%s1852 + $0x330] sm:$0xff]
                %2059 = vst [vmem:[%s1853 + $0x1208] sm:$0xff] %v2058
                %v2060 = vld [vmem:[%s1852 + $0x338] sm:$0xff]
                %2061 = vst [vmem:[%s1853 + $0x1210] sm:$0xff] %v2060
                %v2062 = vld [vmem:[%s1852 + $0x340] sm:$0xff]
                %2063 = vst [vmem:[%s1853 + $0x1218] sm:$0xff] %v2062
                %v2064 = vld [vmem:[%s1852 + $0x348] sm:$0xff]
                %2065 = vst [vmem:[%s1853 + $0x1220] sm:$0xff] %v2064
                %v2066 = vld [vmem:[%s1852 + $0x350] sm:$0xff]
                %2067 = vst [vmem:[%s1853 + $0x1228] sm:$0xff] %v2066
                %v2068 = vld [vmem:[%s1852 + $0x358] sm:$0xff]
                %2069 = vst [vmem:[%s1853 + $0x1230] sm:$0xff] %v2068
                %v2070 = vld [vmem:[%s1852 + $0x360] sm:$0xff]
                %2071 = vst [vmem:[%s1853 + $0x1238] sm:$0xff] %v2070
                %v2072 = vld [vmem:[%s1852 + $0x368] sm:$0xff]
                %2073 = vst [vmem:[%s1853 + $0x1240] sm:$0xff] %v2072
                %v2074 = vld [vmem:[%s1852 + $0x370] sm:$0xff]
                %2075 = vst [vmem:[%s1853 + $0x1248] sm:$0xff] %v2074
                %v2076 = vld [vmem:[%s1852 + $0x378] sm:$0xff]
                %2077 = vst [vmem:[%s1853 + $0x1250] sm:$0xff] %v2076
                %v2078 = vld [vmem:[%s1852 + $0x380] sm:$0xff]
                %2079 = vst [vmem:[%s1853 + $0x1258] sm:$0xff] %v2078
                %v2080 = vld [vmem:[%s1852 + $0x388] sm:$0xff]
                %2081 = vst [vmem:[%s1853 + $0x1260] sm:$0xff] %v2080
                %v2082 = vld [vmem:[%s1852 + $0x390] sm:$0xff]
                %2083 = vst [vmem:[%s1853 + $0x1560] sm:$0xff] %v2082
                %v2084 = vld [vmem:[%s1852 + $0x398] sm:$0xff]
                %2085 = vst [vmem:[%s1853 + $0x1568] sm:$0xff] %v2084
                %v2086 = vld [vmem:[%s1852 + $0x3a0] sm:$0xff]
                %2087 = vst [vmem:[%s1853 + $0x1570] sm:$0xff] %v2086
                %v2088 = vld [vmem:[%s1852 + $0x3a8] sm:$0xff]
                %2089 = vst [vmem:[%s1853 + $0x1578] sm:$0xff] %v2088
                %v2090 = vld [vmem:[%s1852 + $0x3b0] sm:$0xff]
                %2091 = vst [vmem:[%s1853 + $0x1580] sm:$0xff] %v2090
                %v2092 = vld [vmem:[%s1852 + $0x3b8] sm:$0xff]
                %2093 = vst [vmem:[%s1853 + $0x1588] sm:$0xff] %v2092
                %v2094 = vld [vmem:[%s1852 + $0x3c0] sm:$0xff]
                %2095 = vst [vmem:[%s1853 + $0x1590] sm:$0xff] %v2094
                %v2096 = vld [vmem:[%s1852 + $0x3c8] sm:$0xff]
                %2097 = vst [vmem:[%s1853 + $0x1598] sm:$0xff] %v2096
                %v2098 = vld [vmem:[%s1852 + $0x3d0] sm:$0xff]
                %2099 = vst [vmem:[%s1853 + $0x15a0] sm:$0xff] %v2098
                %v2100 = vld [vmem:[%s1852 + $0x3d8] sm:$0xff]
                %2101 = vst [vmem:[%s1853 + $0x15a8] sm:$0xff] %v2100
                %v2102 = vld [vmem:[%s1852 + $0x3e0] sm:$0xff]
                %2103 = vst [vmem:[%s1853 + $0x15b0] sm:$0xff] %v2102
                %v2104 = vld [vmem:[%s1852 + $0x3e8] sm:$0xff]
                %2105 = vst [vmem:[%s1853 + $0x15b8] sm:$0xff] %v2104
                %v2106 = vld [vmem:[%s1852 + $0x3f0] sm:$0xff]
                %2107 = vst [vmem:[%s1853 + $0x15c0] sm:$0xff] %v2106
                %v2108 = vld [vmem:[%s1852 + $0x3f8] sm:$0xff]
                %2109 = vst [vmem:[%s1853 + $0x15c8] sm:$0xff] %v2108
                %v2110 = vld [vmem:[%s1852 + $0x400] sm:$0xff]
                %2111 = vst [vmem:[%s1853 + $0x15d0] sm:$0xff] %v2110
                %v2112 = vld [vmem:[%s1852 + $0x408] sm:$0xff]
                %2113 = vst [vmem:[%s1853 + $0x15d8] sm:$0xff] %v2112
                %v2114 = vld [vmem:[%s1852 + $0x410] sm:$0xff]
                %2115 = vst [vmem:[%s1853 + $0x15e0] sm:$0xff] %v2114
                %v2116 = vld [vmem:[%s1852 + $0x418] sm:$0xff]
                %2117 = vst [vmem:[%s1853 + $0x15e8] sm:$0xff] %v2116
                %v2118 = vld [vmem:[%s1852 + $0x420] sm:$0xff]
                %2119 = vst [vmem:[%s1853 + $0x15f0] sm:$0xff] %v2118
                %v2120 = vld [vmem:[%s1852 + $0x428] sm:$0xff]
                %2121 = vst [vmem:[%s1853 + $0x18f0] sm:$0xff] %v2120
                %v2122 = vld [vmem:[%s1852 + $0x430] sm:$0xff]
                %2123 = vst [vmem:[%s1853 + $0x18f8] sm:$0xff] %v2122
                %v2124 = vld [vmem:[%s1852 + $0x438] sm:$0xff]
                %2125 = vst [vmem:[%s1853 + $0x1900] sm:$0xff] %v2124
                %v2126 = vld [vmem:[%s1852 + $0x440] sm:$0xff]
                %2127 = vst [vmem:[%s1853 + $0x1908] sm:$0xff] %v2126
                %v2128 = vld [vmem:[%s1852 + $0x448] sm:$0xff]
                %2129 = vst [vmem:[%s1853 + $0x1910] sm:$0xff] %v2128
                %v2130 = vld [vmem:[%s1852 + $0x450] sm:$0xff]
                %2131 = vst [vmem:[%s1853 + $0x1918] sm:$0xff] %v2130
                %v2132 = vld [vmem:[%s1852 + $0x458] sm:$0xff]
                %2133 = vst [vmem:[%s1853 + $0x1920] sm:$0xff] %v2132
                %v2134 = vld [vmem:[%s1852 + $0x460] sm:$0xff]
                %2135 = vst [vmem:[%s1853 + $0x1928] sm:$0xff] %v2134
                %v2136 = vld [vmem:[%s1852 + $0x468] sm:$0xff]
                %2137 = vst [vmem:[%s1853 + $0x1930] sm:$0xff] %v2136
                %v2138 = vld [vmem:[%s1852 + $0x470] sm:$0xff]
                %2139 = vst [vmem:[%s1853 + $0x1938] sm:$0xff] %v2138
                %v2140 = vld [vmem:[%s1852 + $0x478] sm:$0xff]
                %2141 = vst [vmem:[%s1853 + $0x1940] sm:$0xff] %v2140
                %v2142 = vld [vmem:[%s1852 + $0x480] sm:$0xff]
                %2143 = vst [vmem:[%s1853 + $0x1948] sm:$0xff] %v2142
                %v2144 = vld [vmem:[%s1852 + $0x488] sm:$0xff]
                %2145 = vst [vmem:[%s1853 + $0x1950] sm:$0xff] %v2144
                %v2146 = vld [vmem:[%s1852 + $0x490] sm:$0xff]
                %2147 = vst [vmem:[%s1853 + $0x1958] sm:$0xff] %v2146
                %v2148 = vld [vmem:[%s1852 + $0x498] sm:$0xff]
                %2149 = vst [vmem:[%s1853 + $0x1960] sm:$0xff] %v2148
                %v2150 = vld [vmem:[%s1852 + $0x4a0] sm:$0xff]
                %2151 = vst [vmem:[%s1853 + $0x1968] sm:$0xff] %v2150
                %v2152 = vld [vmem:[%s1852 + $0x4a8] sm:$0xff]
                %2153 = vst [vmem:[%s1853 + $0x1970] sm:$0xff] %v2152
                %v2154 = vld [vmem:[%s1852 + $0x4b0] sm:$0xff]
                %2155 = vst [vmem:[%s1853 + $0x1978] sm:$0xff] %v2154
                %v2156 = vld [vmem:[%s1852 + $0x4b8] sm:$0xff]
                %2157 = vst [vmem:[%s1853 + $0x1980] sm:$0xff] %v2156
                %v2158 = vld [vmem:[%s1852 + $0x4c0] sm:$0xff]
                %2159 = vst [vmem:[%s1853 + $0x1c80] sm:$0xff] %v2158
                %v2160 = vld [vmem:[%s1852 + $0x4c8] sm:$0xff]
                %2161 = vst [vmem:[%s1853 + $0x1c88] sm:$0xff] %v2160
                %v2162 = vld [vmem:[%s1852 + $0x4d0] sm:$0xff]
                %2163 = vst [vmem:[%s1853 + $0x1c90] sm:$0xff] %v2162
                %v2164 = vld [vmem:[%s1852 + $0x4d8] sm:$0xff]
                %2165 = vst [vmem:[%s1853 + $0x1c98] sm:$0xff] %v2164
                %v2166 = vld [vmem:[%s1852 + $0x4e0] sm:$0xff]
                %2167 = vst [vmem:[%s1853 + $0x1ca0] sm:$0xff] %v2166
                %v2168 = vld [vmem:[%s1852 + $0x4e8] sm:$0xff]
                %2169 = vst [vmem:[%s1853 + $0x1ca8] sm:$0xff] %v2168
                %v2170 = vld [vmem:[%s1852 + $0x4f0] sm:$0xff]
                %2171 = vst [vmem:[%s1853 + $0x1cb0] sm:$0xff] %v2170
                %v2172 = vld [vmem:[%s1852 + $0x4f8] sm:$0xff]
                %2173 = vst [vmem:[%s1853 + $0x1cb8] sm:$0xff] %v2172
                %v2174 = vld [vmem:[%s1852 + $0x500] sm:$0xff]
                %2175 = vst [vmem:[%s1853 + $0x1cc0] sm:$0xff] %v2174
                %v2176 = vld [vmem:[%s1852 + $0x508] sm:$0xff]
                %2177 = vst [vmem:[%s1853 + $0x1cc8] sm:$0xff] %v2176
                %v2178 = vld [vmem:[%s1852 + $0x510] sm:$0xff]
                %2179 = vst [vmem:[%s1853 + $0x1cd0] sm:$0xff] %v2178
                %v2180 = vld [vmem:[%s1852 + $0x518] sm:$0xff]
                %2181 = vst [vmem:[%s1853 + $0x1cd8] sm:$0xff] %v2180
                %v2182 = vld [vmem:[%s1852 + $0x520] sm:$0xff]
                %2183 = vst [vmem:[%s1853 + $0x1ce0] sm:$0xff] %v2182
                %v2184 = vld [vmem:[%s1852 + $0x528] sm:$0xff]
                %2185 = vst [vmem:[%s1853 + $0x1ce8] sm:$0xff] %v2184
                %v2186 = vld [vmem:[%s1852 + $0x530] sm:$0xff]
                %2187 = vst [vmem:[%s1853 + $0x1cf0] sm:$0xff] %v2186
                %v2188 = vld [vmem:[%s1852 + $0x538] sm:$0xff]
                %2189 = vst [vmem:[%s1853 + $0x1cf8] sm:$0xff] %v2188
                %v2190 = vld [vmem:[%s1852 + $0x540] sm:$0xff]
                %2191 = vst [vmem:[%s1853 + $0x1d00] sm:$0xff] %v2190
                %v2192 = vld [vmem:[%s1852 + $0x548] sm:$0xff]
                %2193 = vst [vmem:[%s1853 + $0x1d08] sm:$0xff] %v2192
                %v2194 = vld [vmem:[%s1852 + $0x550] sm:$0xff]
                %2195 = vst [vmem:[%s1853 + $0x1d10] sm:$0xff] %v2194
              $region57: #{cnn_lstm_forward.3} parent=51 // loop_footer
                %s1851 = sadd.s32 1, %s1847
              $region58: #{cnn_lstm_forward.3} parent=51 // loop_footer_branch
                %1846 = sbr.rel target = $region54
              $region59: #{cnn_lstm_forward.3} parent=51 // loop_exit
                _
            $region52: #{cnn_lstm_forward.3} parent=47 // pred_fallthru
              _
            // Predicated region
            $region60: #{cnn_lstm_forward.3} parent=47 // pred_check
              _
            $region61: #{cnn_lstm_forward.3} parent=47 // pred_check_branch
              %2197 = sbr.rel target = $region63
            $region62: #{cnn_lstm_forward.3} parent=47 // pred_region
              _
            $region63: #{cnn_lstm_forward.3} parent=47 // pred_fallthru
              _
          $region48: #{cnn_lstm_forward.3} parent=43 // pred_fallthru
            _
          %2198 = vnop
        $region44: #{cnn_lstm_forward.3} parent=31 // pred_fallthru
          _
      $region32: #{cnn_lstm_forward.3} parent=5 // pred_fallthru
        _
      %p2199 = scmp.le.s32.totalorder 2, %s15
      // Predicated region
      $region64: #{cnn_lstm_forward.3} parent=5 // pred_check
        %p2200 = pneg %p2199
      $region65: #{cnn_lstm_forward.3} parent=5 // pred_check_branch
        %2202 = sbr.rel (%p2200) target = $region67
      $region66: #{cnn_lstm_forward.3} parent=5 // pred_region
        %s2203 = ssub.s32 %s15, 2
        // Predicated region
        $region68: #{cnn_lstm_forward.3} parent=66 // pred_check
          %p2204 = pneg %p117
        $region69: #{cnn_lstm_forward.3} parent=66 // pred_check_branch
          %2206 = sbr.rel (%p2204) target = $region71
        $region70: #{cnn_lstm_forward.3} parent=66 // pred_region
          %s2207 = sand.u32 %s102, 1
          %s2208 = sand.u32 %s102, 1
          %s2209 = smul.addr %s2208, 1368
          %s2210 = scalar_lea.vmem [#allocation6], %s2209
        $region71: #{cnn_lstm_forward.3} parent=66 // pred_fallthru
          _
      $region67: #{cnn_lstm_forward.3} parent=5 // pred_fallthru
        _
    $region6: #{cnn_lstm_forward.3} parent=1 // loop_footer
      %s19 = sadd.s32 1, %s15
    $region7: #{cnn_lstm_forward.3} parent=1 // loop_footer_branch
      %14 = sbr.rel target = $region3
    $region8: #{cnn_lstm_forward.3} parent=1 // loop_exit
      _
    %2211 = vsyncpa [#allocation3], 1
    %s2212 = scalar_lea.sflag [#allocation3], 1
    %2213 = vsyncpa %s2212, 1
    %2214 = vsyncpa [#allocation5], 1
    %s2215 = scalar_lea.sflag [#allocation5], 1
    %2216 = vsyncpa %s2215, 1

// kernel: cnn_lstm_forward.2
$region0: #{cnn_lstm_forward.2}
  #allocation0 [shape = 'u32[]', space=smem, size = 0x4, offset = 0x4, fixed_abs, tag = 'smem constant byte address 0x4 - core index']
  #allocation1 [shape = 'u32[144,128]{1,0:T(1,128)}', space=vmem, size = 0x12000, scoped, tag = 'internal scratch']
  #allocation2 [shape = 'f32[72,128]{1,0:T(8,128)}', space=vmem, size = 0x9000, scoped, tag = 'scratch operand']
  %s0 = inlined_call_operand.vmem [shape: f32[72,32], index: 0, kind: input, shape index: {}]
  %s1 = inlined_call_operand.hbm [shape: f32[32,128], index: 1, kind: input, shape index: {}]
  %s2 = inlined_call_operand.hbm [shape: f32[32,128], index: 2, kind: input, shape index: {}]
  %s3 = inlined_call_operand.hbm [shape: f32[1,128], index: 3, kind: input, shape index: {}]
  %s4 = inlined_call_operand.hbm [shape: f32[32,128], index: 4, kind: input, shape index: {}]
  %s5 = inlined_call_operand.hbm [shape: f32[32,128], index: 5, kind: input, shape index: {}]
  %s6 = inlined_call_operand.hbm [shape: f32[1,128], index: 6, kind: input, shape index: {}]
  %s7 = inlined_call_operand.vmem [shape: f32[72,32], index: 7, kind: output, shape index: {}]
  %s8 = sld [smem:[#allocation0]]
  $region62: #{cnn_lstm_forward.2} parent=0
    _
  %s10 = ssub.s32 1, %s8
  %s11 = scalar_select 0, %s10, %s8
  $region1: #{cnn_lstm_forward.2} parent=0
    #allocation3 [shape = 'u8[16384]{0}', space=vmem, size = 0x4000, scoped, tag = 'input window, operand 1, single buffered']
    #allocation4 [shape = 's32[1]{0}', space=sflag, size = 0x4, scoped, tag = 'scoped memory for cnn_lstm_forward.2']
    #allocation5 [shape = 'u8[16384]{0}', space=vmem, size = 0x4000, scoped, tag = 'input window, operand 2, single buffered']
    #allocation6 [shape = 's32[1]{0}', space=sflag, size = 0x4, scoped, tag = 'scoped memory for cnn_lstm_forward.2']
    #allocation7 [shape = 'u8[512]{0}', space=vmem, size = 0x400, scoped, tag = 'input window, operand 3, single buffered']
    #allocation8 [shape = 'u8[16384]{0}', space=vmem, size = 0x4000, scoped, tag = 'input window, operand 4, single buffered']
    #allocation9 [shape = 's32[1]{0}', space=sflag, size = 0x4, scoped, tag = 'scoped memory for cnn_lstm_forward.2']
    #allocation10 [shape = 'u8[16384]{0}', space=vmem, size = 0x4000, scoped, tag = 'input window, operand 5, single buffered']
    #allocation11 [shape = 'u8[512]{0}', space=vmem, size = 0x400, scoped, tag = 'input window, operand 6, single buffered']
    #allocation12 [shape = 's32[1]{0}', space=sflag, size = 0x4, scoped, tag = 'scoped memory for cnn_lstm_forward.2']
    %12 = vsyncpa [#allocation4], 0
    %13 = vsyncpa [#allocation6], 0
    %14 = vsyncpa [#allocation9], 0
    %15 = vsyncpa [#allocation12], 0
    // Predicated region
    $region2: #{cnn_lstm_forward.2} parent=1 // pred_check
      _
    $region3: #{cnn_lstm_forward.2} parent=1 // pred_check_branch
      %17 = sbr.rel (0) target = $region5
    $region4: #{cnn_lstm_forward.2} parent=1 // pred_region
      _
    $region5: #{cnn_lstm_forward.2} parent=1 // pred_fallthru
      _
    // Predicated region
    $region6: #{cnn_lstm_forward.2} parent=1 // pred_check
      _
    $region7: #{cnn_lstm_forward.2} parent=1 // pred_check_branch
      %19 = sbr.rel (0) target = $region9
    $region8: #{cnn_lstm_forward.2} parent=1 // pred_region
      %s21 = ssub.s32 512, 512
      %22 = vsyncadd [#allocation4], %s21
      %s23 = sshll.u32 [#allocation3], 4
      %s24 = int_to_ptr.vmem [resolvable:$true] %s23
      %29 = dma.hbm_to_vmem [thread:$0]  %s1, 512, %s24, [#allocation4], 128, 128, 8
    $region9: #{cnn_lstm_forward.2} parent=1 // pred_fallthru
      _
    // Predicated region
    $region10: #{cnn_lstm_forward.2} parent=1 // pred_check
      _
    $region11: #{cnn_lstm_forward.2} parent=1 // pred_check_branch
      %31 = sbr.rel (0) target = $region13
    $region12: #{cnn_lstm_forward.2} parent=1 // pred_region
      %s33 = ssub.s32 512, 512
      %34 = vsyncadd [#allocation6], %s33
      %s35 = sshll.u32 [#allocation5], 4
      %s36 = int_to_ptr.vmem [resolvable:$true] %s35
      %41 = dma.hbm_to_vmem [thread:$0]  %s2, 512, %s36, [#allocation6], 128, 128, 8
    $region13: #{cnn_lstm_forward.2} parent=1 // pred_fallthru
      _
    // Predicated region
    $region14: #{cnn_lstm_forward.2} parent=1 // pred_check
      _
    $region15: #{cnn_lstm_forward.2} parent=1 // pred_check_branch
      %43 = sbr.rel (0) target = $region17
    $region16: #{cnn_lstm_forward.2} parent=1 // pred_region
      %s45 = ssub.s32 16, 16
      %46 = vsyncadd [#allocation6], %s45
      %s48 = sshll.u32 [#allocation7], 4
      %s49 = int_to_ptr.vmem [resolvable:$true] %s48
      %51 = dma.hbm_to_vmem [thread:$0]  %s3, 16, %s49, [#allocation6]
    $region17: #{cnn_lstm_forward.2} parent=1 // pred_fallthru
      _
    // Predicated region
    $region18: #{cnn_lstm_forward.2} parent=1 // pred_check
      _
    $region19: #{cnn_lstm_forward.2} parent=1 // pred_check_branch
      %53 = sbr.rel (0) target = $region21
    $region20: #{cnn_lstm_forward.2} parent=1 // pred_region
      %s55 = ssub.s32 512, 512
      %56 = vsyncadd [#allocation9], %s55
      %s57 = sshll.u32 [#allocation8], 4
      %s58 = int_to_ptr.vmem [resolvable:$true] %s57
      %63 = dma.hbm_to_vmem [thread:$0]  %s4, 512, %s58, [#allocation9], 128, 128, 8
    $region21: #{cnn_lstm_forward.2} parent=1 // pred_fallthru
      _
    // Predicated region
    $region22: #{cnn_lstm_forward.2} parent=1 // pred_check
      _
    $region23: #{cnn_lstm_forward.2} parent=1 // pred_check_branch
      %65 = sbr.rel (0) target = $region25
    $region24: #{cnn_lstm_forward.2} parent=1 // pred_region
      %s67 = ssub.s32 512, 512
      %68 = vsyncadd [#allocation9], %s67
      %s69 = sshll.u32 [#allocation10], 4
      %s70 = int_to_ptr.vmem [resolvable:$true] %s69
      %75 = dma.hbm_to_vmem [thread:$0]  %s5, 512, %s70, [#allocation9], 128, 128, 8
    $region25: #{cnn_lstm_forward.2} parent=1 // pred_fallthru
      _
    // Predicated region
    $region26: #{cnn_lstm_forward.2} parent=1 // pred_check
      _
    $region27: #{cnn_lstm_forward.2} parent=1 // pred_check_branch
      %77 = sbr.rel (0) target = $region29
    $region28: #{cnn_lstm_forward.2} parent=1 // pred_region
      %s79 = ssub.s32 16, 16
      %80 = vsyncadd [#allocation12], %s79
      %s82 = sshll.u32 [#allocation11], 4
      %s83 = int_to_ptr.vmem [resolvable:$true] %s82
      %85 = dma.hbm_to_vmem [thread:$0]  %s6, 16, %s83, [#allocation12]
    $region29: #{cnn_lstm_forward.2} parent=1 // pred_fallthru
      _
    // Predicated region
    $region30: #{cnn_lstm_forward.2} parent=1 // pred_check
      _
    $region31: #{cnn_lstm_forward.2} parent=1 // pred_check_branch
      %87 = sbr.rel (0) target = $region33
    $region32: #{cnn_lstm_forward.2} parent=1 // pred_region
      %88 = dma.done [#allocation4], 512
    $region33: #{cnn_lstm_forward.2} parent=1 // pred_fallthru
      _
    // Predicated region
    $region34: #{cnn_lstm_forward.2} parent=1 // pred_check
      _
    $region35: #{cnn_lstm_forward.2} parent=1 // pred_check_branch
      %90 = sbr.rel (0) target = $region37
    $region36: #{cnn_lstm_forward.2} parent=1 // pred_region
      %91 = dma.done [#allocation6], 512
    $region37: #{cnn_lstm_forward.2} parent=1 // pred_fallthru
      _
    // Predicated region
    $region38: #{cnn_lstm_forward.2} parent=1 // pred_check
      _
    $region39: #{cnn_lstm_forward.2} parent=1 // pred_check_branch
      %93 = sbr.rel (0) target = $region41
    $region40: #{cnn_lstm_forward.2} parent=1 // pred_region
      %94 = dma.done [#allocation6], 16
    $region41: #{cnn_lstm_forward.2} parent=1 // pred_fallthru
      _
    // Predicated region
    $region42: #{cnn_lstm_forward.2} parent=1 // pred_check
      _
    $region43: #{cnn_lstm_forward.2} parent=1 // pred_check_branch
      %96 = sbr.rel (0) target = $region45
    $region44: #{cnn_lstm_forward.2} parent=1 // pred_region
      %97 = dma.done [#allocation9], 512
    $region45: #{cnn_lstm_forward.2} parent=1 // pred_fallthru
      _
    // Predicated region
    $region46: #{cnn_lstm_forward.2} parent=1 // pred_check
      _
    $region47: #{cnn_lstm_forward.2} parent=1 // pred_check_branch
      %99 = sbr.rel (0) target = $region49
    $region48: #{cnn_lstm_forward.2} parent=1 // pred_region
      %100 = dma.done [#allocation9], 512
    $region49: #{cnn_lstm_forward.2} parent=1 // pred_fallthru
      _
    // Predicated region
    $region50: #{cnn_lstm_forward.2} parent=1 // pred_check
      _
    $region51: #{cnn_lstm_forward.2} parent=1 // pred_check_branch
      %102 = sbr.rel (0) target = $region53
    $region52: #{cnn_lstm_forward.2} parent=1 // pred_region
      %103 = dma.done [#allocation12], 16
    $region53: #{cnn_lstm_forward.2} parent=1 // pred_fallthru
      _
    %v104 = vld [vmem:[%s0] sm:$0xff]
    %v105 = vld [vmem:[%s0 + $0x8] sm:$0xff]
    %v106 = vld [vmem:[%s0 + $0x10] sm:$0xff]
    %v107 = vld [vmem:[%s0 + $0x18] sm:$0xff]
    %v108 = vld [vmem:[%s0 + $0x20] sm:$0xff]
    %v109 = vld [vmem:[%s0 + $0x28] sm:$0xff]
    %v110 = vld [vmem:[%s0 + $0x30] sm:$0xff]
    %v111 = vld [vmem:[%s0 + $0x38] sm:$0xff]
    %v112 = vld [vmem:[%s0 + $0x40] sm:$0xff]
    %v113 = vld [vmem:[#allocation3] sm:$0xff]
    %v114 = vld [vmem:[#allocation3 + $0x8] sm:$0xff]
    %v115 = vld [vmem:[#allocation3 + $0x10] sm:$0xff]
    %v116 = vld [vmem:[#allocation3 + $0x18] sm:$0xff]
    %v117 = vld [vmem:[#allocation7] sm:$0x1]
    %v119 = vlaneseq
    %v120 = vshrl.u32 %v119, 7
    %v121 = vsub.s32 0, %v120
    %v122 = vrot.slane %v117, %v121
    %vm124 = vcmask 261120
    %v126 = vsel %vm124, %v104, 0
    %v129 = vsel %vm124, %v105, 0
    %v132 = vsel %vm124, %v106, 0
    %v135 = vsel %vm124, %v107, 0
    %v138 = vsel %vm124, %v108, 0
    %v141 = vsel %vm124, %v109, 0
    %v144 = vsel %vm124, %v110, 0
    %v147 = vsel %vm124, %v111, 0
    %v150 = vsel %vm124, %v112, 0
    %152 = vmatprep.subr.mxu0 0.0
    %153 = vmatpush1.msra.mxu0 0.0
    %154 = vmatprep.subr.mxu0 0.0
    %155 = vmatpush1.msra.mxu0 0.0
    %156 = vmatprep.subr.mxu0 0.0
    %157 = vmatpush1.msra.mxu0 0.0
    %158 = vmatprep.subr.mxu0 0.0
    %159 = vmatpush1.msra.mxu0 0.0
    %160 = vmatprep.subr.mxu0 0.0
    %161 = vmatpush1.msra.mxu0 0.0
    %162 = vmatprep.subr.mxu0 0.0
    %163 = vmatpush1.msra.mxu0 0.0
    %164 = vmatprep.subr.mxu0 0.0
    %165 = vmatpush1.msra.mxu0 0.0
    %166 = vmatprep.subr.mxu0 0.0
    %167 = vmatpush1.msra.mxu0 0.0
    %168 = vmatprep.subr.mxu0 0.0
    %169 = vmatpush1.msra.mxu0 0.0
    %170 = vmatprep.subr.mxu0 0.0
    %171 = vmatpush1.msra.mxu0 0.0
    %172 = vmatprep.subr.mxu0 0.0
    %173 = vmatpush1.msra.mxu0 0.0
    %174 = vmatprep.subr.mxu0 0.0
    %175 = vmatpush1.msra.mxu0 0.0
    %176 = vmatprep.subr.mxu0 0.0
    %177 = vmatpush1.msra.mxu0 %v116
    %178 = vmatprep.subr.mxu0 0.0
    %179 = vmatpush1.msra.mxu0 %v115
    %180 = vmatprep.subr.mxu0 0.0
    %181 = vmatpush1.msra.mxu0 %v114
    %182 = vmatprep.subr.mxu0 0.0
    %183 = vmatpush1.msra.mxu0 %v113
    %184 = vmatprep.subr.mxu0 0.0
    %185 = vmatpush2.msra.mxu0 0.0
    %186 = vmatprep.subr.mxu0 0.0
    %187 = vmatpush2.msra.mxu0 0.0
    %188 = vmatprep.subr.mxu0 0.0
    %189 = vmatpush2.msra.mxu0 0.0
    %190 = vmatprep.subr.mxu0 0.0
    %191 = vmatpush2.msra.mxu0 0.0
    %192 = vmatprep.subr.mxu0 0.0
    %193 = vmatpush2.msra.mxu0 0.0
    %194 = vmatprep.subr.mxu0 0.0
    %195 = vmatpush2.msra.mxu0 0.0
    %196 = vmatprep.subr.mxu0 0.0
    %197 = vmatpush2.msra.mxu0 0.0
    %198 = vmatprep.subr.mxu0 0.0
    %199 = vmatpush2.msra.mxu0 0.0
    %200 = vmatprep.subr.mxu0 0.0
    %201 = vmatpush2.msra.mxu0 0.0
    %202 = vmatprep.subr.mxu0 0.0
    %203 = vmatpush2.msra.mxu0 0.0
    %204 = vmatprep.subr.mxu0 0.0
    %205 = vmatpush2.msra.mxu0 0.0
    %206 = vmatprep.subr.mxu0 0.0
    %207 = vmatpush2.msra.mxu0 0.0
    %208 = vmatprep.subr.mxu0 0.0
    %209 = vmatpush2.msra.mxu0 0.0
    %210 = vmatprep.subr.mxu0 0.0
    %211 = vmatpush2.msra.mxu0 0.0
    %212 = vmatprep.subr.mxu0 0.0
    %213 = vmatpush2.msra.mxu0 0.0
    %214 = vmatprep.subr.mxu0 0.0
    %215 = vmatpush2.msra.mxu0 0.0
    %216 = vmatprep.mubr.f32.mxu0 0.0
    %217 = vmatmul.mubr.f32.gmra.mxu0 %v126
    %v218 = vpop.f32.mrf.mxu0
    %v219 = vadd.f32 %v122, %v218
    %v220 = vpop.f32.mrf.mxu0
    %221 = vmatprep.mubr.f32.mxu0 0.0
    %222 = vmatmul.mubr.f32.gmra.mxu0 %v129
    %v223 = vpop.f32.mrf.mxu0
    %v224 = vadd.f32 %v122, %v223
    %v225 = vpop.f32.mrf.mxu0
    %226 = vmatprep.mubr.f32.mxu0 0.0
    %227 = vmatmul.mubr.f32.gmra.mxu0 %v132
    %v228 = vpop.f32.mrf.mxu0
    %v229 = vadd.f32 %v122, %v228
    %v230 = vpop.f32.mrf.mxu0
    %231 = vmatprep.mubr.f32.mxu0 0.0
    %232 = vmatmul.mubr.f32.gmra.mxu0 %v135
    %v233 = vpop.f32.mrf.mxu0
    %v234 = vadd.f32 %v122, %v233
    %v235 = vpop.f32.mrf.mxu0
    %236 = vmatprep.mubr.f32.mxu0 0.0
    %237 = vmatmul.mubr.f32.gmra.mxu0 %v138
    %v238 = vpop.f32.mrf.mxu0
    %v239 = vadd.f32 %v122, %v238
    %v240 = vpop.f32.mrf.mxu0
    %241 = vmatprep.mubr.f32.mxu0 0.0
    %242 = vmatmul.mubr.f32.gmra.mxu0 %v141
    %v243 = vpop.f32.mrf.mxu0
    %v244 = vadd.f32 %v122, %v243
    %v245 = vpop.f32.mrf.mxu0
    %246 = vmatprep.mubr.f32.mxu0 0.0
    %247 = vmatmul.mubr.f32.gmra.mxu0 %v144
    %v248 = vpop.f32.mrf.mxu0
    %v249 = vadd.f32 %v122, %v248
    %v250 = vpop.f32.mrf.mxu0
    %251 = vmatprep.mubr.f32.mxu0 0.0
    %252 = vmatmul.mubr.f32.gmra.mxu0 %v147
    %v253 = vpop.f32.mrf.mxu0
    %v254 = vadd.f32 %v122, %v253
    %v255 = vpop.f32.mrf.mxu0
    %256 = vmatprep.mubr.f32.mxu0 0.0
    %257 = vmatmul.mubr.f32.gmra.mxu0 %v150
    %v258 = vpop.f32.mrf.mxu0
    %v259 = vadd.f32 %v122, %v258
    %v260 = vpop.f32.mrf.mxu0
    %261 = vdwg.mxu0
    %262 = vst [vmem:[#allocation2] sm:$0xff] %v219
    %263 = vst [vmem:[#allocation2 + $0x8] sm:$0xff] %v224
    %264 = vst [vmem:[#allocation2 + $0x10] sm:$0xff] %v229
    %265 = vst [vmem:[#allocation2 + $0x18] sm:$0xff] %v234
    %266 = vst [vmem:[#allocation2 + $0x20] sm:$0xff] %v239
    %267 = vst [vmem:[#allocation2 + $0x28] sm:$0xff] %v244
    %268 = vst [vmem:[#allocation2 + $0x30] sm:$0xff] %v249
    %269 = vst [vmem:[#allocation2 + $0x38] sm:$0xff] %v254
    %270 = vst [vmem:[#allocation2 + $0x40] sm:$0xff] %v259
    %v271 = vld [vmem:[#allocation11] sm:$0x1]
    %v272 = vld [vmem:[#allocation2] sm:$0xff]
    %v273 = vld [vmem:[#allocation5] sm:$0xff]
    %v274 = vld [vmem:[#allocation5 + $0x8] sm:$0xff]
    %v275 = vld [vmem:[#allocation5 + $0x10] sm:$0xff]
    %v276 = vld [vmem:[#allocation5 + $0x18] sm:$0xff]
    %v278 = vsel %vm124, 0.0, 0
    %280 = vmatprep.subr.mxu0 0.0
    %281 = vmatpush1.msra.mxu0 0.0
    %282 = vmatprep.subr.mxu0 0.0
    %283 = vmatpush1.msra.mxu0 0.0
    %284 = vmatprep.subr.mxu0 0.0
    %285 = vmatpush1.msra.mxu0 0.0
    %286 = vmatprep.subr.mxu0 0.0
    %287 = vmatpush1.msra.mxu0 0.0
    %288 = vmatprep.subr.mxu0 0.0
    %289 = vmatpush1.msra.mxu0 0.0
    %290 = vmatprep.subr.mxu0 0.0
    %291 = vmatpush1.msra.mxu0 0.0
    %292 = vmatprep.subr.mxu0 0.0
    %293 = vmatpush1.msra.mxu0 0.0
    %294 = vmatprep.subr.mxu0 0.0
    %295 = vmatpush1.msra.mxu0 0.0
    %296 = vmatprep.subr.mxu0 0.0
    %297 = vmatpush1.msra.mxu0 0.0
    %298 = vmatprep.subr.mxu0 0.0
    %299 = vmatpush1.msra.mxu0 0.0
    %300 = vmatprep.subr.mxu0 0.0
    %301 = vmatpush1.msra.mxu0 0.0
    %302 = vmatprep.subr.mxu0 0.0
    %303 = vmatpush1.msra.mxu0 0.0
    %304 = vmatprep.subr.mxu0 0.0
    %305 = vmatpush1.msra.mxu0 %v276
    %306 = vmatprep.subr.mxu0 0.0
    %307 = vmatpush1.msra.mxu0 %v275
    %308 = vmatprep.subr.mxu0 0.0
    %309 = vmatpush1.msra.mxu0 %v274
    %310 = vmatprep.subr.mxu0 0.0
    %311 = vmatpush1.msra.mxu0 %v273
    %312 = vmatprep.subr.mxu0 0.0
    %313 = vmatpush2.msra.mxu0 0.0
    %314 = vmatprep.subr.mxu0 0.0
    %315 = vmatpush2.msra.mxu0 0.0
    %316 = vmatprep.subr.mxu0 0.0
    %317 = vmatpush2.msra.mxu0 0.0
    %318 = vmatprep.subr.mxu0 0.0
    %319 = vmatpush2.msra.mxu0 0.0
    %320 = vmatprep.subr.mxu0 0.0
    %321 = vmatpush2.msra.mxu0 0.0
    %322 = vmatprep.subr.mxu0 0.0
    %323 = vmatpush2.msra.mxu0 0.0
    %324 = vmatprep.subr.mxu0 0.0
    %325 = vmatpush2.msra.mxu0 0.0
    %326 = vmatprep.subr.mxu0 0.0
    %327 = vmatpush2.msra.mxu0 0.0
    %328 = vmatprep.subr.mxu0 0.0
    %329 = vmatpush2.msra.mxu0 0.0
    %330 = vmatprep.subr.mxu0 0.0
    %331 = vmatpush2.msra.mxu0 0.0
    %332 = vmatprep.subr.mxu0 0.0
    %333 = vmatpush2.msra.mxu0 0.0
    %334 = vmatprep.subr.mxu0 0.0
    %335 = vmatpush2.msra.mxu0 0.0
    %336 = vmatprep.subr.mxu0 0.0
    %337 = vmatpush2.msra.mxu0 0.0
    %338 = vmatprep.subr.mxu0 0.0
    %339 = vmatpush2.msra.mxu0 0.0
    %340 = vmatprep.subr.mxu0 0.0
    %341 = vmatpush2.msra.mxu0 0.0
    %342 = vmatprep.subr.mxu0 0.0
    %343 = vmatpush2.msra.mxu0 0.0
    %344 = vmatprep.mubr.f32.mxu0 0.0
    %345 = vmatmul.mubr.f32.gmra.mxu0 %v278
    %v346 = vpop.f32.mrf.mxu0
    %v347 = vadd.f32 0.0, %v346
    %v348 = vpop.f32.mrf.mxu0
    %349 = vdwg.mxu0
    %v350 = vadd.f32 %v272, %v347
    %v351 = vxor.u32 %v350, 2147483648
    %v352 = vmul.f32 %v351, 1.442695
    %v353 = vpow.pop %v352
    %v354 = vadd.f32 %v353, 1.0
    %v355 = vrcp.pop %v354
    %v356 = vmul.f32 1.0, %v355
    %v357 = vtanh.pop %v350
    %v358 = vmul.f32 %v356, 0.0
    %360 = vrot.lane.b32.xlu0 %v357, 64
    %v361 = vpop.permute.xlu0 %360
    %v363 = vmul.f32 %v356, %v361
    %365 = vrot.lane.b32.xlu0 %v363, 32
    %v366 = vpop.permute.xlu0 %365
    %v368 = vadd.f32 %v358, %v366
    %v369 = vtanh.pop %v368
    %371 = vrot.lane.b32.xlu0 %v369, 64
    %v372 = vpop.permute.xlu0 %371
    %v374 = vmul.f32 %v356, %v372
    %v375 = vld [vmem:[#allocation8] sm:$0xff]
    %v376 = vld [vmem:[#allocation8 + $0x8] sm:$0xff]
    %v377 = vld [vmem:[#allocation8 + $0x10] sm:$0xff]
    %v378 = vld [vmem:[#allocation8 + $0x18] sm:$0xff]
    %v379 = vld [vmem:[#allocation10] sm:$0xff]
    %v380 = vld [vmem:[#allocation10 + $0x8] sm:$0xff]
    %v381 = vld [vmem:[#allocation10 + $0x10] sm:$0xff]
    %v382 = vld [vmem:[#allocation10 + $0x18] sm:$0xff]
    %383 = vmatprep.subr.mxu0 0.0
    %384 = vmatpush1.msra.mxu0 0.0
    %385 = vmatprep.subr.mxu0 0.0
    %386 = vmatpush1.msra.mxu0 0.0
    %387 = vmatprep.subr.mxu0 0.0
    %388 = vmatpush1.msra.mxu0 0.0
    %389 = vmatprep.subr.mxu0 0.0
    %390 = vmatpush1.msra.mxu0 0.0
    %391 = vmatprep.subr.mxu0 0.0
    %392 = vmatpush1.msra.mxu0 0.0
    %393 = vmatprep.subr.mxu0 0.0
    %394 = vmatpush1.msra.mxu0 0.0
    %395 = vmatprep.subr.mxu0 0.0
    %396 = vmatpush1.msra.mxu0 0.0
    %397 = vmatprep.subr.mxu0 0.0
    %398 = vmatpush1.msra.mxu0 0.0
    %399 = vmatprep.subr.mxu0 0.0
    %400 = vmatpush1.msra.mxu0 0.0
    %401 = vmatprep.subr.mxu0 0.0
    %402 = vmatpush1.msra.mxu0 0.0
    %403 = vmatprep.subr.mxu0 0.0
    %404 = vmatpush1.msra.mxu0 0.0
    %405 = vmatprep.subr.mxu0 0.0
    %406 = vmatpush1.msra.mxu0 0.0
    %407 = vmatprep.subr.mxu0 0.0
    %408 = vmatpush1.msra.mxu0 %v382
    %409 = vmatprep.subr.mxu0 0.0
    %410 = vmatpush1.msra.mxu0 %v381
    %411 = vmatprep.subr.mxu0 0.0
    %412 = vmatpush1.msra.mxu0 %v380
    %413 = vmatprep.subr.mxu0 0.0
    %414 = vmatpush1.msra.mxu0 %v379
    %415 = vmatprep.subr.mxu0 0.0
    %416 = vmatpush2.msra.mxu0 0.0
    %417 = vmatprep.subr.mxu0 0.0
    %418 = vmatpush2.msra.mxu0 0.0
    %419 = vmatprep.subr.mxu0 0.0
    %420 = vmatpush2.msra.mxu0 0.0
    %421 = vmatprep.subr.mxu0 0.0
    %422 = vmatpush2.msra.mxu0 0.0
    %423 = vmatprep.subr.mxu0 0.0
    %424 = vmatpush2.msra.mxu0 0.0
    %425 = vmatprep.subr.mxu0 0.0
    %426 = vmatpush2.msra.mxu0 0.0
    %427 = vmatprep.subr.mxu0 0.0
    %428 = vmatpush2.msra.mxu0 0.0
    %429 = vmatprep.subr.mxu0 0.0
    %430 = vmatpush2.msra.mxu0 0.0
    %431 = vmatprep.subr.mxu0 0.0
    %432 = vmatpush2.msra.mxu0 0.0
    %433 = vmatprep.subr.mxu0 0.0
    %434 = vmatpush2.msra.mxu0 0.0
    %435 = vmatprep.subr.mxu0 0.0
    %436 = vmatpush2.msra.mxu0 0.0
    %437 = vmatprep.subr.mxu0 0.0
    %438 = vmatpush2.msra.mxu0 0.0
    %439 = vmatprep.subr.mxu0 0.0
    %440 = vmatpush2.msra.mxu0 0.0
    %441 = vmatprep.subr.mxu0 0.0
    %442 = vmatpush2.msra.mxu0 0.0
    %443 = vmatprep.subr.mxu0 0.0
    %444 = vmatpush2.msra.mxu0 0.0
    %445 = vmatprep.subr.mxu0 0.0
    %446 = vmatpush2.msra.mxu0 0.0
    %447 = vmatprep.mubr.f32.mxu0 0.0
    %448 = vmatmul.mubr.f32.gmra.mxu0 %v278
    %v449 = vpop.f32.mrf.mxu0
    %v450 = vadd.f32 0.0, %v449
    %v451 = vpop.f32.mrf.mxu0
    %452 = vdwg.mxu0
    %454 = vrot.lane.b32.xlu0 %v374, 32
    %v455 = vpop.permute.xlu0 %454
    %v456 = vsel %vm124, %v455, 0
    %458 = vmatprep.subr.mxu0 0.0
    %459 = vmatpush1.msra.mxu0 0.0
    %460 = vmatprep.subr.mxu0 0.0
    %461 = vmatpush1.msra.mxu0 0.0
    %462 = vmatprep.subr.mxu0 0.0
    %463 = vmatpush1.msra.mxu0 0.0
    %464 = vmatprep.subr.mxu0 0.0
    %465 = vmatpush1.msra.mxu0 0.0
    %466 = vmatprep.subr.mxu0 0.0
    %467 = vmatpush1.msra.mxu0 0.0
    %468 = vmatprep.subr.mxu0 0.0
    %469 = vmatpush1.msra.mxu0 0.0
    %470 = vmatprep.subr.mxu0 0.0
    %471 = vmatpush1.msra.mxu0 0.0
    %472 = vmatprep.subr.mxu0 0.0
    %473 = vmatpush1.msra.mxu0 0.0
    %474 = vmatprep.subr.mxu0 0.0
    %475 = vmatpush1.msra.mxu0 0.0
    %476 = vmatprep.subr.mxu0 0.0
    %477 = vmatpush1.msra.mxu0 0.0
    %478 = vmatprep.subr.mxu0 0.0
    %479 = vmatpush1.msra.mxu0 0.0
    %480 = vmatprep.subr.mxu0 0.0
    %481 = vmatpush1.msra.mxu0 0.0
    %482 = vmatprep.subr.mxu0 0.0
    %483 = vmatpush1.msra.mxu0 %v378
    %484 = vmatprep.subr.mxu0 0.0
    %485 = vmatpush1.msra.mxu0 %v377
    %486 = vmatprep.subr.mxu0 0.0
    %487 = vmatpush1.msra.mxu0 %v376
    %488 = vmatprep.subr.mxu0 0.0
    %489 = vmatpush1.msra.mxu0 %v375
    %490 = vmatprep.subr.mxu0 0.0
    %491 = vmatpush2.msra.mxu0 0.0
    %492 = vmatprep.subr.mxu0 0.0
    %493 = vmatpush2.msra.mxu0 0.0
    %494 = vmatprep.subr.mxu0 0.0
    %495 = vmatpush2.msra.mxu0 0.0
    %496 = vmatprep.subr.mxu0 0.0
    %497 = vmatpush2.msra.mxu0 0.0
    %498 = vmatprep.subr.mxu0 0.0
    %499 = vmatpush2.msra.mxu0 0.0
    %500 = vmatprep.subr.mxu0 0.0
    %501 = vmatpush2.msra.mxu0 0.0
    %502 = vmatprep.subr.mxu0 0.0
    %503 = vmatpush2.msra.mxu0 0.0
    %504 = vmatprep.subr.mxu0 0.0
    %505 = vmatpush2.msra.mxu0 0.0
    %506 = vmatprep.subr.mxu0 0.0
    %507 = vmatpush2.msra.mxu0 0.0
    %508 = vmatprep.subr.mxu0 0.0
    %509 = vmatpush2.msra.mxu0 0.0
    %510 = vmatprep.subr.mxu0 0.0
    %511 = vmatpush2.msra.mxu0 0.0
    %512 = vmatprep.subr.mxu0 0.0
    %513 = vmatpush2.msra.mxu0 0.0
    %514 = vmatprep.subr.mxu0 0.0
    %515 = vmatpush2.msra.mxu0 0.0
    %516 = vmatprep.subr.mxu0 0.0
    %517 = vmatpush2.msra.mxu0 0.0
    %518 = vmatprep.subr.mxu0 0.0
    %519 = vmatpush2.msra.mxu0 0.0
    %520 = vmatprep.subr.mxu0 0.0
    %521 = vmatpush2.msra.mxu0 0.0
    %522 = vmatprep.mubr.f32.mxu0 0.0
    %523 = vmatmul.mubr.f32.gmra.mxu0 %v456
    %v524 = vpop.f32.mrf.mxu0
    %v525 = vadd.f32 %v450, %v524
    %v526 = vpop.f32.mrf.mxu0
    %527 = vdwg.mxu0
    %v529 = vlaneseq
    %v530 = vshrl.u32 %v529, 7
    %v531 = vsub.s32 0, %v530
    %v532 = vrot.slane %v271, %v531
    %v534 = vadd.f32 %v525, %v532
    %v535 = vxor.u32 %v534, 2147483648
    %v536 = vmul.f32 %v535, 1.442695
    %v537 = vpow.pop %v536
    %v538 = vadd.f32 %v537, 1.0
    %v539 = vrcp.pop %v538
    %v540 = vmul.f32 1.0, %v539
    %v541 = vtanh.pop %v534
    %v542 = vmul.f32 %v540, 0.0
    %544 = vrot.lane.b32.xlu0 %v541, 64
    %v545 = vpop.permute.xlu0 %544
    %v547 = vmul.f32 %v540, %v545
    %549 = vrot.lane.b32.xlu0 %v547, 32
    %v550 = vpop.permute.xlu0 %549
    %v552 = vadd.f32 %v542, %v550
    %v553 = vtanh.pop %v552
    %555 = vrot.lane.b32.xlu0 %v553, 64
    %v556 = vpop.permute.xlu0 %555
    %v558 = vmul.f32 %v540, %v556
    %560 = vrot.lane.b32.xlu0 %v558, 32
    %v561 = vpop.permute.xlu0 %560
    %563 = vst.msk [vmem:[%s7] sm:$0xff] %vm124, %v561
    %s564 = scalar_lea.vmem [#allocation2], 8
    %v565 = vld [vmem:[%s564] sm:$0xff]
    %v566 = vld [vmem:[#allocation5] sm:$0xff]
    %v567 = vld [vmem:[#allocation5 + $0x8] sm:$0xff]
    %v568 = vld [vmem:[#allocation5 + $0x10] sm:$0xff]
    %v569 = vld [vmem:[#allocation5 + $0x18] sm:$0xff]
    %570 = vmatprep.subr.mxu0 0.0
    %571 = vmatpush1.msra.mxu0 0.0
    %572 = vmatprep.subr.mxu0 0.0
    %573 = vmatpush1.msra.mxu0 0.0
    %574 = vmatprep.subr.mxu0 0.0
    %575 = vmatpush1.msra.mxu0 0.0
    %576 = vmatprep.subr.mxu0 0.0
    %577 = vmatpush1.msra.mxu0 0.0
    %578 = vmatprep.subr.mxu0 0.0
    %579 = vmatpush1.msra.mxu0 0.0
    %580 = vmatprep.subr.mxu0 0.0
    %581 = vmatpush1.msra.mxu0 0.0
    %582 = vmatprep.subr.mxu0 0.0
    %583 = vmatpush1.msra.mxu0 0.0
    %584 = vmatprep.subr.mxu0 0.0
    %585 = vmatpush1.msra.mxu0 0.0
    %586 = vmatprep.subr.mxu0 0.0
    %587 = vmatpush1.msra.mxu0 0.0
    %588 = vmatprep.subr.mxu0 0.0
    %589 = vmatpush1.msra.mxu0 0.0
    %590 = vmatprep.subr.mxu0 0.0
    %591 = vmatpush1.msra.mxu0 0.0
    %592 = vmatprep.subr.mxu0 0.0
    %593 = vmatpush1.msra.mxu0 0.0
    %594 = vmatprep.subr.mxu0 0.0
    %595 = vmatpush1.msra.mxu0 %v569
    %596 = vmatprep.subr.mxu0 0.0
    %597 = vmatpush1.msra.mxu0 %v568
    %598 = vmatprep.subr.mxu0 0.0
    %599 = vmatpush1.msra.mxu0 %v567
    %600 = vmatprep.subr.mxu0 0.0
    %601 = vmatpush1.msra.mxu0 %v566
    %602 = vmatprep.subr.mxu0 0.0
    %603 = vmatpush2.msra.mxu0 0.0
    %604 = vmatprep.subr.mxu0 0.0
    %605 = vmatpush2.msra.mxu0 0.0
    %606 = vmatprep.subr.mxu0 0.0
    %607 = vmatpush2.msra.mxu0 0.0
    %608 = vmatprep.subr.mxu0 0.0
    %609 = vmatpush2.msra.mxu0 0.0
    %610 = vmatprep.subr.mxu0 0.0
    %611 = vmatpush2.msra.mxu0 0.0
    %612 = vmatprep.subr.mxu0 0.0
    %613 = vmatpush2.msra.mxu0 0.0
    %614 = vmatprep.subr.mxu0 0.0
    %615 = vmatpush2.msra.mxu0 0.0
    %616 = vmatprep.subr.mxu0 0.0
    %617 = vmatpush2.msra.mxu0 0.0
    %618 = vmatprep.subr.mxu0 0.0
    %619 = vmatpush2.msra.mxu0 0.0
    %620 = vmatprep.subr.mxu0 0.0
    %621 = vmatpush2.msra.mxu0 0.0
    %622 = vmatprep.subr.mxu0 0.0
    %623 = vmatpush2.msra.mxu0 0.0
    %624 = vmatprep.subr.mxu0 0.0
    %625 = vmatpush2.msra.mxu0 0.0
    %626 = vmatprep.subr.mxu0 0.0
    %627 = vmatpush2.msra.mxu0 0.0
    %628 = vmatprep.subr.mxu0 0.0
    %629 = vmatpush2.msra.mxu0 0.0
    %630 = vmatprep.subr.mxu0 0.0
    %631 = vmatpush2.msra.mxu0 0.0
    %632 = vmatprep.subr.mxu0 0.0
    %633 = vmatpush2.msra.mxu0 0.0
    %634 = vmatprep.mubr.f32.mxu0 0.0
    %635 = vmatmul.mubr.f32.gmra.mxu0 %v456
    %v636 = vpop.f32.mrf.mxu0
    %v637 = vadd.f32 0.0, %v636
    %v638 = vpop.f32.mrf.mxu0
    %639 = vdwg.mxu0
    %v640 = vadd.f32 %v565, %v637
    %v641 = vxor.u32 %v640, 2147483648
    %v642 = vmul.f32 %v641, 1.442695
    %v643 = vpow.pop %v642
    %v644 = vadd.f32 %v643, 1.0
    %v645 = vrcp.pop %v644
    %v646 = vmul.f32 1.0, %v645
    %v647 = vtanh.pop %v640
    %v648 = vmul.f32 %v646, %v368
    %650 = vrot.lane.b32.xlu0 %v647, 64
    %v651 = vpop.permute.xlu0 %650
    %v653 = vmul.f32 %v646, %v651
    %655 = vrot.lane.b32.xlu0 %v653, 32
    %v656 = vpop.permute.xlu0 %655
    %v658 = vadd.f32 %v648, %v656
    %v659 = vtanh.pop %v658
    %661 = vrot.lane.b32.xlu0 %v659, 64
    %v662 = vpop.permute.xlu0 %661
    %v664 = vmul.f32 %v646, %v662
    %v665 = vld [vmem:[#allocation8] sm:$0xff]
    %v666 = vld [vmem:[#allocation8 + $0x8] sm:$0xff]
    %v667 = vld [vmem:[#allocation8 + $0x10] sm:$0xff]
    %v668 = vld [vmem:[#allocation8 + $0x18] sm:$0xff]
    %v669 = vld [vmem:[#allocation10] sm:$0xff]
    %v670 = vld [vmem:[#allocation10 + $0x8] sm:$0xff]
    %v671 = vld [vmem:[#allocation10 + $0x10] sm:$0xff]
    %v672 = vld [vmem:[#allocation10 + $0x18] sm:$0xff]
    %v673 = vsel %vm124, %v561, 0
    %675 = vmatprep.subr.mxu0 0.0
    %676 = vmatpush1.msra.mxu0 0.0
    %677 = vmatprep.subr.mxu0 0.0
    %678 = vmatpush1.msra.mxu0 0.0
    %679 = vmatprep.subr.mxu0 0.0
    %680 = vmatpush1.msra.mxu0 0.0
    %681 = vmatprep.subr.mxu0 0.0
    %682 = vmatpush1.msra.mxu0 0.0
    %683 = vmatprep.subr.mxu0 0.0
    %684 = vmatpush1.msra.mxu0 0.0
    %685 = vmatprep.subr.mxu0 0.0
    %686 = vmatpush1.msra.mxu0 0.0
    %687 = vmatprep.subr.mxu0 0.0
    %688 = vmatpush1.msra.mxu0 0.0
    %689 = vmatprep.subr.mxu0 0.0
    %690 = vmatpush1.msra.mxu0 0.0
    %691 = vmatprep.subr.mxu0 0.0
    %692 = vmatpush1.msra.mxu0 0.0
    %693 = vmatprep.subr.mxu0 0.0
    %694 = vmatpush1.msra.mxu0 0.0
    %695 = vmatprep.subr.mxu0 0.0
    %696 = vmatpush1.msra.mxu0 0.0
    %697 = vmatprep.subr.mxu0 0.0
    %698 = vmatpush1.msra.mxu0 0.0
    %699 = vmatprep.subr.mxu0 0.0
    %700 = vmatpush1.msra.mxu0 %v672
    %701 = vmatprep.subr.mxu0 0.0
    %702 = vmatpush1.msra.mxu0 %v671
    %703 = vmatprep.subr.mxu0 0.0
    %704 = vmatpush1.msra.mxu0 %v670
    %705 = vmatprep.subr.mxu0 0.0
    %706 = vmatpush1.msra.mxu0 %v669
    %707 = vmatprep.subr.mxu0 0.0
    %708 = vmatpush2.msra.mxu0 0.0
    %709 = vmatprep.subr.mxu0 0.0
    %710 = vmatpush2.msra.mxu0 0.0
    %711 = vmatprep.subr.mxu0 0.0
    %712 = vmatpush2.msra.mxu0 0.0
    %713 = vmatprep.subr.mxu0 0.0
    %714 = vmatpush2.msra.mxu0 0.0
    %715 = vmatprep.subr.mxu0 0.0
    %716 = vmatpush2.msra.mxu0 0.0
    %717 = vmatprep.subr.mxu0 0.0
    %718 = vmatpush2.msra.mxu0 0.0
    %719 = vmatprep.subr.mxu0 0.0
    %720 = vmatpush2.msra.mxu0 0.0
    %721 = vmatprep.subr.mxu0 0.0
    %722 = vmatpush2.msra.mxu0 0.0
    %723 = vmatprep.subr.mxu0 0.0
    %724 = vmatpush2.msra.mxu0 0.0
    %725 = vmatprep.subr.mxu0 0.0
    %726 = vmatpush2.msra.mxu0 0.0
    %727 = vmatprep.subr.mxu0 0.0
    %728 = vmatpush2.msra.mxu0 0.0
    %729 = vmatprep.subr.mxu0 0.0
    %730 = vmatpush2.msra.mxu0 0.0
    %731 = vmatprep.subr.mxu0 0.0
    %732 = vmatpush2.msra.mxu0 0.0
    %733 = vmatprep.subr.mxu0 0.0
    %734 = vmatpush2.msra.mxu0 0.0
    %735 = vmatprep.subr.mxu0 0.0
    %736 = vmatpush2.msra.mxu0 0.0
    %737 = vmatprep.subr.mxu0 0.0
    %738 = vmatpush2.msra.mxu0 0.0
    %739 = vmatprep.mubr.f32.mxu0 0.0
    %740 = vmatmul.mubr.f32.gmra.mxu0 %v673
    %v741 = vpop.f32.mrf.mxu0
    %v742 = vadd.f32 0.0, %v741
    %v743 = vpop.f32.mrf.mxu0
    %744 = vdwg.mxu0
    %746 = vrot.lane.b32.xlu0 %v664, 32
    %v747 = vpop.permute.xlu0 %746
    %v748 = vsel %vm124, %v747, 0
    %750 = vmatprep.subr.mxu0 0.0
    %751 = vmatpush1.msra.mxu0 0.0
    %752 = vmatprep.subr.mxu0 0.0
    %753 = vmatpush1.msra.mxu0 0.0
    %754 = vmatprep.subr.mxu0 0.0
    %755 = vmatpush1.msra.mxu0 0.0
    %756 = vmatprep.subr.mxu0 0.0
    %757 = vmatpush1.msra.mxu0 0.0
    %758 = vmatprep.subr.mxu0 0.0
    %759 = vmatpush1.msra.mxu0 0.0
    %760 = vmatprep.subr.mxu0 0.0
    %761 = vmatpush1.msra.mxu0 0.0
    %762 = vmatprep.subr.mxu0 0.0
    %763 = vmatpush1.msra.mxu0 0.0
    %764 = vmatprep.subr.mxu0 0.0
    %765 = vmatpush1.msra.mxu0 0.0
    %766 = vmatprep.subr.mxu0 0.0
    %767 = vmatpush1.msra.mxu0 0.0
    %768 = vmatprep.subr.mxu0 0.0
    %769 = vmatpush1.msra.mxu0 0.0
    %770 = vmatprep.subr.mxu0 0.0
    %771 = vmatpush1.msra.mxu0 0.0
    %772 = vmatprep.subr.mxu0 0.0
    %773 = vmatpush1.msra.mxu0 0.0
    %774 = vmatprep.subr.mxu0 0.0
    %775 = vmatpush1.msra.mxu0 %v668
    %776 = vmatprep.subr.mxu0 0.0
    %777 = vmatpush1.msra.mxu0 %v667
    %778 = vmatprep.subr.mxu0 0.0
    %779 = vmatpush1.msra.mxu0 %v666
    %780 = vmatprep.subr.mxu0 0.0
    %781 = vmatpush1.msra.mxu0 %v665
    %782 = vmatprep.subr.mxu0 0.0
    %783 = vmatpush2.msra.mxu0 0.0
    %784 = vmatprep.subr.mxu0 0.0
    %785 = vmatpush2.msra.mxu0 0.0
    %786 = vmatprep.subr.mxu0 0.0
    %787 = vmatpush2.msra.mxu0 0.0
    %788 = vmatprep.subr.mxu0 0.0
    %789 = vmatpush2.msra.mxu0 0.0
    %790 = vmatprep.subr.mxu0 0.0
    %791 = vmatpush2.msra.mxu0 0.0
    %792 = vmatprep.subr.mxu0 0.0
    %793 = vmatpush2.msra.mxu0 0.0
    %794 = vmatprep.subr.mxu0 0.0
    %795 = vmatpush2.msra.mxu0 0.0
    %796 = vmatprep.subr.mxu0 0.0
    %797 = vmatpush2.msra.mxu0 0.0
    %798 = vmatprep.subr.mxu0 0.0
    %799 = vmatpush2.msra.mxu0 0.0
    %800 = vmatprep.subr.mxu0 0.0
    %801 = vmatpush2.msra.mxu0 0.0
    %802 = vmatprep.subr.mxu0 0.0
    %803 = vmatpush2.msra.mxu0 0.0
    %804 = vmatprep.subr.mxu0 0.0
    %805 = vmatpush2.msra.mxu0 0.0
    %806 = vmatprep.subr.mxu0 0.0
    %807 = vmatpush2.msra.mxu0 0.0
    %808 = vmatprep.subr.mxu0 0.0
    %809 = vmatpush2.msra.mxu0 0.0
    %810 = vmatprep.subr.mxu0 0.0
    %811 = vmatpush2.msra.mxu0 0.0
    %812 = vmatprep.subr.mxu0 0.0
    %813 = vmatpush2.msra.mxu0 0.0
    %814 = vmatprep.mubr.f32.mxu0 0.0
    %815 = vmatmul.mubr.f32.gmra.mxu0 %v748
    %v816 = vpop.f32.mrf.mxu0
    %v817 = vadd.f32 %v742, %v816
    %v818 = vpop.f32.mrf.mxu0
    %819 = vdwg.mxu0
    %v820 = vadd.f32 %v817, %v532
    %v821 = vxor.u32 %v820, 2147483648
    %v822 = vmul.f32 %v821, 1.442695
    %v823 = vpow.pop %v822
    %v824 = vadd.f32 %v823, 1.0
    %v825 = vrcp.pop %v824
    %v826 = vmul.f32 1.0, %v825
    %v827 = vtanh.pop %v820
    %v828 = vmul.f32 %v826, %v552
    %830 = vrot.lane.b32.xlu0 %v827, 64
    %v831 = vpop.permute.xlu0 %830
    %v833 = vmul.f32 %v826, %v831
    %835 = vrot.lane.b32.xlu0 %v833, 32
    %v836 = vpop.permute.xlu0 %835
    %v838 = vadd.f32 %v828, %v836
    %v839 = vtanh.pop %v838
    %841 = vrot.lane.b32.xlu0 %v839, 64
    %v842 = vpop.permute.xlu0 %841
    %v844 = vmul.f32 %v826, %v842
    %846 = vrot.lane.b32.xlu0 %v844, 32
    %v847 = vpop.permute.xlu0 %846
    %s849 = scalar_lea.vmem %s7, 8
    %850 = vst.msk [vmem:[%s849] sm:$0xff] %vm124, %v847
    %s851 = scalar_lea.vmem [#allocation2], 16
    %v852 = vld [vmem:[%s851] sm:$0xff]
    %v853 = vld [vmem:[#allocation5] sm:$0xff]
    %v854 = vld [vmem:[#allocation5 + $0x8] sm:$0xff]
    %v855 = vld [vmem:[#allocation5 + $0x10] sm:$0xff]
    %v856 = vld [vmem:[#allocation5 + $0x18] sm:$0xff]
    %857 = vmatprep.subr.mxu0 0.0
    %858 = vmatpush1.msra.mxu0 0.0
    %859 = vmatprep.subr.mxu0 0.0
    %860 = vmatpush1.msra.mxu0 0.0
    %861 = vmatprep.subr.mxu0 0.0
    %862 = vmatpush1.msra.mxu0 0.0
    %863 = vmatprep.subr.mxu0 0.0
    %864 = vmatpush1.msra.mxu0 0.0
    %865 = vmatprep.subr.mxu0 0.0
    %866 = vmatpush1.msra.mxu0 0.0
    %867 = vmatprep.subr.mxu0 0.0
    %868 = vmatpush1.msra.mxu0 0.0
    %869 = vmatprep.subr.mxu0 0.0
    %870 = vmatpush1.msra.mxu0 0.0
    %871 = vmatprep.subr.mxu0 0.0
    %872 = vmatpush1.msra.mxu0 0.0
    %873 = vmatprep.subr.mxu0 0.0
    %874 = vmatpush1.msra.mxu0 0.0
    %875 = vmatprep.subr.mxu0 0.0
    %876 = vmatpush1.msra.mxu0 0.0
    %877 = vmatprep.subr.mxu0 0.0
    %878 = vmatpush1.msra.mxu0 0.0
    %879 = vmatprep.subr.mxu0 0.0
    %880 = vmatpush1.msra.mxu0 0.0
    %881 = vmatprep.subr.mxu0 0.0
    %882 = vmatpush1.msra.mxu0 %v856
    %883 = vmatprep.subr.mxu0 0.0
    %884 = vmatpush1.msra.mxu0 %v855
    %885 = vmatprep.subr.mxu0 0.0
    %886 = vmatpush1.msra.mxu0 %v854
    %887 = vmatprep.subr.mxu0 0.0
    %888 = vmatpush1.msra.mxu0 %v853
    %889 = vmatprep.subr.mxu0 0.0
    %890 = vmatpush2.msra.mxu0 0.0
    %891 = vmatprep.subr.mxu0 0.0
    %892 = vmatpush2.msra.mxu0 0.0
    %893 = vmatprep.subr.mxu0 0.0
    %894 = vmatpush2.msra.mxu0 0.0
    %895 = vmatprep.subr.mxu0 0.0
    %896 = vmatpush2.msra.mxu0 0.0
    %897 = vmatprep.subr.mxu0 0.0
    %898 = vmatpush2.msra.mxu0 0.0
    %899 = vmatprep.subr.mxu0 0.0
    %900 = vmatpush2.msra.mxu0 0.0
    %901 = vmatprep.subr.mxu0 0.0
    %902 = vmatpush2.msra.mxu0 0.0
    %903 = vmatprep.subr.mxu0 0.0
    %904 = vmatpush2.msra.mxu0 0.0
    %905 = vmatprep.subr.mxu0 0.0
    %906 = vmatpush2.msra.mxu0 0.0
    %907 = vmatprep.subr.mxu0 0.0
    %908 = vmatpush2.msra.mxu0 0.0
    %909 = vmatprep.subr.mxu0 0.0
    %910 = vmatpush2.msra.mxu0 0.0
    %911 = vmatprep.subr.mxu0 0.0
    %912 = vmatpush2.msra.mxu0 0.0
    %913 = vmatprep.subr.mxu0 0.0
    %914 = vmatpush2.msra.mxu0 0.0
    %915 = vmatprep.subr.mxu0 0.0
    %916 = vmatpush2.msra.mxu0 0.0
    %917 = vmatprep.subr.mxu0 0.0
    %918 = vmatpush2.msra.mxu0 0.0
    %919 = vmatprep.subr.mxu0 0.0
    %920 = vmatpush2.msra.mxu0 0.0
    %921 = vmatprep.mubr.f32.mxu0 0.0
    %922 = vmatmul.mubr.f32.gmra.mxu0 %v748
    %v923 = vpop.f32.mrf.mxu0
    %v924 = vadd.f32 0.0, %v923
    %v925 = vpop.f32.mrf.mxu0
    %926 = vdwg.mxu0
    %v927 = vadd.f32 %v852, %v924
    %v928 = vxor.u32 %v927, 2147483648
    %v929 = vmul.f32 %v928, 1.442695
    %v930 = vpow.pop %v929
    %v931 = vadd.f32 %v930, 1.0
    %v932 = vrcp.pop %v931
    %v933 = vmul.f32 1.0, %v932
    %v934 = vtanh.pop %v927
    %v935 = vmul.f32 %v933, %v658
    %937 = vrot.lane.b32.xlu0 %v934, 64
    %v938 = vpop.permute.xlu0 %937
    %v940 = vmul.f32 %v933, %v938
    %942 = vrot.lane.b32.xlu0 %v940, 32
    %v943 = vpop.permute.xlu0 %942
    %v945 = vadd.f32 %v935, %v943
    %v946 = vtanh.pop %v945
    %948 = vrot.lane.b32.xlu0 %v946, 64
    %v949 = vpop.permute.xlu0 %948
    %v951 = vmul.f32 %v933, %v949
    %v952 = vld [vmem:[#allocation8] sm:$0xff]
    %v953 = vld [vmem:[#allocation8 + $0x8] sm:$0xff]
    %v954 = vld [vmem:[#allocation8 + $0x10] sm:$0xff]
    %v955 = vld [vmem:[#allocation8 + $0x18] sm:$0xff]
    %v956 = vld [vmem:[#allocation10] sm:$0xff]
    %v957 = vld [vmem:[#allocation10 + $0x8] sm:$0xff]
    %v958 = vld [vmem:[#allocation10 + $0x10] sm:$0xff]
    %v959 = vld [vmem:[#allocation10 + $0x18] sm:$0xff]
    %v960 = vsel %vm124, %v847, 0
    %962 = vmatprep.subr.mxu0 0.0
    %963 = vmatpush1.msra.mxu0 0.0
    %964 = vmatprep.subr.mxu0 0.0
    %965 = vmatpush1.msra.mxu0 0.0
    %966 = vmatprep.subr.mxu0 0.0
    %967 = vmatpush1.msra.mxu0 0.0
    %968 = vmatprep.subr.mxu0 0.0
    %969 = vmatpush1.msra.mxu0 0.0
    %970 = vmatprep.subr.mxu0 0.0
    %971 = vmatpush1.msra.mxu0 0.0
    %972 = vmatprep.subr.mxu0 0.0
    %973 = vmatpush1.msra.mxu0 0.0
    %974 = vmatprep.subr.mxu0 0.0
    %975 = vmatpush1.msra.mxu0 0.0
    %976 = vmatprep.subr.mxu0 0.0
    %977 = vmatpush1.msra.mxu0 0.0
    %978 = vmatprep.subr.mxu0 0.0
    %979 = vmatpush1.msra.mxu0 0.0
    %980 = vmatprep.subr.mxu0 0.0
    %981 = vmatpush1.msra.mxu0 0.0
    %982 = vmatprep.subr.mxu0 0.0
    %983 = vmatpush1.msra.mxu0 0.0
    %984 = vmatprep.subr.mxu0 0.0
    %985 = vmatpush1.msra.mxu0 0.0
    %986 = vmatprep.subr.mxu0 0.0
    %987 = vmatpush1.msra.mxu0 %v959
    %988 = vmatprep.subr.mxu0 0.0
    %989 = vmatpush1.msra.mxu0 %v958
    %990 = vmatprep.subr.mxu0 0.0
    %991 = vmatpush1.msra.mxu0 %v957
    %992 = vmatprep.subr.mxu0 0.0
    %993 = vmatpush1.msra.mxu0 %v956
    %994 = vmatprep.subr.mxu0 0.0
    %995 = vmatpush2.msra.mxu0 0.0
    %996 = vmatprep.subr.mxu0 0.0
    %997 = vmatpush2.msra.mxu0 0.0
    %998 = vmatprep.subr.mxu0 0.0
    %999 = vmatpush2.msra.mxu0 0.0
    %1000 = vmatprep.subr.mxu0 0.0
    %1001 = vmatpush2.msra.mxu0 0.0
    %1002 = vmatprep.subr.mxu0 0.0
    %1003 = vmatpush2.msra.mxu0 0.0
    %1004 = vmatprep.subr.mxu0 0.0
    %1005 = vmatpush2.msra.mxu0 0.0
    %1006 = vmatprep.subr.mxu0 0.0
    %1007 = vmatpush2.msra.mxu0 0.0
    %1008 = vmatprep.subr.mxu0 0.0
    %1009 = vmatpush2.msra.mxu0 0.0
    %1010 = vmatprep.subr.mxu0 0.0
    %1011 = vmatpush2.msra.mxu0 0.0
    %1012 = vmatprep.subr.mxu0 0.0
    %1013 = vmatpush2.msra.mxu0 0.0
    %1014 = vmatprep.subr.mxu0 0.0
    %1015 = vmatpush2.msra.mxu0 0.0
    %1016 = vmatprep.subr.mxu0 0.0
    %1017 = vmatpush2.msra.mxu0 0.0
    %1018 = vmatprep.subr.mxu0 0.0
    %1019 = vmatpush2.msra.mxu0 0.0
    %1020 = vmatprep.subr.mxu0 0.0
    %1021 = vmatpush2.msra.mxu0 0.0
    %1022 = vmatprep.subr.mxu0 0.0
    %1023 = vmatpush2.msra.mxu0 0.0
    %1024 = vmatprep.subr.mxu0 0.0
    %1025 = vmatpush2.msra.mxu0 0.0
    %1026 = vmatprep.mubr.f32.mxu0 0.0
    %1027 = vmatmul.mubr.f32.gmra.mxu0 %v960
    %v1028 = vpop.f32.mrf.mxu0
    %v1029 = vadd.f32 0.0, %v1028
    %v1030 = vpop.f32.mrf.mxu0
    %1031 = vdwg.mxu0
    %1033 = vrot.lane.b32.xlu0 %v951, 32
    %v1034 = vpop.permute.xlu0 %1033
    %v1035 = vsel %vm124, %v1034, 0
    %1037 = vmatprep.subr.mxu0 0.0
    %1038 = vmatpush1.msra.mxu0 0.0
    %1039 = vmatprep.subr.mxu0 0.0
    %1040 = vmatpush1.msra.mxu0 0.0
    %1041 = vmatprep.subr.mxu0 0.0
    %1042 = vmatpush1.msra.mxu0 0.0
    %1043 = vmatprep.subr.mxu0 0.0
    %1044 = vmatpush1.msra.mxu0 0.0
    %1045 = vmatprep.subr.mxu0 0.0
    %1046 = vmatpush1.msra.mxu0 0.0
    %1047 = vmatprep.subr.mxu0 0.0
    %1048 = vmatpush1.msra.mxu0 0.0
    %1049 = vmatprep.subr.mxu0 0.0
    %1050 = vmatpush1.msra.mxu0 0.0
    %1051 = vmatprep.subr.mxu0 0.0
    %1052 = vmatpush1.msra.mxu0 0.0
    %1053 = vmatprep.subr.mxu0 0.0
    %1054 = vmatpush1.msra.mxu0 0.0
    %1055 = vmatprep.subr.mxu0 0.0
    %1056 = vmatpush1.msra.mxu0 0.0
    %1057 = vmatprep.subr.mxu0 0.0
    %1058 = vmatpush1.msra.mxu0 0.0
    %1059 = vmatprep.subr.mxu0 0.0
    %1060 = vmatpush1.msra.mxu0 0.0
    %1061 = vmatprep.subr.mxu0 0.0
    %1062 = vmatpush1.msra.mxu0 %v955
    %1063 = vmatprep.subr.mxu0 0.0
    %1064 = vmatpush1.msra.mxu0 %v954
    %1065 = vmatprep.subr.mxu0 0.0
    %1066 = vmatpush1.msra.mxu0 %v953
    %1067 = vmatprep.subr.mxu0 0.0
    %1068 = vmatpush1.msra.mxu0 %v952
    %1069 = vmatprep.subr.mxu0 0.0
    %1070 = vmatpush2.msra.mxu0 0.0
    %1071 = vmatprep.subr.mxu0 0.0
    %1072 = vmatpush2.msra.mxu0 0.0
    %1073 = vmatprep.subr.mxu0 0.0
    %1074 = vmatpush2.msra.mxu0 0.0
    %1075 = vmatprep.subr.mxu0 0.0
    %1076 = vmatpush2.msra.mxu0 0.0
    %1077 = vmatprep.subr.mxu0 0.0
    %1078 = vmatpush2.msra.mxu0 0.0
    %1079 = vmatprep.subr.mxu0 0.0
    %1080 = vmatpush2.msra.mxu0 0.0
    %1081 = vmatprep.subr.mxu0 0.0
    %1082 = vmatpush2.msra.mxu0 0.0
    %1083 = vmatprep.subr.mxu0 0.0
    %1084 = vmatpush2.msra.mxu0 0.0
    %1085 = vmatprep.subr.mxu0 0.0
    %1086 = vmatpush2.msra.mxu0 0.0
    %1087 = vmatprep.subr.mxu0 0.0
    %1088 = vmatpush2.msra.mxu0 0.0
    %1089 = vmatprep.subr.mxu0 0.0
    %1090 = vmatpush2.msra.mxu0 0.0
    %1091 = vmatprep.subr.mxu0 0.0
    %1092 = vmatpush2.msra.mxu0 0.0
    %1093 = vmatprep.subr.mxu0 0.0
    %1094 = vmatpush2.msra.mxu0 0.0
    %1095 = vmatprep.subr.mxu0 0.0
    %1096 = vmatpush2.msra.mxu0 0.0
    %1097 = vmatprep.subr.mxu0 0.0
    %1098 = vmatpush2.msra.mxu0 0.0
    %1099 = vmatprep.subr.mxu0 0.0
    %1100 = vmatpush2.msra.mxu0 0.0
    %1101 = vmatprep.mubr.f32.mxu0 0.0
    %1102 = vmatmul.mubr.f32.gmra.mxu0 %v1035
    %v1103 = vpop.f32.mrf.mxu0
    %v1104 = vadd.f32 %v1029, %v1103
    %v1105 = vpop.f32.mrf.mxu0
    %1106 = vdwg.mxu0
    %v1107 = vadd.f32 %v1104, %v532
    %v1108 = vxor.u32 %v1107, 2147483648
    %v1109 = vmul.f32 %v1108, 1.442695
    %v1110 = vpow.pop %v1109
    %v1111 = vadd.f32 %v1110, 1.0
    %v1112 = vrcp.pop %v1111
    %v1113 = vmul.f32 1.0, %v1112
    %v1114 = vtanh.pop %v1107
    %v1115 = vmul.f32 %v1113, %v838
    %1117 = vrot.lane.b32.xlu0 %v1114, 64
    %v1118 = vpop.permute.xlu0 %1117
    %v1120 = vmul.f32 %v1113, %v1118
    %1122 = vrot.lane.b32.xlu0 %v1120, 32
    %v1123 = vpop.permute.xlu0 %1122
    %v1125 = vadd.f32 %v1115, %v1123
    %v1126 = vtanh.pop %v1125
    %1128 = vrot.lane.b32.xlu0 %v1126, 64
    %v1129 = vpop.permute.xlu0 %1128
    %v1131 = vmul.f32 %v1113, %v1129
    %1133 = vrot.lane.b32.xlu0 %v1131, 32
    %v1134 = vpop.permute.xlu0 %1133
    %s1136 = scalar_lea.vmem %s7, 16
    %1137 = vst.msk [vmem:[%s1136] sm:$0xff] %vm124, %v1134
    %s1138 = scalar_lea.vmem [#allocation2], 24
    %v1139 = vld [vmem:[%s1138] sm:$0xff]
    %v1140 = vld [vmem:[#allocation5] sm:$0xff]
    %v1141 = vld [vmem:[#allocation5 + $0x8] sm:$0xff]
    %v1142 = vld [vmem:[#allocation5 + $0x10] sm:$0xff]
    %v1143 = vld [vmem:[#allocation5 + $0x18] sm:$0xff]
    %1144 = vmatprep.subr.mxu0 0.0
    %1145 = vmatpush1.msra.mxu0 0.0
    %1146 = vmatprep.subr.mxu0 0.0
    %1147 = vmatpush1.msra.mxu0 0.0
    %1148 = vmatprep.subr.mxu0 0.0
    %1149 = vmatpush1.msra.mxu0 0.0
    %1150 = vmatprep.subr.mxu0 0.0
    %1151 = vmatpush1.msra.mxu0 0.0
    %1152 = vmatprep.subr.mxu0 0.0
    %1153 = vmatpush1.msra.mxu0 0.0
    %1154 = vmatprep.subr.mxu0 0.0
    %1155 = vmatpush1.msra.mxu0 0.0
    %1156 = vmatprep.subr.mxu0 0.0
    %1157 = vmatpush1.msra.mxu0 0.0
    %1158 = vmatprep.subr.mxu0 0.0
    %1159 = vmatpush1.msra.mxu0 0.0
    %1160 = vmatprep.subr.mxu0 0.0
    %1161 = vmatpush1.msra.mxu0 0.0
    %1162 = vmatprep.subr.mxu0 0.0
    %1163 = vmatpush1.msra.mxu0 0.0
    %1164 = vmatprep.subr.mxu0 0.0
    %1165 = vmatpush1.msra.mxu0 0.0
    %1166 = vmatprep.subr.mxu0 0.0
    %1167 = vmatpush1.msra.mxu0 0.0
    %1168 = vmatprep.subr.mxu0 0.0
    %1169 = vmatpush1.msra.mxu0 %v1143
    %1170 = vmatprep.subr.mxu0 0.0
    %1171 = vmatpush1.msra.mxu0 %v1142
    %1172 = vmatprep.subr.mxu0 0.0
    %1173 = vmatpush1.msra.mxu0 %v1141
    %1174 = vmatprep.subr.mxu0 0.0
    %1175 = vmatpush1.msra.mxu0 %v1140
    %1176 = vmatprep.subr.mxu0 0.0
    %1177 = vmatpush2.msra.mxu0 0.0
    %1178 = vmatprep.subr.mxu0 0.0
    %1179 = vmatpush2.msra.mxu0 0.0
    %1180 = vmatprep.subr.mxu0 0.0
    %1181 = vmatpush2.msra.mxu0 0.0
    %1182 = vmatprep.subr.mxu0 0.0
    %1183 = vmatpush2.msra.mxu0 0.0
    %1184 = vmatprep.subr.mxu0 0.0
    %1185 = vmatpush2.msra.mxu0 0.0
    %1186 = vmatprep.subr.mxu0 0.0
    %1187 = vmatpush2.msra.mxu0 0.0
    %1188 = vmatprep.subr.mxu0 0.0
    %1189 = vmatpush2.msra.mxu0 0.0
    %1190 = vmatprep.subr.mxu0 0.0
    %1191 = vmatpush2.msra.mxu0 0.0
    %1192 = vmatprep.subr.mxu0 0.0
    %1193 = vmatpush2.msra.mxu0 0.0
    %1194 = vmatprep.subr.mxu0 0.0
    %1195 = vmatpush2.msra.mxu0 0.0
    %1196 = vmatprep.subr.mxu0 0.0
    %1197 = vmatpush2.msra.mxu0 0.0
    %1198 = vmatprep.subr.mxu0 0.0
    %1199 = vmatpush2.msra.mxu0 0.0
    %1200 = vmatprep.subr.mxu0 0.0
    %1201 = vmatpush2.msra.mxu0 0.0
    %1202 = vmatprep.subr.mxu0 0.0
    %1203 = vmatpush2.msra.mxu0 0.0
    %1204 = vmatprep.subr.mxu0 0.0
    %1205 = vmatpush2.msra.mxu0 0.0
    %1206 = vmatprep.subr.mxu0 0.0
    %1207 = vmatpush2.msra.mxu0 0.0
    %1208 = vmatprep.mubr.f32.mxu0 0.0
    %1209 = vmatmul.mubr.f32.gmra.mxu0 %v1035
    %v1210 = vpop.f32.mrf.mxu0
    %v1211 = vadd.f32 0.0, %v1210
    %v1212 = vpop.f32.mrf.mxu0
    %1213 = vdwg.mxu0
    %v1214 = vadd.f32 %v1139, %v1211
    %v1215 = vxor.u32 %v1214, 2147483648
    %v1216 = vmul.f32 %v1215, 1.442695
    %v1217 = vpow.pop %v1216
    %v1218 = vadd.f32 %v1217, 1.0
    %v1219 = vrcp.pop %v1218
    %v1220 = vmul.f32 1.0, %v1219
    %v1221 = vtanh.pop %v1214
    %v1222 = vmul.f32 %v1220, %v945
    %1224 = vrot.lane.b32.xlu0 %v1221, 64
    %v1225 = vpop.permute.xlu0 %1224
    %v1227 = vmul.f32 %v1220, %v1225
    %1229 = vrot.lane.b32.xlu0 %v1227, 32
    %v1230 = vpop.permute.xlu0 %1229
    %v1232 = vadd.f32 %v1222, %v1230
    %v1233 = vtanh.pop %v1232
    %1235 = vrot.lane.b32.xlu0 %v1233, 64
    %v1236 = vpop.permute.xlu0 %1235
    %v1238 = vmul.f32 %v1220, %v1236
    %v1239 = vld [vmem:[#allocation8] sm:$0xff]
    %v1240 = vld [vmem:[#allocation8 + $0x8] sm:$0xff]
    %v1241 = vld [vmem:[#allocation8 + $0x10] sm:$0xff]
    %v1242 = vld [vmem:[#allocation8 + $0x18] sm:$0xff]
    %v1243 = vld [vmem:[#allocation10] sm:$0xff]
    %v1244 = vld [vmem:[#allocation10 + $0x8] sm:$0xff]
    %v1245 = vld [vmem:[#allocation10 + $0x10] sm:$0xff]
    %v1246 = vld [vmem:[#allocation10 + $0x18] sm:$0xff]
    %v1247 = vsel %vm124, %v1134, 0
    %1249 = vmatprep.subr.mxu0 0.0
    %1250 = vmatpush1.msra.mxu0 0.0
    %1251 = vmatprep.subr.mxu0 0.0
    %1252 = vmatpush1.msra.mxu0 0.0
    %1253 = vmatprep.subr.mxu0 0.0
    %1254 = vmatpush1.msra.mxu0 0.0
    %1255 = vmatprep.subr.mxu0 0.0
    %1256 = vmatpush1.msra.mxu0 0.0
    %1257 = vmatprep.subr.mxu0 0.0
    %1258 = vmatpush1.msra.mxu0 0.0
    %1259 = vmatprep.subr.mxu0 0.0
    %1260 = vmatpush1.msra.mxu0 0.0
    %1261 = vmatprep.subr.mxu0 0.0
    %1262 = vmatpush1.msra.mxu0 0.0
    %1263 = vmatprep.subr.mxu0 0.0
    %1264 = vmatpush1.msra.mxu0 0.0
    %1265 = vmatprep.subr.mxu0 0.0
    %1266 = vmatpush1.msra.mxu0 0.0
    %1267 = vmatprep.subr.mxu0 0.0
    %1268 = vmatpush1.msra.mxu0 0.0
    %1269 = vmatprep.subr.mxu0 0.0
    %1270 = vmatpush1.msra.mxu0 0.0
    %1271 = vmatprep.subr.mxu0 0.0
    %1272 = vmatpush1.msra.mxu0 0.0
    %1273 = vmatprep.subr.mxu0 0.0
    %1274 = vmatpush1.msra.mxu0 %v1246
    %1275 = vmatprep.subr.mxu0 0.0
    %1276 = vmatpush1.msra.mxu0 %v1245
    %1277 = vmatprep.subr.mxu0 0.0
    %1278 = vmatpush1.msra.mxu0 %v1244
    %1279 = vmatprep.subr.mxu0 0.0
    %1280 = vmatpush1.msra.mxu0 %v1243
    %1281 = vmatprep.subr.mxu0 0.0
    %1282 = vmatpush2.msra.mxu0 0.0
    %1283 = vmatprep.subr.mxu0 0.0
    %1284 = vmatpush2.msra.mxu0 0.0
    %1285 = vmatprep.subr.mxu0 0.0
    %1286 = vmatpush2.msra.mxu0 0.0
    %1287 = vmatprep.subr.mxu0 0.0
    %1288 = vmatpush2.msra.mxu0 0.0
    %1289 = vmatprep.subr.mxu0 0.0
    %1290 = vmatpush2.msra.mxu0 0.0
    %1291 = vmatprep.subr.mxu0 0.0
    %1292 = vmatpush2.msra.mxu0 0.0
    %1293 = vmatprep.subr.mxu0 0.0
    %1294 = vmatpush2.msra.mxu0 0.0
    %1295 = vmatprep.subr.mxu0 0.0
    %1296 = vmatpush2.msra.mxu0 0.0
    %1297 = vmatprep.subr.mxu0 0.0
    %1298 = vmatpush2.msra.mxu0 0.0
    %1299 = vmatprep.subr.mxu0 0.0
    %1300 = vmatpush2.msra.mxu0 0.0
    %1301 = vmatprep.subr.mxu0 0.0
    %1302 = vmatpush2.msra.mxu0 0.0
    %1303 = vmatprep.subr.mxu0 0.0
    %1304 = vmatpush2.msra.mxu0 0.0
    %1305 = vmatprep.subr.mxu0 0.0
    %1306 = vmatpush2.msra.mxu0 0.0
    %1307 = vmatprep.subr.mxu0 0.0
    %1308 = vmatpush2.msra.mxu0 0.0
    %1309 = vmatprep.subr.mxu0 0.0
    %1310 = vmatpush2.msra.mxu0 0.0
    %1311 = vmatprep.subr.mxu0 0.0
    %1312 = vmatpush2.msra.mxu0 0.0
    %1313 = vmatprep.mubr.f32.mxu0 0.0
    %1314 = vmatmul.mubr.f32.gmra.mxu0 %v1247
    %v1315 = vpop.f32.mrf.mxu0
    %v1316 = vadd.f32 0.0, %v1315
    %v1317 = vpop.f32.mrf.mxu0
    %1318 = vdwg.mxu0
    %1320 = vrot.lane.b32.xlu0 %v1238, 32
    %v1321 = vpop.permute.xlu0 %1320
    %v1322 = vsel %vm124, %v1321, 0
    %1324 = vmatprep.subr.mxu0 0.0
    %1325 = vmatpush1.msra.mxu0 0.0
    %1326 = vmatprep.subr.mxu0 0.0
    %1327 = vmatpush1.msra.mxu0 0.0
    %1328 = vmatprep.subr.mxu0 0.0
    %1329 = vmatpush1.msra.mxu0 0.0
    %1330 = vmatprep.subr.mxu0 0.0
    %1331 = vmatpush1.msra.mxu0 0.0
    %1332 = vmatprep.subr.mxu0 0.0
    %1333 = vmatpush1.msra.mxu0 0.0
    %1334 = vmatprep.subr.mxu0 0.0
    %1335 = vmatpush1.msra.mxu0 0.0
    %1336 = vmatprep.subr.mxu0 0.0
    %1337 = vmatpush1.msra.mxu0 0.0
    %1338 = vmatprep.subr.mxu0 0.0
    %1339 = vmatpush1.msra.mxu0 0.0
    %1340 = vmatprep.subr.mxu0 0.0
    %1341 = vmatpush1.msra.mxu0 0.0
    %1342 = vmatprep.subr.mxu0 0.0
    %1343 = vmatpush1.msra.mxu0 0.0
    %1344 = vmatprep.subr.mxu0 0.0
    %1345 = vmatpush1.msra.mxu0 0.0
    %1346 = vmatprep.subr.mxu0 0.0
    %1347 = vmatpush1.msra.mxu0 0.0
    %1348 = vmatprep.subr.mxu0 0.0
    %1349 = vmatpush1.msra.mxu0 %v1242
    %1350 = vmatprep.subr.mxu0 0.0
    %1351 = vmatpush1.msra.mxu0 %v1241
    %1352 = vmatprep.subr.mxu0 0.0
    %1353 = vmatpush1.msra.mxu0 %v1240
    %1354 = vmatprep.subr.mxu0 0.0
    %1355 = vmatpush1.msra.mxu0 %v1239
    %1356 = vmatprep.subr.mxu0 0.0
    %1357 = vmatpush2.msra.mxu0 0.0
    %1358 = vmatprep.subr.mxu0 0.0
    %1359 = vmatpush2.msra.mxu0 0.0
    %1360 = vmatprep.subr.mxu0 0.0
    %1361 = vmatpush2.msra.mxu0 0.0
    %1362 = vmatprep.subr.mxu0 0.0
    %1363 = vmatpush2.msra.mxu0 0.0
    %1364 = vmatprep.subr.mxu0 0.0
    %1365 = vmatpush2.msra.mxu0 0.0
    %1366 = vmatprep.subr.mxu0 0.0
    %1367 = vmatpush2.msra.mxu0 0.0
    %1368 = vmatprep.subr.mxu0 0.0
    %1369 = vmatpush2.msra.mxu0 0.0
    %1370 = vmatprep.subr.mxu0 0.0
    %1371 = vmatpush2.msra.mxu0 0.0
    %1372 = vmatprep.subr.mxu0 0.0
    %1373 = vmatpush2.msra.mxu0 0.0
    %1374 = vmatprep.subr.mxu0 0.0
    %1375 = vmatpush2.msra.mxu0 0.0
    %1376 = vmatprep.subr.mxu0 0.0
    %1377 = vmatpush2.msra.mxu0 0.0
    %1378 = vmatprep.subr.mxu0 0.0
    %1379 = vmatpush2.msra.mxu0 0.0
    %1380 = vmatprep.subr.mxu0 0.0
    %1381 = vmatpush2.msra.mxu0 0.0
    %1382 = vmatprep.subr.mxu0 0.0
    %1383 = vmatpush2.msra.mxu0 0.0
    %1384 = vmatprep.subr.mxu0 0.0
    %1385 = vmatpush2.msra.mxu0 0.0
    %1386 = vmatprep.subr.mxu0 0.0
    %1387 = vmatpush2.msra.mxu0 0.0
    %1388 = vmatprep.mubr.f32.mxu0 0.0
    %1389 = vmatmul.mubr.f32.gmra.mxu0 %v1322
    %v1390 = vpop.f32.mrf.mxu0
    %v1391 = vadd.f32 %v1316, %v1390
    %v1392 = vpop.f32.mrf.mxu0
    %1393 = vdwg.mxu0
    %v1394 = vadd.f32 %v1391, %v532
    %v1395 = vxor.u32 %v1394, 2147483648
    %v1396 = vmul.f32 %v1395, 1.442695
    %v1397 = vpow.pop %v1396
    %v1398 = vadd.f32 %v1397, 1.0
    %v1399 = vrcp.pop %v1398
    %v1400 = vmul.f32 1.0, %v1399
    %v1401 = vtanh.pop %v1394
    %v1402 = vmul.f32 %v1400, %v1125
    %1404 = vrot.lane.b32.xlu0 %v1401, 64
    %v1405 = vpop.permute.xlu0 %1404
    %v1407 = vmul.f32 %v1400, %v1405
    %1409 = vrot.lane.b32.xlu0 %v1407, 32
    %v1410 = vpop.permute.xlu0 %1409
    %v1412 = vadd.f32 %v1402, %v1410
    %v1413 = vtanh.pop %v1412
    %1415 = vrot.lane.b32.xlu0 %v1413, 64
    %v1416 = vpop.permute.xlu0 %1415
    %v1418 = vmul.f32 %v1400, %v1416
    %1420 = vrot.lane.b32.xlu0 %v1418, 32
    %v1421 = vpop.permute.xlu0 %1420
    %s1423 = scalar_lea.vmem %s7, 24
    %1424 = vst.msk [vmem:[%s1423] sm:$0xff] %vm124, %v1421
    %s1425 = scalar_lea.vmem [#allocation2], 32
    %v1426 = vld [vmem:[%s1425] sm:$0xff]
    %v1427 = vld [vmem:[#allocation5] sm:$0xff]
    %v1428 = vld [vmem:[#allocation5 + $0x8] sm:$0xff]
    %v1429 = vld [vmem:[#allocation5 + $0x10] sm:$0xff]
    %v1430 = vld [vmem:[#allocation5 + $0x18] sm:$0xff]
    %1431 = vmatprep.subr.mxu0 0.0
    %1432 = vmatpush1.msra.mxu0 0.0
    %1433 = vmatprep.subr.mxu0 0.0
    %1434 = vmatpush1.msra.mxu0 0.0
    %1435 = vmatprep.subr.mxu0 0.0
    %1436 = vmatpush1.msra.mxu0 0.0
    %1437 = vmatprep.subr.mxu0 0.0
    %1438 = vmatpush1.msra.mxu0 0.0
    %1439 = vmatprep.subr.mxu0 0.0
    %1440 = vmatpush1.msra.mxu0 0.0
    %1441 = vmatprep.subr.mxu0 0.0
    %1442 = vmatpush1.msra.mxu0 0.0
    %1443 = vmatprep.subr.mxu0 0.0
    %1444 = vmatpush1.msra.mxu0 0.0
    %1445 = vmatprep.subr.mxu0 0.0
    %1446 = vmatpush1.msra.mxu0 0.0
    %1447 = vmatprep.subr.mxu0 0.0
    %1448 = vmatpush1.msra.mxu0 0.0
    %1449 = vmatprep.subr.mxu0 0.0
    %1450 = vmatpush1.msra.mxu0 0.0
    %1451 = vmatprep.subr.mxu0 0.0
    %1452 = vmatpush1.msra.mxu0 0.0
    %1453 = vmatprep.subr.mxu0 0.0
    %1454 = vmatpush1.msra.mxu0 0.0
    %1455 = vmatprep.subr.mxu0 0.0
    %1456 = vmatpush1.msra.mxu0 %v1430
    %1457 = vmatprep.subr.mxu0 0.0
    %1458 = vmatpush1.msra.mxu0 %v1429
    %1459 = vmatprep.subr.mxu0 0.0
    %1460 = vmatpush1.msra.mxu0 %v1428
    %1461 = vmatprep.subr.mxu0 0.0
    %1462 = vmatpush1.msra.mxu0 %v1427
    %1463 = vmatprep.subr.mxu0 0.0
    %1464 = vmatpush2.msra.mxu0 0.0
    %1465 = vmatprep.subr.mxu0 0.0
    %1466 = vmatpush2.msra.mxu0 0.0
    %1467 = vmatprep.subr.mxu0 0.0
    %1468 = vmatpush2.msra.mxu0 0.0
    %1469 = vmatprep.subr.mxu0 0.0
    %1470 = vmatpush2.msra.mxu0 0.0
    %1471 = vmatprep.subr.mxu0 0.0
    %1472 = vmatpush2.msra.mxu0 0.0
    %1473 = vmatprep.subr.mxu0 0.0
    %1474 = vmatpush2.msra.mxu0 0.0
    %1475 = vmatprep.subr.mxu0 0.0
    %1476 = vmatpush2.msra.mxu0 0.0
    %1477 = vmatprep.subr.mxu0 0.0
    %1478 = vmatpush2.msra.mxu0 0.0
    %1479 = vmatprep.subr.mxu0 0.0
    %1480 = vmatpush2.msra.mxu0 0.0
    %1481 = vmatprep.subr.mxu0 0.0
    %1482 = vmatpush2.msra.mxu0 0.0
    %1483 = vmatprep.subr.mxu0 0.0
    %1484 = vmatpush2.msra.mxu0 0.0
    %1485 = vmatprep.subr.mxu0 0.0
    %1486 = vmatpush2.msra.mxu0 0.0
    %1487 = vmatprep.subr.mxu0 0.0
    %1488 = vmatpush2.msra.mxu0 0.0
    %1489 = vmatprep.subr.mxu0 0.0
    %1490 = vmatpush2.msra.mxu0 0.0
    %1491 = vmatprep.subr.mxu0 0.0
    %1492 = vmatpush2.msra.mxu0 0.0
    %1493 = vmatprep.subr.mxu0 0.0
    %1494 = vmatpush2.msra.mxu0 0.0
    %1495 = vmatprep.mubr.f32.mxu0 0.0
    %1496 = vmatmul.mubr.f32.gmra.mxu0 %v1322
    %v1497 = vpop.f32.mrf.mxu0
    %v1498 = vadd.f32 0.0, %v1497
    %v1499 = vpop.f32.mrf.mxu0
    %1500 = vdwg.mxu0
    %v1501 = vadd.f32 %v1426, %v1498
    %v1502 = vxor.u32 %v1501, 2147483648
    %v1503 = vmul.f32 %v1502, 1.442695
    %v1504 = vpow.pop %v1503
    %v1505 = vadd.f32 %v1504, 1.0
    %v1506 = vrcp.pop %v1505
    %v1507 = vmul.f32 1.0, %v1506
    %v1508 = vtanh.pop %v1501
    %v1509 = vmul.f32 %v1507, %v1232
    %1511 = vrot.lane.b32.xlu0 %v1508, 64
    %v1512 = vpop.permute.xlu0 %1511
    %v1514 = vmul.f32 %v1507, %v1512
    %1516 = vrot.lane.b32.xlu0 %v1514, 32
    %v1517 = vpop.permute.xlu0 %1516
    %v1519 = vadd.f32 %v1509, %v1517
    %v1520 = vtanh.pop %v1519
    %1522 = vrot.lane.b32.xlu0 %v1520, 64
    %v1523 = vpop.permute.xlu0 %1522
    %v1525 = vmul.f32 %v1507, %v1523
    %v1526 = vld [vmem:[#allocation8] sm:$0xff]
    %v1527 = vld [vmem:[#allocation8 + $0x8] sm:$0xff]
    %v1528 = vld [vmem:[#allocation8 + $0x10] sm:$0xff]
    %v1529 = vld [vmem:[#allocation8 + $0x18] sm:$0xff]
    %v1530 = vld [vmem:[#allocation10] sm:$0xff]
    %v1531 = vld [vmem:[#allocation10 + $0x8] sm:$0xff]
    %v1532 = vld [vmem:[#allocation10 + $0x10] sm:$0xff]
    %v1533 = vld [vmem:[#allocation10 + $0x18] sm:$0xff]
    %v1534 = vsel %vm124, %v1421, 0
    %1536 = vmatprep.subr.mxu0 0.0
    %1537 = vmatpush1.msra.mxu0 0.0
    %1538 = vmatprep.subr.mxu0 0.0
    %1539 = vmatpush1.msra.mxu0 0.0
    %1540 = vmatprep.subr.mxu0 0.0
    %1541 = vmatpush1.msra.mxu0 0.0
    %1542 = vmatprep.subr.mxu0 0.0
    %1543 = vmatpush1.msra.mxu0 0.0
    %1544 = vmatprep.subr.mxu0 0.0
    %1545 = vmatpush1.msra.mxu0 0.0
    %1546 = vmatprep.subr.mxu0 0.0
    %1547 = vmatpush1.msra.mxu0 0.0
    %1548 = vmatprep.subr.mxu0 0.0
    %1549 = vmatpush1.msra.mxu0 0.0
    %1550 = vmatprep.subr.mxu0 0.0
    %1551 = vmatpush1.msra.mxu0 0.0
    %1552 = vmatprep.subr.mxu0 0.0
    %1553 = vmatpush1.msra.mxu0 0.0
    %1554 = vmatprep.subr.mxu0 0.0
    %1555 = vmatpush1.msra.mxu0 0.0
    %1556 = vmatprep.subr.mxu0 0.0
    %1557 = vmatpush1.msra.mxu0 0.0
    %1558 = vmatprep.subr.mxu0 0.0
    %1559 = vmatpush1.msra.mxu0 0.0
    %1560 = vmatprep.subr.mxu0 0.0
    %1561 = vmatpush1.msra.mxu0 %v1533
    %1562 = vmatprep.subr.mxu0 0.0
    %1563 = vmatpush1.msra.mxu0 %v1532
    %1564 = vmatprep.subr.mxu0 0.0
    %1565 = vmatpush1.msra.mxu0 %v1531
    %1566 = vmatprep.subr.mxu0 0.0
    %1567 = vmatpush1.msra.mxu0 %v1530
    %1568 = vmatprep.subr.mxu0 0.0
    %1569 = vmatpush2.msra.mxu0 0.0
    %1570 = vmatprep.subr.mxu0 0.0
    %1571 = vmatpush2.msra.mxu0 0.0
    %1572 = vmatprep.subr.mxu0 0.0
    %1573 = vmatpush2.msra.mxu0 0.0
    %1574 = vmatprep.subr.mxu0 0.0
    %1575 = vmatpush2.msra.mxu0 0.0
    %1576 = vmatprep.subr.mxu0 0.0
    %1577 = vmatpush2.msra.mxu0 0.0
    %1578 = vmatprep.subr.mxu0 0.0
    %1579 = vmatpush2.msra.mxu0 0.0
    %1580 = vmatprep.subr.mxu0 0.0
    %1581 = vmatpush2.msra.mxu0 0.0
    %1582 = vmatprep.subr.mxu0 0.0
    %1583 = vmatpush2.msra.mxu0 0.0
    %1584 = vmatprep.subr.mxu0 0.0
    %1585 = vmatpush2.msra.mxu0 0.0
    %1586 = vmatprep.subr.mxu0 0.0
    %1587 = vmatpush2.msra.mxu0 0.0
    %1588 = vmatprep.subr.mxu0 0.0
    %1589 = vmatpush2.msra.mxu0 0.0
    %1590 = vmatprep.subr.mxu0 0.0
    %1591 = vmatpush2.msra.mxu0 0.0
    %1592 = vmatprep.subr.mxu0 0.0
    %1593 = vmatpush2.msra.mxu0 0.0
    %1594 = vmatprep.subr.mxu0 0.0
    %1595 = vmatpush2.msra.mxu0 0.0
    %1596 = vmatprep.subr.mxu0 0.0
    %1597 = vmatpush2.msra.mxu0 0.0
    %1598 = vmatprep.subr.mxu0 0.0
    %1599 = vmatpush2.msra.mxu0 0.0
    %1600 = vmatprep.mubr.f32.mxu0 0.0
    %1601 = vmatmul.mubr.f32.gmra.mxu0 %v1534
    %v1602 = vpop.f32.mrf.mxu0
    %v1603 = vadd.f32 0.0, %v1602
    %v1604 = vpop.f32.mrf.mxu0
    %1605 = vdwg.mxu0
    %1607 = vrot.lane.b32.xlu0 %v1525, 32
    %v1608 = vpop.permute.xlu0 %1607
    %v1609 = vsel %vm124, %v1608, 0
    %1611 = vmatprep.subr.mxu0 0.0
    %1612 = vmatpush1.msra.mxu0 0.0
    %1613 = vmatprep.subr.mxu0 0.0
    %1614 = vmatpush1.msra.mxu0 0.0
    %1615 = vmatprep.subr.mxu0 0.0
    %1616 = vmatpush1.msra.mxu0 0.0
    %1617 = vmatprep.subr.mxu0 0.0
    %1618 = vmatpush1.msra.mxu0 0.0
    %1619 = vmatprep.subr.mxu0 0.0
    %1620 = vmatpush1.msra.mxu0 0.0
    %1621 = vmatprep.subr.mxu0 0.0
    %1622 = vmatpush1.msra.mxu0 0.0
    %1623 = vmatprep.subr.mxu0 0.0
    %1624 = vmatpush1.msra.mxu0 0.0
    %1625 = vmatprep.subr.mxu0 0.0
    %1626 = vmatpush1.msra.mxu0 0.0
    %1627 = vmatprep.subr.mxu0 0.0
    %1628 = vmatpush1.msra.mxu0 0.0
    %1629 = vmatprep.subr.mxu0 0.0
    %1630 = vmatpush1.msra.mxu0 0.0
    %1631 = vmatprep.subr.mxu0 0.0
    %1632 = vmatpush1.msra.mxu0 0.0
    %1633 = vmatprep.subr.mxu0 0.0
    %1634 = vmatpush1.msra.mxu0 0.0
    %1635 = vmatprep.subr.mxu0 0.0
    %1636 = vmatpush1.msra.mxu0 %v1529
    %1637 = vmatprep.subr.mxu0 0.0
    %1638 = vmatpush1.msra.mxu0 %v1528
    %1639 = vmatprep.subr.mxu0 0.0
    %1640 = vmatpush1.msra.mxu0 %v1527
    %1641 = vmatprep.subr.mxu0 0.0
    %1642 = vmatpush1.msra.mxu0 %v1526
    %1643 = vmatprep.subr.mxu0 0.0
    %1644 = vmatpush2.msra.mxu0 0.0
    %1645 = vmatprep.subr.mxu0 0.0
    %1646 = vmatpush2.msra.mxu0 0.0
    %1647 = vmatprep.subr.mxu0 0.0
    %1648 = vmatpush2.msra.mxu0 0.0
    %1649 = vmatprep.subr.mxu0 0.0
    %1650 = vmatpush2.msra.mxu0 0.0
    %1651 = vmatprep.subr.mxu0 0.0
    %1652 = vmatpush2.msra.mxu0 0.0
    %1653 = vmatprep.subr.mxu0 0.0
    %1654 = vmatpush2.msra.mxu0 0.0
    %1655 = vmatprep.subr.mxu0 0.0
    %1656 = vmatpush2.msra.mxu0 0.0
    %1657 = vmatprep.subr.mxu0 0.0
    %1658 = vmatpush2.msra.mxu0 0.0
    %1659 = vmatprep.subr.mxu0 0.0
    %1660 = vmatpush2.msra.mxu0 0.0
    %1661 = vmatprep.subr.mxu0 0.0
    %1662 = vmatpush2.msra.mxu0 0.0
    %1663 = vmatprep.subr.mxu0 0.0
    %1664 = vmatpush2.msra.mxu0 0.0
    %1665 = vmatprep.subr.mxu0 0.0
    %1666 = vmatpush2.msra.mxu0 0.0
    %1667 = vmatprep.subr.mxu0 0.0
    %1668 = vmatpush2.msra.mxu0 0.0
    %1669 = vmatprep.subr.mxu0 0.0
    %1670 = vmatpush2.msra.mxu0 0.0
    %1671 = vmatprep.subr.mxu0 0.0
    %1672 = vmatpush2.msra.mxu0 0.0
    %1673 = vmatprep.subr.mxu0 0.0
    %1674 = vmatpush2.msra.mxu0 0.0
    %1675 = vmatprep.mubr.f32.mxu0 0.0
    %1676 = vmatmul.mubr.f32.gmra.mxu0 %v1609
    %v1677 = vpop.f32.mrf.mxu0
    %v1678 = vadd.f32 %v1603, %v1677
    %v1679 = vpop.f32.mrf.mxu0
    %1680 = vdwg.mxu0
    %v1681 = vadd.f32 %v1678, %v532
    %v1682 = vxor.u32 %v1681, 2147483648
    %v1683 = vmul.f32 %v1682, 1.442695
    %v1684 = vpow.pop %v1683
    %v1685 = vadd.f32 %v1684, 1.0
    %v1686 = vrcp.pop %v1685
    %v1687 = vmul.f32 1.0, %v1686
    %v1688 = vtanh.pop %v1681
    %v1689 = vmul.f32 %v1687, %v1412
    %1691 = vrot.lane.b32.xlu0 %v1688, 64
    %v1692 = vpop.permute.xlu0 %1691
    %v1694 = vmul.f32 %v1687, %v1692
    %1696 = vrot.lane.b32.xlu0 %v1694, 32
    %v1697 = vpop.permute.xlu0 %1696
    %v1699 = vadd.f32 %v1689, %v1697
    %v1700 = vtanh.pop %v1699
    %1702 = vrot.lane.b32.xlu0 %v1700, 64
    %v1703 = vpop.permute.xlu0 %1702
    %v1705 = vmul.f32 %v1687, %v1703
    %1707 = vrot.lane.b32.xlu0 %v1705, 32
    %v1708 = vpop.permute.xlu0 %1707
    %s1710 = scalar_lea.vmem %s7, 32
    %1711 = vst.msk [vmem:[%s1710] sm:$0xff] %vm124, %v1708
    %s1712 = scalar_lea.vmem [#allocation2], 40
    %v1713 = vld [vmem:[%s1712] sm:$0xff]
    %v1714 = vld [vmem:[#allocation5] sm:$0xff]
    %v1715 = vld [vmem:[#allocation5 + $0x8] sm:$0xff]
    %v1716 = vld [vmem:[#allocation5 + $0x10] sm:$0xff]
    %v1717 = vld [vmem:[#allocation5 + $0x18] sm:$0xff]
    %1718 = vmatprep.subr.mxu0 0.0
    %1719 = vmatpush1.msra.mxu0 0.0
    %1720 = vmatprep.subr.mxu0 0.0
    %1721 = vmatpush1.msra.mxu0 0.0
    %1722 = vmatprep.subr.mxu0 0.0
    %1723 = vmatpush1.msra.mxu0 0.0
    %1724 = vmatprep.subr.mxu0 0.0
    %1725 = vmatpush1.msra.mxu0 0.0
    %1726 = vmatprep.subr.mxu0 0.0
    %1727 = vmatpush1.msra.mxu0 0.0
    %1728 = vmatprep.subr.mxu0 0.0
    %1729 = vmatpush1.msra.mxu0 0.0
    %1730 = vmatprep.subr.mxu0 0.0
    %1731 = vmatpush1.msra.mxu0 0.0
    %1732 = vmatprep.subr.mxu0 0.0
    %1733 = vmatpush1.msra.mxu0 0.0
    %1734 = vmatprep.subr.mxu0 0.0
    %1735 = vmatpush1.msra.mxu0 0.0
    %1736 = vmatprep.subr.mxu0 0.0
    %1737 = vmatpush1.msra.mxu0 0.0
    %1738 = vmatprep.subr.mxu0 0.0
    %1739 = vmatpush1.msra.mxu0 0.0
    %1740 = vmatprep.subr.mxu0 0.0
    %1741 = vmatpush1.msra.mxu0 0.0
    %1742 = vmatprep.subr.mxu0 0.0
    %1743 = vmatpush1.msra.mxu0 %v1717
    %1744 = vmatprep.subr.mxu0 0.0
    %1745 = vmatpush1.msra.mxu0 %v1716
    %1746 = vmatprep.subr.mxu0 0.0
    %1747 = vmatpush1.msra.mxu0 %v1715
    %1748 = vmatprep.subr.mxu0 0.0
    %1749 = vmatpush1.msra.mxu0 %v1714
    %1750 = vmatprep.subr.mxu0 0.0
    %1751 = vmatpush2.msra.mxu0 0.0
    %1752 = vmatprep.subr.mxu0 0.0
    %1753 = vmatpush2.msra.mxu0 0.0
    %1754 = vmatprep.subr.mxu0 0.0
    %1755 = vmatpush2.msra.mxu0 0.0
    %1756 = vmatprep.subr.mxu0 0.0
    %1757 = vmatpush2.msra.mxu0 0.0
    %1758 = vmatprep.subr.mxu0 0.0
    %1759 = vmatpush2.msra.mxu0 0.0
    %1760 = vmatprep.subr.mxu0 0.0
    %1761 = vmatpush2.msra.mxu0 0.0
    %1762 = vmatprep.subr.mxu0 0.0
    %1763 = vmatpush2.msra.mxu0 0.0
    %1764 = vmatprep.subr.mxu0 0.0
    %1765 = vmatpush2.msra.mxu0 0.0
    %1766 = vmatprep.subr.mxu0 0.0
    %1767 = vmatpush2.msra.mxu0 0.0
    %1768 = vmatprep.subr.mxu0 0.0
    %1769 = vmatpush2.msra.mxu0 0.0
    %1770 = vmatprep.subr.mxu0 0.0
    %1771 = vmatpush2.msra.mxu0 0.0
    %1772 = vmatprep.subr.mxu0 0.0
    %1773 = vmatpush2.msra.mxu0 0.0
    %1774 = vmatprep.subr.mxu0 0.0
    %1775 = vmatpush2.msra.mxu0 0.0
    %1776 = vmatprep.subr.mxu0 0.0
    %1777 = vmatpush2.msra.mxu0 0.0
    %1778 = vmatprep.subr.mxu0 0.0
    %1779 = vmatpush2.msra.mxu0 0.0
    %1780 = vmatprep.subr.mxu0 0.0
    %1781 = vmatpush2.msra.mxu0 0.0
    %1782 = vmatprep.mubr.f32.mxu0 0.0
    %1783 = vmatmul.mubr.f32.gmra.mxu0 %v1609
    %v1784 = vpop.f32.mrf.mxu0
    %v1785 = vadd.f32 0.0, %v1784
    %v1786 = vpop.f32.mrf.mxu0
    %1787 = vdwg.mxu0
    %v1788 = vadd.f32 %v1713, %v1785
    %v1789 = vxor.u32 %v1788, 2147483648
    %v1790 = vmul.f32 %v1789, 1.442695
    %v1791 = vpow.pop %v1790
    %v1792 = vadd.f32 %v1791, 1.0
    %v1793 = vrcp.pop %v1792
    %v1794 = vmul.f32 1.0, %v1793
    %v1795 = vtanh.pop %v1788
    %v1796 = vmul.f32 %v1794, %v1519
    %1798 = vrot.lane.b32.xlu0 %v1795, 64
    %v1799 = vpop.permute.xlu0 %1798
    %v1801 = vmul.f32 %v1794, %v1799
    %1803 = vrot.lane.b32.xlu0 %v1801, 32
    %v1804 = vpop.permute.xlu0 %1803
    %v1806 = vadd.f32 %v1796, %v1804
    %v1807 = vtanh.pop %v1806
    %1809 = vrot.lane.b32.xlu0 %v1807, 64
    %v1810 = vpop.permute.xlu0 %1809
    %v1812 = vmul.f32 %v1794, %v1810
    %v1813 = vld [vmem:[#allocation8] sm:$0xff]
    %v1814 = vld [vmem:[#allocation8 + $0x8] sm:$0xff]
    %v1815 = vld [vmem:[#allocation8 + $0x10] sm:$0xff]
    %v1816 = vld [vmem:[#allocation8 + $0x18] sm:$0xff]
    %v1817 = vld [vmem:[#allocation10] sm:$0xff]
    %v1818 = vld [vmem:[#allocation10 + $0x8] sm:$0xff]
    %v1819 = vld [vmem:[#allocation10 + $0x10] sm:$0xff]
    %v1820 = vld [vmem:[#allocation10 + $0x18] sm:$0xff]
    %v1821 = vsel %vm124, %v1708, 0
    %1823 = vmatprep.subr.mxu0 0.0
    %1824 = vmatpush1.msra.mxu0 0.0
    %1825 = vmatprep.subr.mxu0 0.0
    %1826 = vmatpush1.msra.mxu0 0.0
    %1827 = vmatprep.subr.mxu0 0.0
    %1828 = vmatpush1.msra.mxu0 0.0
    %1829 = vmatprep.subr.mxu0 0.0
    %1830 = vmatpush1.msra.mxu0 0.0
    %1831 = vmatprep.subr.mxu0 0.0
    %1832 = vmatpush1.msra.mxu0 0.0
    %1833 = vmatprep.subr.mxu0 0.0
    %1834 = vmatpush1.msra.mxu0 0.0
    %1835 = vmatprep.subr.mxu0 0.0
    %1836 = vmatpush1.msra.mxu0 0.0
    %1837 = vmatprep.subr.mxu0 0.0
    %1838 = vmatpush1.msra.mxu0 0.0
    %1839 = vmatprep.subr.mxu0 0.0
    %1840 = vmatpush1.msra.mxu0 0.0
    %1841 = vmatprep.subr.mxu0 0.0
    %1842 = vmatpush1.msra.mxu0 0.0
    %1843 = vmatprep.subr.mxu0 0.0
    %1844 = vmatpush1.msra.mxu0 0.0
    %1845 = vmatprep.subr.mxu0 0.0
    %1846 = vmatpush1.msra.mxu0 0.0
    %1847 = vmatprep.subr.mxu0 0.0
    %1848 = vmatpush1.msra.mxu0 %v1820
    %1849 = vmatprep.subr.mxu0 0.0
    %1850 = vmatpush1.msra.mxu0 %v1819
    %1851 = vmatprep.subr.mxu0 0.0
    %1852 = vmatpush1.msra.mxu0 %v1818
    %1853 = vmatprep.subr.mxu0 0.0
    %1854 = vmatpush1.msra.mxu0 %v1817
    %1855 = vmatprep.subr.mxu0 0.0
    %1856 = vmatpush2.msra.mxu0 0.0
    %1857 = vmatprep.subr.mxu0 0.0
    %1858 = vmatpush2.msra.mxu0 0.0
    %1859 = vmatprep.subr.mxu0 0.0
    %1860 = vmatpush2.msra.mxu0 0.0
    %1861 = vmatprep.subr.mxu0 0.0
    %1862 = vmatpush2.msra.mxu0 0.0
    %1863 = vmatprep.subr.mxu0 0.0
    %1864 = vmatpush2.msra.mxu0 0.0
    %1865 = vmatprep.subr.mxu0 0.0
    %1866 = vmatpush2.msra.mxu0 0.0
    %1867 = vmatprep.subr.mxu0 0.0
    %1868 = vmatpush2.msra.mxu0 0.0
    %1869 = vmatprep.subr.mxu0 0.0
    %1870 = vmatpush2.msra.mxu0 0.0
    %1871 = vmatprep.subr.mxu0 0.0
    %1872 = vmatpush2.msra.mxu0 0.0
    %1873 = vmatprep.subr.mxu0 0.0
    %1874 = vmatpush2.msra.mxu0 0.0
    %1875 = vmatprep.subr.mxu0 0.0
    %1876 = vmatpush2.msra.mxu0 0.0
    %1877 = vmatprep.subr.mxu0 0.0
    %1878 = vmatpush2.msra.mxu0 0.0
    %1879 = vmatprep.subr.mxu0 0.0
    %1880 = vmatpush2.msra.mxu0 0.0
    %1881 = vmatprep.subr.mxu0 0.0
    %1882 = vmatpush2.msra.mxu0 0.0
    %1883 = vmatprep.subr.mxu0 0.0
    %1884 = vmatpush2.msra.mxu0 0.0
    %1885 = vmatprep.subr.mxu0 0.0
    %1886 = vmatpush2.msra.mxu0 0.0
    %1887 = vmatprep.mubr.f32.mxu0 0.0
    %1888 = vmatmul.mubr.f32.gmra.mxu0 %v1821
    %v1889 = vpop.f32.mrf.mxu0
    %v1890 = vadd.f32 0.0, %v1889
    %v1891 = vpop.f32.mrf.mxu0
    %1892 = vdwg.mxu0
    %1894 = vrot.lane.b32.xlu0 %v1812, 32
    %v1895 = vpop.permute.xlu0 %1894
    %v1896 = vsel %vm124, %v1895, 0
    %1898 = vmatprep.subr.mxu0 0.0
    %1899 = vmatpush1.msra.mxu0 0.0
    %1900 = vmatprep.subr.mxu0 0.0
    %1901 = vmatpush1.msra.mxu0 0.0
    %1902 = vmatprep.subr.mxu0 0.0
    %1903 = vmatpush1.msra.mxu0 0.0
    %1904 = vmatprep.subr.mxu0 0.0
    %1905 = vmatpush1.msra.mxu0 0.0
    %1906 = vmatprep.subr.mxu0 0.0
    %1907 = vmatpush1.msra.mxu0 0.0
    %1908 = vmatprep.subr.mxu0 0.0
    %1909 = vmatpush1.msra.mxu0 0.0
    %1910 = vmatprep.subr.mxu0 0.0
    %1911 = vmatpush1.msra.mxu0 0.0
    %1912 = vmatprep.subr.mxu0 0.0
    %1913 = vmatpush1.msra.mxu0 0.0
    %1914 = vmatprep.subr.mxu0 0.0
    %1915 = vmatpush1.msra.mxu0 0.0
    %1916 = vmatprep.subr.mxu0 0.0
    %1917 = vmatpush1.msra.mxu0 0.0
    %1918 = vmatprep.subr.mxu0 0.0
    %1919 = vmatpush1.msra.mxu0 0.0
    %1920 = vmatprep.subr.mxu0 0.0
    %1921 = vmatpush1.msra.mxu0 0.0
    %1922 = vmatprep.subr.mxu0 0.0
    %1923 = vmatpush1.msra.mxu0 %v1816
    %1924 = vmatprep.subr.mxu0 0.0
    %1925 = vmatpush1.msra.mxu0 %v1815
    %1926 = vmatprep.subr.mxu0 0.0
    %1927 = vmatpush1.msra.mxu0 %v1814
    %1928 = vmatprep.subr.mxu0 0.0
    %1929 = vmatpush1.msra.mxu0 %v1813
    %1930 = vmatprep.subr.mxu0 0.0
    %1931 = vmatpush2.msra.mxu0 0.0
    %1932 = vmatprep.subr.mxu0 0.0
    %1933 = vmatpush2.msra.mxu0 0.0
    %1934 = vmatprep.subr.mxu0 0.0
    %1935 = vmatpush2.msra.mxu0 0.0
    %1936 = vmatprep.subr.mxu0 0.0
    %1937 = vmatpush2.msra.mxu0 0.0
    %1938 = vmatprep.subr.mxu0 0.0
    %1939 = vmatpush2.msra.mxu0 0.0
    %1940 = vmatprep.subr.mxu0 0.0
    %1941 = vmatpush2.msra.mxu0 0.0
    %1942 = vmatprep.subr.mxu0 0.0
    %1943 = vmatpush2.msra.mxu0 0.0
    %1944 = vmatprep.subr.mxu0 0.0
    %1945 = vmatpush2.msra.mxu0 0.0
    %1946 = vmatprep.subr.mxu0 0.0
    %1947 = vmatpush2.msra.mxu0 0.0
    %1948 = vmatprep.subr.mxu0 0.0
    %1949 = vmatpush2.msra.mxu0 0.0
    %1950 = vmatprep.subr.mxu0 0.0
    %1951 = vmatpush2.msra.mxu0 0.0
    %1952 = vmatprep.subr.mxu0 0.0
    %1953 = vmatpush2.msra.mxu0 0.0
    %1954 = vmatprep.subr.mxu0 0.0
    %1955 = vmatpush2.msra.mxu0 0.0
    %1956 = vmatprep.subr.mxu0 0.0
    %1957 = vmatpush2.msra.mxu0 0.0
    %1958 = vmatprep.subr.mxu0 0.0
    %1959 = vmatpush2.msra.mxu0 0.0
    %1960 = vmatprep.subr.mxu0 0.0
    %1961 = vmatpush2.msra.mxu0 0.0
    %1962 = vmatprep.mubr.f32.mxu0 0.0
    %1963 = vmatmul.mubr.f32.gmra.mxu0 %v1896
    %v1964 = vpop.f32.mrf.mxu0
    %v1965 = vadd.f32 %v1890, %v1964
    %v1966 = vpop.f32.mrf.mxu0
    %1967 = vdwg.mxu0
    %v1968 = vadd.f32 %v1965, %v532
    %v1969 = vxor.u32 %v1968, 2147483648
    %v1970 = vmul.f32 %v1969, 1.442695
    %v1971 = vpow.pop %v1970
    %v1972 = vadd.f32 %v1971, 1.0
    %v1973 = vrcp.pop %v1972
    %v1974 = vmul.f32 1.0, %v1973
    %v1975 = vtanh.pop %v1968
    %v1976 = vmul.f32 %v1974, %v1699
    %1978 = vrot.lane.b32.xlu0 %v1975, 64
    %v1979 = vpop.permute.xlu0 %1978
    %v1981 = vmul.f32 %v1974, %v1979
    %1983 = vrot.lane.b32.xlu0 %v1981, 32
    %v1984 = vpop.permute.xlu0 %1983
    %v1986 = vadd.f32 %v1976, %v1984
    %v1987 = vtanh.pop %v1986
    %1989 = vrot.lane.b32.xlu0 %v1987, 64
    %v1990 = vpop.permute.xlu0 %1989
    %v1992 = vmul.f32 %v1974, %v1990
    %1994 = vrot.lane.b32.xlu0 %v1992, 32
    %v1995 = vpop.permute.xlu0 %1994
    %s1997 = scalar_lea.vmem %s7, 40
    %1998 = vst.msk [vmem:[%s1997] sm:$0xff] %vm124, %v1995
    %s1999 = scalar_lea.vmem [#allocation2], 48
    %v2000 = vld [vmem:[%s1999] sm:$0xff]
    %v2001 = vld [vmem:[#allocation5] sm:$0xff]
    %v2002 = vld [vmem:[#allocation5 + $0x8] sm:$0xff]
    %v2003 = vld [vmem:[#allocation5 + $0x10] sm:$0xff]
    %v2004 = vld [vmem:[#allocation5 + $0x18] sm:$0xff]
    %2005 = vmatprep.subr.mxu0 0.0
    %2006 = vmatpush1.msra.mxu0 0.0
    %2007 = vmatprep.subr.mxu0 0.0
    %2008 = vmatpush1.msra.mxu0 0.0
    %2009 = vmatprep.subr.mxu0 0.0
    %2010 = vmatpush1.msra.mxu0 0.0
    %2011 = vmatprep.subr.mxu0 0.0
    %2012 = vmatpush1.msra.mxu0 0.0
    %2013 = vmatprep.subr.mxu0 0.0
    %2014 = vmatpush1.msra.mxu0 0.0
    %2015 = vmatprep.subr.mxu0 0.0
    %2016 = vmatpush1.msra.mxu0 0.0
    %2017 = vmatprep.subr.mxu0 0.0
    %2018 = vmatpush1.msra.mxu0 0.0
    %2019 = vmatprep.subr.mxu0 0.0
    %2020 = vmatpush1.msra.mxu0 0.0
    %2021 = vmatprep.subr.mxu0 0.0
    %2022 = vmatpush1.msra.mxu0 0.0
    %2023 = vmatprep.subr.mxu0 0.0
    %2024 = vmatpush1.msra.mxu0 0.0
    %2025 = vmatprep.subr.mxu0 0.0
    %2026 = vmatpush1.msra.mxu0 0.0
    %2027 = vmatprep.subr.mxu0 0.0
    %2028 = vmatpush1.msra.mxu0 0.0
    %2029 = vmatprep.subr.mxu0 0.0
    %2030 = vmatpush1.msra.mxu0 %v2004
    %2031 = vmatprep.subr.mxu0 0.0
    %2032 = vmatpush1.msra.mxu0 %v2003
    %2033 = vmatprep.subr.mxu0 0.0
    %2034 = vmatpush1.msra.mxu0 %v2002
    %2035 = vmatprep.subr.mxu0 0.0
    %2036 = vmatpush1.msra.mxu0 %v2001
    %2037 = vmatprep.subr.mxu0 0.0
    %2038 = vmatpush2.msra.mxu0 0.0
    %2039 = vmatprep.subr.mxu0 0.0
    %2040 = vmatpush2.msra.mxu0 0.0
    %2041 = vmatprep.subr.mxu0 0.0
    %2042 = vmatpush2.msra.mxu0 0.0
    %2043 = vmatprep.subr.mxu0 0.0
    %2044 = vmatpush2.msra.mxu0 0.0
    %2045 = vmatprep.subr.mxu0 0.0
    %2046 = vmatpush2.msra.mxu0 0.0
    %2047 = vmatprep.subr.mxu0 0.0
    %2048 = vmatpush2.msra.mxu0 0.0
    %2049 = vmatprep.subr.mxu0 0.0
    %2050 = vmatpush2.msra.mxu0 0.0
    %2051 = vmatprep.subr.mxu0 0.0
    %2052 = vmatpush2.msra.mxu0 0.0
    %2053 = vmatprep.subr.mxu0 0.0
    %2054 = vmatpush2.msra.mxu0 0.0
    %2055 = vmatprep.subr.mxu0 0.0
    %2056 = vmatpush2.msra.mxu0 0.0
    %2057 = vmatprep.subr.mxu0 0.0
    %2058 = vmatpush2.msra.mxu0 0.0
    %2059 = vmatprep.subr.mxu0 0.0
    %2060 = vmatpush2.msra.mxu0 0.0
    %2061 = vmatprep.subr.mxu0 0.0
    %2062 = vmatpush2.msra.mxu0 0.0
    %2063 = vmatprep.subr.mxu0 0.0
    %2064 = vmatpush2.msra.mxu0 0.0
    %2065 = vmatprep.subr.mxu0 0.0
    %2066 = vmatpush2.msra.mxu0 0.0
    %2067 = vmatprep.subr.mxu0 0.0
    %2068 = vmatpush2.msra.mxu0 0.0
    %2069 = vmatprep.mubr.f32.mxu0 0.0
    %2070 = vmatmul.mubr.f32.gmra.mxu0 %v1896
    %v2071 = vpop.f32.mrf.mxu0
    %v2072 = vadd.f32 0.0, %v2071
    %v2073 = vpop.f32.mrf.mxu0
    %2074 = vdwg.mxu0
    %v2075 = vadd.f32 %v2000, %v2072
    %v2076 = vxor.u32 %v2075, 2147483648
    %v2077 = vmul.f32 %v2076, 1.442695
    %v2078 = vpow.pop %v2077
    %v2079 = vadd.f32 %v2078, 1.0
    %v2080 = vrcp.pop %v2079
    %v2081 = vmul.f32 1.0, %v2080
    %v2082 = vtanh.pop %v2075
    %v2083 = vmul.f32 %v2081, %v1806
    %2085 = vrot.lane.b32.xlu0 %v2082, 64
    %v2086 = vpop.permute.xlu0 %2085
    %v2088 = vmul.f32 %v2081, %v2086
    %2090 = vrot.lane.b32.xlu0 %v2088, 32
    %v2091 = vpop.permute.xlu0 %2090
    %v2093 = vadd.f32 %v2083, %v2091
    %v2094 = vtanh.pop %v2093
    %2096 = vrot.lane.b32.xlu0 %v2094, 64
    %v2097 = vpop.permute.xlu0 %2096
    %v2099 = vmul.f32 %v2081, %v2097
    %v2100 = vld [vmem:[#allocation8] sm:$0xff]
    %v2101 = vld [vmem:[#allocation8 + $0x8] sm:$0xff]
    %v2102 = vld [vmem:[#allocation8 + $0x10] sm:$0xff]
    %v2103 = vld [vmem:[#allocation8 + $0x18] sm:$0xff]
    %v2104 = vld [vmem:[#allocation10] sm:$0xff]
    %v2105 = vld [vmem:[#allocation10 + $0x8] sm:$0xff]
    %v2106 = vld [vmem:[#allocation10 + $0x10] sm:$0xff]
    %v2107 = vld [vmem:[#allocation10 + $0x18] sm:$0xff]
    %v2108 = vsel %vm124, %v1995, 0
    %2110 = vmatprep.subr.mxu0 0.0
    %2111 = vmatpush1.msra.mxu0 0.0
    %2112 = vmatprep.subr.mxu0 0.0
    %2113 = vmatpush1.msra.mxu0 0.0
    %2114 = vmatprep.subr.mxu0 0.0
    %2115 = vmatpush1.msra.mxu0 0.0
    %2116 = vmatprep.subr.mxu0 0.0
    %2117 = vmatpush1.msra.mxu0 0.0
    %2118 = vmatprep.subr.mxu0 0.0
    %2119 = vmatpush1.msra.mxu0 0.0
    %2120 = vmatprep.subr.mxu0 0.0
    %2121 = vmatpush1.msra.mxu0 0.0
    %2122 = vmatprep.subr.mxu0 0.0
    %2123 = vmatpush1.msra.mxu0 0.0
    %2124 = vmatprep.subr.mxu0 0.0
    %2125 = vmatpush1.msra.mxu0 0.0
    %2126 = vmatprep.subr.mxu0 0.0
    %2127 = vmatpush1.msra.mxu0 0.0
    %2128 = vmatprep.subr.mxu0 0.0
    %2129 = vmatpush1.msra.mxu0 0.0
    %2130 = vmatprep.subr.mxu0 0.0
    %2131 = vmatpush1.msra.mxu0 0.0
    %2132 = vmatprep.subr.mxu0 0.0
    %2133 = vmatpush1.msra.mxu0 0.0
    %2134 = vmatprep.subr.mxu0 0.0
    %2135 = vmatpush1.msra.mxu0 %v2107
    %2136 = vmatprep.subr.mxu0 0.0
    %2137 = vmatpush1.msra.mxu0 %v2106
    %2138 = vmatprep.subr.mxu0 0.0
    %2139 = vmatpush1.msra.mxu0 %v2105
    %2140 = vmatprep.subr.mxu0 0.0
    %2141 = vmatpush1.msra.mxu0 %v2104
    %2142 = vmatprep.subr.mxu0 0.0
    %2143 = vmatpush2.msra.mxu0 0.0
    %2144 = vmatprep.subr.mxu0 0.0
    %2145 = vmatpush2.msra.mxu0 0.0
    %2146 = vmatprep.subr.mxu0 0.0
    %2147 = vmatpush2.msra.mxu0 0.0
    %2148 = vmatprep.subr.mxu0 0.0
    %2149 = vmatpush2.msra.mxu0 0.0
    %2150 = vmatprep.subr.mxu0 0.0
    %2151 = vmatpush2.msra.mxu0 0.0
    %2152 = vmatprep.subr.mxu0 0.0
    %2153 = vmatpush2.msra.mxu0 0.0
    %2154 = vmatprep.subr.mxu0 0.0
    %2155 = vmatpush2.msra.mxu0 0.0
    %2156 = vmatprep.subr.mxu0 0.0
    %2157 = vmatpush2.msra.mxu0 0.0
    %2158 = vmatprep.subr.mxu0 0.0
    %2159 = vmatpush2.msra.mxu0 0.0
    %2160 = vmatprep.subr.mxu0 0.0
    %2161 = vmatpush2.msra.mxu0 0.0
    %2162 = vmatprep.subr.mxu0 0.0
    %2163 = vmatpush2.msra.mxu0 0.0
    %2164 = vmatprep.subr.mxu0 0.0
    %2165 = vmatpush2.msra.mxu0 0.0
    %2166 = vmatprep.subr.mxu0 0.0
    %2167 = vmatpush2.msra.mxu0 0.0
    %2168 = vmatprep.subr.mxu0 0.0
    %2169 = vmatpush2.msra.mxu0 0.0
    %2170 = vmatprep.subr.mxu0 0.0
    %2171 = vmatpush2.msra.mxu0 0.0
    %2172 = vmatprep.subr.mxu0 0.0
    %2173 = vmatpush2.msra.mxu0 0.0
    %2174 = vmatprep.mubr.f32.mxu0 0.0
    %2175 = vmatmul.mubr.f32.gmra.mxu0 %v2108
    %v2176 = vpop.f32.mrf.mxu0
    %v2177 = vadd.f32 0.0, %v2176
    %v2178 = vpop.f32.mrf.mxu0
    %2179 = vdwg.mxu0
    %2181 = vrot.lane.b32.xlu0 %v2099, 32
    %v2182 = vpop.permute.xlu0 %2181
    %v2183 = vsel %vm124, %v2182, 0
    %2185 = vmatprep.subr.mxu0 0.0
    %2186 = vmatpush1.msra.mxu0 0.0
    %2187 = vmatprep.subr.mxu0 0.0
    %2188 = vmatpush1.msra.mxu0 0.0
    %2189 = vmatprep.subr.mxu0 0.0
    %2190 = vmatpush1.msra.mxu0 0.0
    %2191 = vmatprep.subr.mxu0 0.0
    %2192 = vmatpush1.msra.mxu0 0.0
    %2193 = vmatprep.subr.mxu0 0.0
    %2194 = vmatpush1.msra.mxu0 0.0
    %2195 = vmatprep.subr.mxu0 0.0
    %2196 = vmatpush1.msra.mxu0 0.0
    %2197 = vmatprep.subr.mxu0 0.0
    %2198 = vmatpush1.msra.mxu0 0.0
    %2199 = vmatprep.subr.mxu0 0.0
    %2200 = vmatpush1.msra.mxu0 0.0
    %2201 = vmatprep.subr.mxu0 0.0
    %2202 = vmatpush1.msra.mxu0 0.0
    %2203 = vmatprep.subr.mxu0 0.0
    %2204 = vmatpush1.msra.mxu0 0.0
    %2205 = vmatprep.subr.mxu0 0.0
    %2206 = vmatpush1.msra.mxu0 0.0
    %2207 = vmatprep.subr.mxu0 0.0
    %2208 = vmatpush1.msra.mxu0 0.0
    %2209 = vmatprep.subr.mxu0 0.0
    %2210 = vmatpush1.msra.mxu0 %v2103
    %2211 = vmatprep.subr.mxu0 0.0
    %2212 = vmatpush1.msra.mxu0 %v2102
    %2213 = vmatprep.subr.mxu0 0.0
    %2214 = vmatpush1.msra.mxu0 %v2101
    %2215 = vmatprep.subr.mxu0 0.0
    %2216 = vmatpush1.msra.mxu0 %v2100
    %2217 = vmatprep.subr.mxu0 0.0
    %2218 = vmatpush2.msra.mxu0 0.0
    %2219 = vmatprep.subr.mxu0 0.0
    %2220 = vmatpush2.msra.mxu0 0.0
    %2221 = vmatprep.subr.mxu0 0.0
    %2222 = vmatpush2.msra.mxu0 0.0
    %2223 = vmatprep.subr.mxu0 0.0
    %2224 = vmatpush2.msra.mxu0 0.0
    %2225 = vmatprep.subr.mxu0 0.0
    %2226 = vmatpush2.msra.mxu0 0.0
    %2227 = vmatprep.subr.mxu0 0.0
    %2228 = vmatpush2.msra.mxu0 0.0
    %2229 = vmatprep.subr.mxu0 0.0
    %2230 = vmatpush2.msra.mxu0 0.0
    %2231 = vmatprep.subr.mxu0 0.0
    %2232 = vmatpush2.msra.mxu0 0.0
    %2233 = vmatprep.subr.mxu0 0.0
    %2234 = vmatpush2.msra.mxu0 0.0
    %2235 = vmatprep.subr.mxu0 0.0
    %2236 = vmatpush2.msra.mxu0 0.0
    %2237 = vmatprep.subr.mxu0 0.0
    %2238 = vmatpush2.msra.mxu0 0.0
    %2239 = vmatprep.subr.mxu0 0.0
    %2240 = vmatpush2.msra.mxu0 0.0
    %2241 = vmatprep.subr.mxu0 0.0
    %2242 = vmatpush2.msra.mxu0 0.0
    %2243 = vmatprep.subr.mxu0 0.0
    %2244 = vmatpush2.msra.mxu0 0.0
    %2245 = vmatprep.subr.mxu0 0.0
    %2246 = vmatpush2.msra.mxu0 0.0
    %2247 = vmatprep.subr.mxu0 0.0
    %2248 = vmatpush2.msra.mxu0 0.0
    %2249 = vmatprep.mubr.f32.mxu0 0.0
    %2250 = vmatmul.mubr.f32.gmra.mxu0 %v2183
    %v2251 = vpop.f32.mrf.mxu0
    %v2252 = vadd.f32 %v2177, %v2251
    %v2253 = vpop.f32.mrf.mxu0
    %2254 = vdwg.mxu0
    %v2255 = vadd.f32 %v2252, %v532
    %v2256 = vxor.u32 %v2255, 2147483648
    %v2257 = vmul.f32 %v2256, 1.442695
    %v2258 = vpow.pop %v2257
    %v2259 = vadd.f32 %v2258, 1.0
    %v2260 = vrcp.pop %v2259
    %v2261 = vmul.f32 1.0, %v2260
    %v2262 = vtanh.pop %v2255
    %v2263 = vmul.f32 %v2261, %v1986
    %2265 = vrot.lane.b32.xlu0 %v2262, 64
    %v2266 = vpop.permute.xlu0 %2265
    %v2268 = vmul.f32 %v2261, %v2266
    %2270 = vrot.lane.b32.xlu0 %v2268, 32
    %v2271 = vpop.permute.xlu0 %2270
    %v2273 = vadd.f32 %v2263, %v2271
    %v2274 = vtanh.pop %v2273
    %2276 = vrot.lane.b32.xlu0 %v2274, 64
    %v2277 = vpop.permute.xlu0 %2276
    %v2279 = vmul.f32 %v2261, %v2277
    %2281 = vrot.lane.b32.xlu0 %v2279, 32
    %v2282 = vpop.permute.xlu0 %2281
    %s2284 = scalar_lea.vmem %s7, 48
    %2285 = vst.msk [vmem:[%s2284] sm:$0xff] %vm124, %v2282
    %s2286 = scalar_lea.vmem [#allocation2], 56
    %v2287 = vld [vmem:[%s2286] sm:$0xff]
    %v2288 = vld [vmem:[#allocation5] sm:$0xff]
    %v2289 = vld [vmem:[#allocation5 + $0x8] sm:$0xff]
    %v2290 = vld [vmem:[#allocation5 + $0x10] sm:$0xff]
    %v2291 = vld [vmem:[#allocation5 + $0x18] sm:$0xff]
    %2292 = vmatprep.subr.mxu0 0.0
    %2293 = vmatpush1.msra.mxu0 0.0
    %2294 = vmatprep.subr.mxu0 0.0
    %2295 = vmatpush1.msra.mxu0 0.0
    %2296 = vmatprep.subr.mxu0 0.0
    %2297 = vmatpush1.msra.mxu0 0.0
    %2298 = vmatprep.subr.mxu0 0.0
    %2299 = vmatpush1.msra.mxu0 0.0
    %2300 = vmatprep.subr.mxu0 0.0
    %2301 = vmatpush1.msra.mxu0 0.0
    %2302 = vmatprep.subr.mxu0 0.0
    %2303 = vmatpush1.msra.mxu0 0.0
    %2304 = vmatprep.subr.mxu0 0.0
    %2305 = vmatpush1.msra.mxu0 0.0
    %2306 = vmatprep.subr.mxu0 0.0
    %2307 = vmatpush1.msra.mxu0 0.0
    %2308 = vmatprep.subr.mxu0 0.0
    %2309 = vmatpush1.msra.mxu0 0.0
    %2310 = vmatprep.subr.mxu0 0.0
    %2311 = vmatpush1.msra.mxu0 0.0
    %2312 = vmatprep.subr.mxu0 0.0
    %2313 = vmatpush1.msra.mxu0 0.0
    %2314 = vmatprep.subr.mxu0 0.0
    %2315 = vmatpush1.msra.mxu0 0.0
    %2316 = vmatprep.subr.mxu0 0.0
    %2317 = vmatpush1.msra.mxu0 %v2291
    %2318 = vmatprep.subr.mxu0 0.0
    %2319 = vmatpush1.msra.mxu0 %v2290
    %2320 = vmatprep.subr.mxu0 0.0
    %2321 = vmatpush1.msra.mxu0 %v2289
    %2322 = vmatprep.subr.mxu0 0.0
    %2323 = vmatpush1.msra.mxu0 %v2288
    %2324 = vmatprep.subr.mxu0 0.0
    %2325 = vmatpush2.msra.mxu0 0.0
    %2326 = vmatprep.subr.mxu0 0.0
    %2327 = vmatpush2.msra.mxu0 0.0
    %2328 = vmatprep.subr.mxu0 0.0
    %2329 = vmatpush2.msra.mxu0 0.0
    %2330 = vmatprep.subr.mxu0 0.0
    %2331 = vmatpush2.msra.mxu0 0.0
    %2332 = vmatprep.subr.mxu0 0.0
    %2333 = vmatpush2.msra.mxu0 0.0
    %2334 = vmatprep.subr.mxu0 0.0
    %2335 = vmatpush2.msra.mxu0 0.0
    %2336 = vmatprep.subr.mxu0 0.0
    %2337 = vmatpush2.msra.mxu0 0.0
    %2338 = vmatprep.subr.mxu0 0.0
    %2339 = vmatpush2.msra.mxu0 0.0
    %2340 = vmatprep.subr.mxu0 0.0
    %2341 = vmatpush2.msra.mxu0 0.0
    %2342 = vmatprep.subr.mxu0 0.0
    %2343 = vmatpush2.msra.mxu0 0.0
    %2344 = vmatprep.subr.mxu0 0.0
    %2345 = vmatpush2.msra.mxu0 0.0
    %2346 = vmatprep.subr.mxu0 0.0
    %2347 = vmatpush2.msra.mxu0 0.0
    %2348 = vmatprep.subr.mxu0 0.0
    %2349 = vmatpush2.msra.mxu0 0.0
    %2350 = vmatprep.subr.mxu0 0.0
    %2351 = vmatpush2.msra.mxu0 0.0
    %2352 = vmatprep.subr.mxu0 0.0
    %2353 = vmatpush2.msra.mxu0 0.0
    %2354 = vmatprep.subr.mxu0 0.0
    %2355 = vmatpush2.msra.mxu0 0.0
    %2356 = vmatprep.mubr.f32.mxu0 0.0
    %2357 = vmatmul.mubr.f32.gmra.mxu0 %v2183
    %v2358 = vpop.f32.mrf.mxu0
    %v2359 = vadd.f32 0.0, %v2358
    %v2360 = vpop.f32.mrf.mxu0
    %2361 = vdwg.mxu0
    %v2362 = vadd.f32 %v2287, %v2359
    %v2363 = vxor.u32 %v2362, 2147483648
    %v2364 = vmul.f32 %v2363, 1.442695
    %v2365 = vpow.pop %v2364
    %v2366 = vadd.f32 %v2365, 1.0
    %v2367 = vrcp.pop %v2366
    %v2368 = vmul.f32 1.0, %v2367
    %v2369 = vtanh.pop %v2362
    %v2370 = vmul.f32 %v2368, %v2093
    %2372 = vrot.lane.b32.xlu0 %v2369, 64
    %v2373 = vpop.permute.xlu0 %2372
    %v2375 = vmul.f32 %v2368, %v2373
    %2377 = vrot.lane.b32.xlu0 %v2375, 32
    %v2378 = vpop.permute.xlu0 %2377
    %v2380 = vadd.f32 %v2370, %v2378
    %v2381 = vtanh.pop %v2380
    %2383 = vrot.lane.b32.xlu0 %v2381, 64
    %v2384 = vpop.permute.xlu0 %2383
    %v2386 = vmul.f32 %v2368, %v2384
    %v2387 = vld [vmem:[#allocation8] sm:$0xff]
    %v2388 = vld [vmem:[#allocation8 + $0x8] sm:$0xff]
    %v2389 = vld [vmem:[#allocation8 + $0x10] sm:$0xff]
    %v2390 = vld [vmem:[#allocation8 + $0x18] sm:$0xff]
    %v2391 = vld [vmem:[#allocation10] sm:$0xff]
    %v2392 = vld [vmem:[#allocation10 + $0x8] sm:$0xff]
    %v2393 = vld [vmem:[#allocation10 + $0x10] sm:$0xff]
    %v2394 = vld [vmem:[#allocation10 + $0x18] sm:$0xff]
    %v2395 = vsel %vm124, %v2282, 0
    %2397 = vmatprep.subr.mxu0 0.0
    %2398 = vmatpush1.msra.mxu0 0.0
    %2399 = vmatprep.subr.mxu0 0.0
    %2400 = vmatpush1.msra.mxu0 0.0
    %2401 = vmatprep.subr.mxu0 0.0
    %2402 = vmatpush1.msra.mxu0 0.0
    %2403 = vmatprep.subr.mxu0 0.0
    %2404 = vmatpush1.msra.mxu0 0.0
    %2405 = vmatprep.subr.mxu0 0.0
    %2406 = vmatpush1.msra.mxu0 0.0
    %2407 = vmatprep.subr.mxu0 0.0
    %2408 = vmatpush1.msra.mxu0 0.0
    %2409 = vmatprep.subr.mxu0 0.0
    %2410 = vmatpush1.msra.mxu0 0.0
    %2411 = vmatprep.subr.mxu0 0.0
    %2412 = vmatpush1.msra.mxu0 0.0
    %2413 = vmatprep.subr.mxu0 0.0
    %2414 = vmatpush1.msra.mxu0 0.0
    %2415 = vmatprep.subr.mxu0 0.0
    %2416 = vmatpush1.msra.mxu0 0.0
    %2417 = vmatprep.subr.mxu0 0.0
    %2418 = vmatpush1.msra.mxu0 0.0
    %2419 = vmatprep.subr.mxu0 0.0
    %2420 = vmatpush1.msra.mxu0 0.0
    %2421 = vmatprep.subr.mxu0 0.0
    %2422 = vmatpush1.msra.mxu0 %v2394
    %2423 = vmatprep.subr.mxu0 0.0
    %2424 = vmatpush1.msra.mxu0 %v2393
    %2425 = vmatprep.subr.mxu0 0.0
    %2426 = vmatpush1.msra.mxu0 %v2392
    %2427 = vmatprep.subr.mxu0 0.0
    %2428 = vmatpush1.msra.mxu0 %v2391
    %2429 = vmatprep.subr.mxu0 0.0
    %2430 = vmatpush2.msra.mxu0 0.0
    %2431 = vmatprep.subr.mxu0 0.0
    %2432 = vmatpush2.msra.mxu0 0.0
    %2433 = vmatprep.subr.mxu0 0.0
    %2434 = vmatpush2.msra.mxu0 0.0
    %2435 = vmatprep.subr.mxu0 0.0
    %2436 = vmatpush2.msra.mxu0 0.0
    %2437 = vmatprep.subr.mxu0 0.0
    %2438 = vmatpush2.msra.mxu0 0.0
    %2439 = vmatprep.subr.mxu0 0.0
    %2440 = vmatpush2.msra.mxu0 0.0
    %2441 = vmatprep.subr.mxu0 0.0
    %2442 = vmatpush2.msra.mxu0 0.0
    %2443 = vmatprep.subr.mxu0 0.0
    %2444 = vmatpush2.msra.mxu0 0.0
    %2445 = vmatprep.subr.mxu0 0.0
    %2446 = vmatpush2.msra.mxu0 0.0
    %2447 = vmatprep.subr.mxu0 0.0
    %2448 = vmatpush2.msra.mxu0 0.0
    %2449 = vmatprep.subr.mxu0 0.0
    %2450 = vmatpush2.msra.mxu0 0.0
    %2451 = vmatprep.subr.mxu0 0.0
    %2452 = vmatpush2.msra.mxu0 0.0
    %2453 = vmatprep.subr.mxu0 0.0
    %2454 = vmatpush2.msra.mxu0 0.0
    %2455 = vmatprep.subr.mxu0 0.0
    %2456 = vmatpush2.msra.mxu0 0.0
    %2457 = vmatprep.subr.mxu0 0.0
    %2458 = vmatpush2.msra.mxu0 0.0
    %2459 = vmatprep.subr.mxu0 0.0
    %2460 = vmatpush2.msra.mxu0 0.0
    %2461 = vmatprep.mubr.f32.mxu0 0.0
    %2462 = vmatmul.mubr.f32.gmra.mxu0 %v2395
    %v2463 = vpop.f32.mrf.mxu0
    %v2464 = vadd.f32 0.0, %v2463
    %v2465 = vpop.f32.mrf.mxu0
    %2466 = vdwg.mxu0
    %2468 = vrot.lane.b32.xlu0 %v2386, 32
    %v2469 = vpop.permute.xlu0 %2468
    %v2470 = vsel %vm124, %v2469, 0
    %2472 = vmatprep.subr.mxu0 0.0
    %2473 = vmatpush1.msra.mxu0 0.0
    %2474 = vmatprep.subr.mxu0 0.0
    %2475 = vmatpush1.msra.mxu0 0.0
    %2476 = vmatprep.subr.mxu0 0.0
    %2477 = vmatpush1.msra.mxu0 0.0
    %2478 = vmatprep.subr.mxu0 0.0
    %2479 = vmatpush1.msra.mxu0 0.0
    %2480 = vmatprep.subr.mxu0 0.0
    %2481 = vmatpush1.msra.mxu0 0.0
    %2482 = vmatprep.subr.mxu0 0.0
    %2483 = vmatpush1.msra.mxu0 0.0
    %2484 = vmatprep.subr.mxu0 0.0
    %2485 = vmatpush1.msra.mxu0 0.0
    %2486 = vmatprep.subr.mxu0 0.0
    %2487 = vmatpush1.msra.mxu0 0.0
    %2488 = vmatprep.subr.mxu0 0.0
    %2489 = vmatpush1.msra.mxu0 0.0
    %2490 = vmatprep.subr.mxu0 0.0
    %2491 = vmatpush1.msra.mxu0 0.0
    %2492 = vmatprep.subr.mxu0 0.0
    %2493 = vmatpush1.msra.mxu0 0.0
    %2494 = vmatprep.subr.mxu0 0.0
    %2495 = vmatpush1.msra.mxu0 0.0
    %2496 = vmatprep.subr.mxu0 0.0
    %2497 = vmatpush1.msra.mxu0 %v2390
    %2498 = vmatprep.subr.mxu0 0.0
    %2499 = vmatpush1.msra.mxu0 %v2389
    %2500 = vmatprep.subr.mxu0 0.0
    %2501 = vmatpush1.msra.mxu0 %v2388
    %2502 = vmatprep.subr.mxu0 0.0
    %2503 = vmatpush1.msra.mxu0 %v2387
    %2504 = vmatprep.subr.mxu0 0.0
    %2505 = vmatpush2.msra.mxu0 0.0
    %2506 = vmatprep.subr.mxu0 0.0
    %2507 = vmatpush2.msra.mxu0 0.0
    %2508 = vmatprep.subr.mxu0 0.0
    %2509 = vmatpush2.msra.mxu0 0.0
    %2510 = vmatprep.subr.mxu0 0.0
    %2511 = vmatpush2.msra.mxu0 0.0
    %2512 = vmatprep.subr.mxu0 0.0
    %2513 = vmatpush2.msra.mxu0 0.0
    %2514 = vmatprep.subr.mxu0 0.0
    %2515 = vmatpush2.msra.mxu0 0.0
    %2516 = vmatprep.subr.mxu0 0.0
    %2517 = vmatpush2.msra.mxu0 0.0
    %2518 = vmatprep.subr.mxu0 0.0
    %2519 = vmatpush2.msra.mxu0 0.0
    %2520 = vmatprep.subr.mxu0 0.0
    %2521 = vmatpush2.msra.mxu0 0.0
    %2522 = vmatprep.subr.mxu0 0.0
    %2523 = vmatpush2.msra.mxu0 0.0
    %2524 = vmatprep.subr.mxu0 0.0
    %2525 = vmatpush2.msra.mxu0 0.0
    %2526 = vmatprep.subr.mxu0 0.0
    %2527 = vmatpush2.msra.mxu0 0.0
    %2528 = vmatprep.subr.mxu0 0.0
    %2529 = vmatpush2.msra.mxu0 0.0
    %2530 = vmatprep.subr.mxu0 0.0
    %2531 = vmatpush2.msra.mxu0 0.0
    %2532 = vmatprep.subr.mxu0 0.0
    %2533 = vmatpush2.msra.mxu0 0.0
    %2534 = vmatprep.subr.mxu0 0.0
    %2535 = vmatpush2.msra.mxu0 0.0
    %2536 = vmatprep.mubr.f32.mxu0 0.0
    %2537 = vmatmul.mubr.f32.gmra.mxu0 %v2470
    %v2538 = vpop.f32.mrf.mxu0
    %v2539 = vadd.f32 %v2464, %v2538
    %v2540 = vpop.f32.mrf.mxu0
    %2541 = vdwg.mxu0
    %v2542 = vadd.f32 %v2539, %v532
    %v2543 = vxor.u32 %v2542, 2147483648
    %v2544 = vmul.f32 %v2543, 1.442695
    %v2545 = vpow.pop %v2544
    %v2546 = vadd.f32 %v2545, 1.0
    %v2547 = vrcp.pop %v2546
    %v2548 = vmul.f32 1.0, %v2547
    %v2549 = vtanh.pop %v2542
    %v2550 = vmul.f32 %v2548, %v2273
    %2552 = vrot.lane.b32.xlu0 %v2549, 64
    %v2553 = vpop.permute.xlu0 %2552
    %v2555 = vmul.f32 %v2548, %v2553
    %2557 = vrot.lane.b32.xlu0 %v2555, 32
    %v2558 = vpop.permute.xlu0 %2557
    %v2560 = vadd.f32 %v2550, %v2558
    %v2561 = vtanh.pop %v2560
    %2563 = vrot.lane.b32.xlu0 %v2561, 64
    %v2564 = vpop.permute.xlu0 %2563
    %v2566 = vmul.f32 %v2548, %v2564
    %2568 = vrot.lane.b32.xlu0 %v2566, 32
    %v2569 = vpop.permute.xlu0 %2568
    %s2571 = scalar_lea.vmem %s7, 56
    %2572 = vst.msk [vmem:[%s2571] sm:$0xff] %vm124, %v2569
    %s2573 = scalar_lea.vmem [#allocation2], 64
    %v2574 = vld [vmem:[%s2573] sm:$0xff]
    %v2575 = vld [vmem:[#allocation5] sm:$0xff]
    %v2576 = vld [vmem:[#allocation5 + $0x8] sm:$0xff]
    %v2577 = vld [vmem:[#allocation5 + $0x10] sm:$0xff]
    %v2578 = vld [vmem:[#allocation5 + $0x18] sm:$0xff]
    %2579 = vmatprep.subr.mxu0 0.0
    %2580 = vmatpush1.msra.mxu0 0.0
    %2581 = vmatprep.subr.mxu0 0.0
    %2582 = vmatpush1.msra.mxu0 0.0
    %2583 = vmatprep.subr.mxu0 0.0
    %2584 = vmatpush1.msra.mxu0 0.0
    %2585 = vmatprep.subr.mxu0 0.0
    %2586 = vmatpush1.msra.mxu0 0.0
    %2587 = vmatprep.subr.mxu0 0.0
    %2588 = vmatpush1.msra.mxu0 0.0
    %2589 = vmatprep.subr.mxu0 0.0
    %2590 = vmatpush1.msra.mxu0 0.0
    %2591 = vmatprep.subr.mxu0 0.0
    %2592 = vmatpush1.msra.mxu0 0.0
    %2593 = vmatprep.subr.mxu0 0.0
    %2594 = vmatpush1.msra.mxu0 0.0
    %2595 = vmatprep.subr.mxu0 0.0
    %2596 = vmatpush1.msra.mxu0 0.0
    %2597 = vmatprep.subr.mxu0 0.0
    %2598 = vmatpush1.msra.mxu0 0.0
    %2599 = vmatprep.subr.mxu0 0.0
    %2600 = vmatpush1.msra.mxu0 0.0
    %2601 = vmatprep.subr.mxu0 0.0
    %2602 = vmatpush1.msra.mxu0 0.0
    %2603 = vmatprep.subr.mxu0 0.0
    %2604 = vmatpush1.msra.mxu0 %v2578
    %2605 = vmatprep.subr.mxu0 0.0
    %2606 = vmatpush1.msra.mxu0 %v2577
    %2607 = vmatprep.subr.mxu0 0.0
    %2608 = vmatpush1.msra.mxu0 %v2576
    %2609 = vmatprep.subr.mxu0 0.0
    %2610 = vmatpush1.msra.mxu0 %v2575
    %2611 = vmatprep.subr.mxu0 0.0
    %2612 = vmatpush2.msra.mxu0 0.0
    %2613 = vmatprep.subr.mxu0 0.0
    %2614 = vmatpush2.msra.mxu0 0.0
    %2615 = vmatprep.subr.mxu0 0.0
    %2616 = vmatpush2.msra.mxu0 0.0
    %2617 = vmatprep.subr.mxu0 0.0
    %2618 = vmatpush2.msra.mxu0 0.0
    %2619 = vmatprep.subr.mxu0 0.0
    %2620 = vmatpush2.msra.mxu0 0.0
    %2621 = vmatprep.subr.mxu0 0.0
    %2622 = vmatpush2.msra.mxu0 0.0
    %2623 = vmatprep.subr.mxu0 0.0
    %2624 = vmatpush2.msra.mxu0 0.0
    %2625 = vmatprep.subr.mxu0 0.0
    %2626 = vmatpush2.msra.mxu0 0.0
    %2627 = vmatprep.subr.mxu0 0.0
    %2628 = vmatpush2.msra.mxu0 0.0
    %2629 = vmatprep.subr.mxu0 0.0
    %2630 = vmatpush2.msra.mxu0 0.0
    %2631 = vmatprep.subr.mxu0 0.0
    %2632 = vmatpush2.msra.mxu0 0.0
    %2633 = vmatprep.subr.mxu0 0.0
    %2634 = vmatpush2.msra.mxu0 0.0
    %2635 = vmatprep.subr.mxu0 0.0
    %2636 = vmatpush2.msra.mxu0 0.0
    %2637 = vmatprep.subr.mxu0 0.0
    %2638 = vmatpush2.msra.mxu0 0.0
    %2639 = vmatprep.subr.mxu0 0.0
    %2640 = vmatpush2.msra.mxu0 0.0
    %2641 = vmatprep.subr.mxu0 0.0
    %2642 = vmatpush2.msra.mxu0 0.0
    %2643 = vmatprep.mubr.f32.mxu0 0.0
    %2644 = vmatmul.mubr.f32.gmra.mxu0 %v2470
    %v2645 = vpop.f32.mrf.mxu0
    %v2646 = vadd.f32 0.0, %v2645
    %v2647 = vpop.f32.mrf.mxu0
    %2648 = vdwg.mxu0
    %v2649 = vadd.f32 %v2574, %v2646
    %v2650 = vxor.u32 %v2649, 2147483648
    %v2651 = vmul.f32 %v2650, 1.442695
    %v2652 = vpow.pop %v2651
    %v2653 = vadd.f32 %v2652, 1.0
    %v2654 = vrcp.pop %v2653
    %v2655 = vmul.f32 1.0, %v2654
    %v2656 = vtanh.pop %v2649
    %v2657 = vmul.f32 %v2655, %v2380
    %2659 = vrot.lane.b32.xlu0 %v2656, 64
    %v2660 = vpop.permute.xlu0 %2659
    %v2662 = vmul.f32 %v2655, %v2660
    %2664 = vrot.lane.b32.xlu0 %v2662, 32
    %v2665 = vpop.permute.xlu0 %2664
    %v2667 = vadd.f32 %v2657, %v2665
    %v2668 = vtanh.pop %v2667
    %2670 = vrot.lane.b32.xlu0 %v2668, 64
    %v2671 = vpop.permute.xlu0 %2670
    %v2673 = vmul.f32 %v2655, %v2671
    %v2674 = vld [vmem:[#allocation8] sm:$0xff]
    %v2675 = vld [vmem:[#allocation8 + $0x8] sm:$0xff]
    %v2676 = vld [vmem:[#allocation8 + $0x10] sm:$0xff]
    %v2677 = vld [vmem:[#allocation8 + $0x18] sm:$0xff]
    %v2678 = vld [vmem:[#allocation10] sm:$0xff]
    %v2679 = vld [vmem:[#allocation10 + $0x8] sm:$0xff]
    %v2680 = vld [vmem:[#allocation10 + $0x10] sm:$0xff]
    %v2681 = vld [vmem:[#allocation10 + $0x18] sm:$0xff]
    %v2682 = vsel %vm124, %v2569, 0
    %2684 = vmatprep.subr.mxu0 0.0
    %2685 = vmatpush1.msra.mxu0 0.0
    %2686 = vmatprep.subr.mxu0 0.0
    %2687 = vmatpush1.msra.mxu0 0.0
    %2688 = vmatprep.subr.mxu0 0.0
    %2689 = vmatpush1.msra.mxu0 0.0
    %2690 = vmatprep.subr.mxu0 0.0
    %2691 = vmatpush1.msra.mxu0 0.0
    %2692 = vmatprep.subr.mxu0 0.0
    %2693 = vmatpush1.msra.mxu0 0.0
    %2694 = vmatprep.subr.mxu0 0.0
    %2695 = vmatpush1.msra.mxu0 0.0
    %2696 = vmatprep.subr.mxu0 0.0
    %2697 = vmatpush1.msra.mxu0 0.0
    %2698 = vmatprep.subr.mxu0 0.0
    %2699 = vmatpush1.msra.mxu0 0.0
    %2700 = vmatprep.subr.mxu0 0.0
    %2701 = vmatpush1.msra.mxu0 0.0
    %2702 = vmatprep.subr.mxu0 0.0
    %2703 = vmatpush1.msra.mxu0 0.0
    %2704 = vmatprep.subr.mxu0 0.0
    %2705 = vmatpush1.msra.mxu0 0.0
    %2706 = vmatprep.subr.mxu0 0.0
    %2707 = vmatpush1.msra.mxu0 0.0
    %2708 = vmatprep.subr.mxu0 0.0
    %2709 = vmatpush1.msra.mxu0 %v2681
    %2710 = vmatprep.subr.mxu0 0.0
    %2711 = vmatpush1.msra.mxu0 %v2680
    %2712 = vmatprep.subr.mxu0 0.0
    %2713 = vmatpush1.msra.mxu0 %v2679
    %2714 = vmatprep.subr.mxu0 0.0
    %2715 = vmatpush1.msra.mxu0 %v2678
    %2716 = vmatprep.subr.mxu0 0.0
    %2717 = vmatpush2.msra.mxu0 0.0
    %2718 = vmatprep.subr.mxu0 0.0
    %2719 = vmatpush2.msra.mxu0 0.0
    %2720 = vmatprep.subr.mxu0 0.0
    %2721 = vmatpush2.msra.mxu0 0.0
    %2722 = vmatprep.subr.mxu0 0.0
    %2723 = vmatpush2.msra.mxu0 0.0
    %2724 = vmatprep.subr.mxu0 0.0
    %2725 = vmatpush2.msra.mxu0 0.0
    %2726 = vmatprep.subr.mxu0 0.0
    %2727 = vmatpush2.msra.mxu0 0.0
    %2728 = vmatprep.subr.mxu0 0.0
    %2729 = vmatpush2.msra.mxu0 0.0
    %2730 = vmatprep.subr.mxu0 0.0
    %2731 = vmatpush2.msra.mxu0 0.0
    %2732 = vmatprep.subr.mxu0 0.0
    %2733 = vmatpush2.msra.mxu0 0.0
    %2734 = vmatprep.subr.mxu0 0.0
    %2735 = vmatpush2.msra.mxu0 0.0
    %2736 = vmatprep.subr.mxu0 0.0
    %2737 = vmatpush2.msra.mxu0 0.0
    %2738 = vmatprep.subr.mxu0 0.0
    %2739 = vmatpush2.msra.mxu0 0.0
    %2740 = vmatprep.subr.mxu0 0.0
    %2741 = vmatpush2.msra.mxu0 0.0
    %2742 = vmatprep.subr.mxu0 0.0
    %2743 = vmatpush2.msra.mxu0 0.0
    %2744 = vmatprep.subr.mxu0 0.0
    %2745 = vmatpush2.msra.mxu0 0.0
    %2746 = vmatprep.subr.mxu0 0.0
    %2747 = vmatpush2.msra.mxu0 0.0
    %2748 = vmatprep.mubr.f32.mxu0 0.0
    %2749 = vmatmul.mubr.f32.gmra.mxu0 %v2682
    %v2750 = vpop.f32.mrf.mxu0
    %v2751 = vadd.f32 0.0, %v2750
    %v2752 = vpop.f32.mrf.mxu0
    %2753 = vdwg.mxu0
    %2755 = vrot.lane.b32.xlu0 %v2673, 32
    %v2756 = vpop.permute.xlu0 %2755
    %v2757 = vsel %vm124, %v2756, 0
    %2759 = vmatprep.subr.mxu0 0.0
    %2760 = vmatpush1.msra.mxu0 0.0
    %2761 = vmatprep.subr.mxu0 0.0
    %2762 = vmatpush1.msra.mxu0 0.0
    %2763 = vmatprep.subr.mxu0 0.0
    %2764 = vmatpush1.msra.mxu0 0.0
    %2765 = vmatprep.subr.mxu0 0.0
    %2766 = vmatpush1.msra.mxu0 0.0
    %2767 = vmatprep.subr.mxu0 0.0
    %2768 = vmatpush1.msra.mxu0 0.0
    %2769 = vmatprep.subr.mxu0 0.0
    %2770 = vmatpush1.msra.mxu0 0.0
    %2771 = vmatprep.subr.mxu0 0.0
    %2772 = vmatpush1.msra.mxu0 0.0
    %2773 = vmatprep.subr.mxu0 0.0
    %2774 = vmatpush1.msra.mxu0 0.0
    %2775 = vmatprep.subr.mxu0 0.0
    %2776 = vmatpush1.msra.mxu0 0.0
    %2777 = vmatprep.subr.mxu0 0.0
    %2778 = vmatpush1.msra.mxu0 0.0
    %2779 = vmatprep.subr.mxu0 0.0
    %2780 = vmatpush1.msra.mxu0 0.0
    %2781 = vmatprep.subr.mxu0 0.0
    %2782 = vmatpush1.msra.mxu0 0.0
    %2783 = vmatprep.subr.mxu0 0.0
    %2784 = vmatpush1.msra.mxu0 %v2677
    %2785 = vmatprep.subr.mxu0 0.0
    %2786 = vmatpush1.msra.mxu0 %v2676
    %2787 = vmatprep.subr.mxu0 0.0
    %2788 = vmatpush1.msra.mxu0 %v2675
    %2789 = vmatprep.subr.mxu0 0.0
    %2790 = vmatpush1.msra.mxu0 %v2674
    %2791 = vmatprep.subr.mxu0 0.0
    %2792 = vmatpush2.msra.mxu0 0.0
    %2793 = vmatprep.subr.mxu0 0.0
    %2794 = vmatpush2.msra.mxu0 0.0
    %2795 = vmatprep.subr.mxu0 0.0
    %2796 = vmatpush2.msra.mxu0 0.0
    %2797 = vmatprep.subr.mxu0 0.0
    %2798 = vmatpush2.msra.mxu0 0.0
    %2799 = vmatprep.subr.mxu0 0.0
    %2800 = vmatpush2.msra.mxu0 0.0
    %2801 = vmatprep.subr.mxu0 0.0
    %2802 = vmatpush2.msra.mxu0 0.0
    %2803 = vmatprep.subr.mxu0 0.0
    %2804 = vmatpush2.msra.mxu0 0.0
    %2805 = vmatprep.subr.mxu0 0.0
    %2806 = vmatpush2.msra.mxu0 0.0
    %2807 = vmatprep.subr.mxu0 0.0
    %2808 = vmatpush2.msra.mxu0 0.0
    %2809 = vmatprep.subr.mxu0 0.0
    %2810 = vmatpush2.msra.mxu0 0.0
    %2811 = vmatprep.subr.mxu0 0.0
    %2812 = vmatpush2.msra.mxu0 0.0
    %2813 = vmatprep.subr.mxu0 0.0
    %2814 = vmatpush2.msra.mxu0 0.0
    %2815 = vmatprep.subr.mxu0 0.0
    %2816 = vmatpush2.msra.mxu0 0.0
    %2817 = vmatprep.subr.mxu0 0.0
    %2818 = vmatpush2.msra.mxu0 0.0
    %2819 = vmatprep.subr.mxu0 0.0
    %2820 = vmatpush2.msra.mxu0 0.0
    %2821 = vmatprep.subr.mxu0 0.0
    %2822 = vmatpush2.msra.mxu0 0.0
    %2823 = vmatprep.mubr.f32.mxu0 0.0
    %2824 = vmatmul.mubr.f32.gmra.mxu0 %v2757
    %v2825 = vpop.f32.mrf.mxu0
    %v2826 = vadd.f32 %v2751, %v2825
    %v2827 = vpop.f32.mrf.mxu0
    %2828 = vdwg.mxu0
    %v2829 = vadd.f32 %v2826, %v532
    %v2830 = vxor.u32 %v2829, 2147483648
    %v2831 = vmul.f32 %v2830, 1.442695
    %v2832 = vpow.pop %v2831
    %v2833 = vadd.f32 %v2832, 1.0
    %v2834 = vrcp.pop %v2833
    %v2835 = vmul.f32 1.0, %v2834
    %v2836 = vtanh.pop %v2829
    %v2837 = vmul.f32 %v2835, %v2560
    %2839 = vrot.lane.b32.xlu0 %v2836, 64
    %v2840 = vpop.permute.xlu0 %2839
    %v2842 = vmul.f32 %v2835, %v2840
    %2844 = vrot.lane.b32.xlu0 %v2842, 32
    %v2845 = vpop.permute.xlu0 %2844
    %v2847 = vadd.f32 %v2837, %v2845
    %v2848 = vtanh.pop %v2847
    %2850 = vrot.lane.b32.xlu0 %v2848, 64
    %v2851 = vpop.permute.xlu0 %2850
    %v2853 = vmul.f32 %v2835, %v2851
    %2855 = vrot.lane.b32.xlu0 %v2853, 32
    %v2856 = vpop.permute.xlu0 %2855
    %s2858 = scalar_lea.vmem %s7, 64
    %2859 = vst.msk [vmem:[%s2858] sm:$0xff] %vm124, %v2856
    // Predicated region
    $region54: #{cnn_lstm_forward.2} parent=1 // pred_check
      _
    $region55: #{cnn_lstm_forward.2} parent=1 // pred_check_branch
      %2861 = sbr.rel (0) target = $region57
    $region56: #{cnn_lstm_forward.2} parent=1 // pred_region
      _
    $region57: #{cnn_lstm_forward.2} parent=1 // pred_fallthru
      _
    // Predicated region
    $region58: #{cnn_lstm_forward.2} parent=1 // pred_check
      _
    $region59: #{cnn_lstm_forward.2} parent=1 // pred_check_branch
      %2863 = sbr.rel (0) target = $region61
    $region60: #{cnn_lstm_forward.2} parent=1 // pred_region
      _
    $region61: #{cnn_lstm_forward.2} parent=1 // pred_fallthru
      _
    %2864 = vsyncpa [#allocation4], 1
    %2865 = vsyncpa [#allocation6], 1
    %2866 = vsyncpa [#allocation9], 1
    %2867 = vsyncpa [#allocation12], 1

</llo_original>
